<compile_context>
chip_gen: v6e
topology: v6e:2x2x1
jax: 0.10.0
libtpu: 0.0.40
codegen_flags: <defaults>
</compile_context>

<pallas_src>
import jax
import jax.numpy as jnp
from jax import lax
from jax.experimental import pallas as pl
from jax.experimental.pallas import tpu as pltpu

_EPS = 1e-5  # PyTorch BatchNorm2d default eps


def _round_up(x, m):
    return ((x + m - 1) // m) * m


# ----------------------------- Pallas kernel ------------------------------- #
def _multi_res_kernel(t_ref,                                  # (TILE_N, Kt) bf16 shared taps
                      w1_ref, a1_ref, c1_ref, wp1_ref,        # branch 1: conv W, BN scale/offset, proj slice
                      w2_ref, a2_ref, c2_ref, wp2_ref,
                      w3_ref, a3_ref, c3_ref, wp3_ref,
                      ap_ref, cp_ref,                         # projection BN scale/offset
                      out_ref):
    t = t_ref[...]                                            # load once, reused by all 3 branches

    def branch_project(w_ref, a_ref, c_ref, wp_ref):
        # branch conv as bf16 MXU matmul with f32 accumulation
        y = jnp.dot(t, w_ref[...], preferred_element_type=jnp.float32)
        # folded conv-bias + BatchNorm(eval) + ReLU
        y = jnp.maximum(y * a_ref[...] + c_ref[...], 0.0)
        # this branch's slice of the 1x1 projection (small K -> keep f32/HIGHEST)
        return jnp.dot(y, wp_ref[...], preferred_element_type=jnp.float32,
                       precision=lax.Precision.HIGHEST)

    # sequential accumulation: each (TILE_N, Cp) branch intermediate is consumed
    # before the next branch is built (lower peak VMEM/vreg footprint).
    z = branch_project(w1_ref, a1_ref, c1_ref, wp1_ref)
    z = z + branch_project(w2_ref, a2_ref, c2_ref, wp2_ref)
    z = z + branch_project(w3_ref, a3_ref, c3_ref, wp3_ref)

    out_ref[...] = jnp.maximum(z * ap_ref[...] + cp_ref[...], 0.0)


# ------------------------------- wrapper ------------------------------------ #
def _fold_bn(b, gamma, beta, mean, var):
    a = gamma / jnp.sqrt(var + _EPS)
    c = (b - mean) * a + beta
    return a, c


def multi_res_conv_pallas(x_nchw, params, kernels_size, stride, *, tile_n=None):
    B, C, H, W = x_nchw.shape
    s = int(stride)
    ks = tuple(int(k) for k in kernels_size)
    assert len(ks) == 3, "module defines exactly three branches"
    kmax = max(ks)

    # branch ("valid", stride s) output sizes -- must agree, as torch.cat requires
    h_outs = [(H - k) // s + 1 for k in ks]
    w_outs = [(W - k) // s + 1 for k in ks]
    assert len(set(h_outs)) == 1 and len(set(w_outs)) == 1, \
        "branch outputs must have equal spatial size for torch.cat"
    Hb, Wb = h_outs[0], w_outs[0]
    # final output size after the stride-s 1x1 projection
    Ho, Wo = (Hb - 1) // s + 1, (Wb - 1) // s + 1
    N = B * Ho * Wo
    S = s * s                       # combined input stride (branch * projection)

    wp, bp, gp, betap, mp, vp = params["proj"]
    Cout = wp.shape[0]

    # lane-dense padded channel widths (multiples of 128)
    Cp = _round_up(C, 128)
    Coutp = _round_up(Cout, 128)
    Kt = kmax * kmax * C            # shared tap width per output position

    # --- shared (de-duplicated) tap tensor, bf16 ----------------------------- #
    x = jnp.transpose(x_nchw, (0, 2, 3, 1))       # NHWC for patch extraction
    taps = []
    for ky in range(kmax):
        for kx in range(kmax):
            taps.append(x[:, ky: ky + (Ho - 1) * S + 1: S,
                            kx: kx + (Wo - 1) * S + 1: S, :])   # (B, Ho, Wo, C)
    t = jnp.stack(taps, axis=3).reshape(N, Kt).astype(jnp.bfloat16)

    # --- row tiling ----------------------------------------------------------- #
    if tile_n is None:
        tile_n = 512                # v7x(64 MiB VMEM)-safe; 1024-2048 OK on v5e/v6e
    tile_n = max(16, _round_up(min(tile_n, _round_up(N, 16)), 16))  # bf16 sublane mult.
    N_pad = _round_up(N, tile_n)
    if N_pad != N:
        t = jnp.pad(t, ((0, N_pad - N), (0, 0)))
    n_tiles = N_pad // tile_n

    # --- branch weights embedded into the shared-tap layout, BN folded -------- #
    wp_mat = jnp.transpose(wp, (2, 3, 1, 0)).reshape(3 * C, Cout)   # (3C, Cout)
    w_mats, a_vecs, c_vecs, wp_mats = [], [], [], []
    for i, k in enumerate(ks):
        w, b, gamma, beta, mean, var = params[f"conv{i + 1}"]
        wt = jnp.transpose(w, (2, 3, 1, 0))                          # (k, k, Cin, C)
        w_emb = jnp.zeros((kmax, kmax, C, Cp), jnp.float32)
        w_emb = w_emb.at[:k, :k, :, :C].set(wt)                      # zero taps ky/kx >= k
        w_mats.append(w_emb.reshape(Kt, Cp).astype(jnp.bfloat16))
        a, c = _fold_bn(b, gamma, beta, mean, var)
        a_vecs.append(jnp.zeros((1, Cp), jnp.float32).at[0, :C].set(a))
        c_vecs.append(jnp.zeros((1, Cp), jnp.float32).at[0, :C].set(c))
        wp_emb = jnp.zeros((Cp, Coutp), jnp.float32)
        wp_emb = wp_emb.at[:C, :Cout].set(wp_mat[i * C:(i + 1) * C])
        wp_mats.append(wp_emb)                                       # f32 projection slice
    a_proj, c_proj = _fold_bn(bp, gp, betap, mp, vp)
    ap_pad = jnp.zeros((1, Coutp), jnp.float32).at[0, :Cout].set(a_proj)
    cp_pad = jnp.zeros((1, Coutp), jnp.float32).at[0, :Cout].set(c_proj)

    inputs = (t,
              w_mats[0], a_vecs[0], c_vecs[0], wp_mats[0],
              w_mats[1], a_vecs[1], c_vecs[1], wp_mats[1],
              w_mats[2], a_vecs[2], c_vecs[2], wp_mats[2],
              ap_pad, cp_pad)

    def _resident(arr):             # whole-array block, stays pinned in VMEM
        return pl.BlockSpec(arr.shape, lambda i: (0, 0))

    in_specs = [pl.BlockSpec((tile_n, Kt), lambda i: (i, 0))] \
        + [_resident(arr) for arr in inputs[1:]]
    out_spec = pl.BlockSpec((tile_n, Coutp), lambda i: (i, 0))

    flops = 2 * N_pad * (3 * Kt * Cp + 3 * Cp * Coutp)
    bytes_accessed = (N_pad * Kt * 2                 # bf16 taps
                      + 3 * Kt * Cp * 2              # bf16 branch weights (resident)
                      + 3 * Cp * Coutp * 4           # f32 projection slices (resident)
                      + (6 * Cp + 2 * Coutp) * 4     # folded BN vectors
                      + N_pad * Coutp * 4)           # f32 output

    out_flat = pl.pallas_call(
        _multi_res_kernel,
        out_shape=jax.ShapeDtypeStruct((N_pad, Coutp), jnp.float32),
        grid_spec=pltpu.PrefetchScalarGridSpec(
            num_scalar_prefetch=0,
            grid=(n_tiles,),
            in_specs=in_specs,
            out_specs=out_spec),
        compiler_params=pltpu.CompilerParams(
            dimension_semantics=("parallel",),
            vmem_limit_bytes=48 * 1024 * 1024),
        cost_estimate=pl.CostEstimate(flops=int(flops), transcendentals=0,
                                      bytes_accessed=int(bytes_accessed)),
    )(*inputs)

    out = out_flat[:N, :Cout].reshape(B, Ho, Wo, Cout)
    return jnp.transpose(out, (0, 3, 1, 2))          # -> NCHW


# ------------------------ pure-JAX reference (check) ------------------------ #
def _bf16_rt(a):
    return a.astype(jnp.bfloat16).astype(jnp.float32)


def _block_ref(x, w, b, gamma, beta, mean, var, stride):
    y = lax.conv_general_dilated(
        x, w, (stride, stride), "VALID",
        dimension_numbers=("NCHW", "OIHW", "NCHW"),
        precision=lax.Precision.HIGHEST)
    y = y + b[None, :, None, None]
    y = (y - mean[None, :, None, None]) / jnp.sqrt(var + _EPS)[None, :, None, None]
    y = y * gamma[None, :, None, None] + beta[None, :, None, None]
    return jnp.maximum(y, 0.0)


def multi_res_conv_reference(x, params, kernels_size, stride, *, mirror_bf16=False):
    """mirror_bf16=True quantizes exactly the operands the kernel quantizes
    (input taps + branch conv weights) to bf16, so it matches the kernel to
    f32-accumulation-order noise; False is the exact fp32 module forward."""
    q = _bf16_rt if mirror_bf16 else (lambda a: a)
    outs = []
    for i in range(3):
        w, b, gamma, beta, mean, var = params[f"conv{i + 1}"]
        outs.append(_block_ref(q(x), q(w), b, gamma, beta, mean, var, stride))
    cat = jnp.concatenate(outs, axis=1)
    return _block_ref(cat, *params["proj"], stride)


# ----------------------------- parameter init ------------------------------- #
def init_params(key, in_channels, out_channels, kernels_size):
    def make_block(k, c_in, c_out, ksize):
        kw_, kb_, kg_, kbe_, km_, kv_ = jax.random.split(k, 6)
        fan_in = c_in * ksize * ksize
        w = jax.random.normal(kw_, (c_out, c_in, ksize, ksize), jnp.float32) / jnp.sqrt(fan_in)
        b = 0.1 * jax.random.normal(kb_, (c_out,), jnp.float32)
        gamma = 1.0 + 0.1 * jax.random.normal(kg_, (c_out,), jnp.float32)
        beta = 0.1 * jax.random.normal(kbe_, (c_out,), jnp.float32)
        mean = 0.1 * jax.random.normal(km_, (c_out,), jnp.float32)
        var = 0.5 + 0.5 * jnp.abs(jax.random.normal(kv_, (c_out,), jnp.float32))
        return (w, b, gamma, beta, mean, var)

    keys = jax.random.split(key, len(kernels_size) + 1)
    params = {}
    for i, ks in enumerate(kernels_size):
        params[f"conv{i + 1}"] = make_block(keys[i], in_channels, in_channels, ks)
    params["proj"] = make_block(keys[-1], 3 * in_channels, out_channels, 1)
    return params


# ---------------------------------- main ------------------------------------ #
if __name__ == "__main__":
    key = jax.random.PRNGKey(0)
    k_x, k_p = jax.random.split(key)

    B, Cin, Cout, H, W = 2, 4, 8, 28, 28
    # kernel sizes chosen so all branch outputs share the same spatial size
    # ((28-2)//3, (28-3)//3, (28-4)//3 all give 8 -> 9x9), as torch.cat demands.
    kernels_size = (2, 3, 4)
    stride = 3

    x = jax.random.normal(k_x, (B, Cin, H, W), jnp.float32)
    params = init_params(k_p, Cin, Cout, kernels_size)

    # tile_n=16: small tile so the demo exercises a multi-step pipelined grid
    # (N = 2*3*3 = 18 rows -> padded to 32 -> 2 grid steps).
    out = multi_res_conv_pallas(x, params, kernels_size, stride, tile_n=16)
    out = jax.block_until_ready(out)

    # (1) tight check vs a reference that mirrors the kernel's bf16 operand
    #     quantization exactly -> validates the kernel math itself.
    ref_q = multi_res_conv_reference(x, params, kernels_size, stride, mirror_bf16=True)
    assert out.shape == ref_q.shape, (out.shape, ref_q.shape)
    assert jnp.allclose(out, ref_q, atol=1e-3, rtol=1e-3), \
        float(jnp.max(jnp.abs(out - ref_q)))

    # (2) sanity check vs the exact fp32 module forward -> bounds the bf16
    #     quantization error of the fast path.
    ref = multi_res_conv_reference(x, params, kernels_size, stride)
    assert jnp.allclose(out, ref, atol=5e-2, rtol=5e-2), \
        float(jnp.max(jnp.abs(out - ref)))

    print("KERNEL_OK")
</pallas_src>

<mosaic_0001>
module attributes {stable_mosaic.version = 11 : i64} {
  func.func @_multi_res_kernel(%arg0: i32, %arg1: memref<16x64xbf16, #tpu.memory_space<vmem>>, %arg2: memref<64x128xbf16, #tpu.memory_space<vmem>>, %arg3: memref<1x128xf32, #tpu.memory_space<vmem>>, %arg4: memref<1x128xf32, #tpu.memory_space<vmem>>, %arg5: memref<128x128xf32, #tpu.memory_space<vmem>>, %arg6: memref<64x128xbf16, #tpu.memory_space<vmem>>, %arg7: memref<1x128xf32, #tpu.memory_space<vmem>>, %arg8: memref<1x128xf32, #tpu.memory_space<vmem>>, %arg9: memref<128x128xf32, #tpu.memory_space<vmem>>, %arg10: memref<64x128xbf16, #tpu.memory_space<vmem>>, %arg11: memref<1x128xf32, #tpu.memory_space<vmem>>, %arg12: memref<1x128xf32, #tpu.memory_space<vmem>>, %arg13: memref<128x128xf32, #tpu.memory_space<vmem>>, %arg14: memref<1x128xf32, #tpu.memory_space<vmem>>, %arg15: memref<1x128xf32, #tpu.memory_space<vmem>>, %arg16: memref<16x128xf32, #tpu.memory_space<vmem>>) attributes {dimension_semantics = [#tpu.dimension_semantics<parallel>], iteration_bounds = array<i64: 2>, scalar_prefetch = 0 : i64, scratch_operands = 0 : i64, tpu.core_type = #tpu.core_type<tc>, window_params = [{transform_indices = @transform_0, window_bounds = array<i64: 16, 64>}, {pipeline_mode = #tpu.pipeline_mode<synchronous>, transform_indices = @transform_1, window_bounds = array<i64: 64, 128>}, {pipeline_mode = #tpu.pipeline_mode<synchronous>, transform_indices = @transform_2, window_bounds = array<i64: 1, 128>}, {pipeline_mode = #tpu.pipeline_mode<synchronous>, transform_indices = @transform_3, window_bounds = array<i64: 1, 128>}, {pipeline_mode = #tpu.pipeline_mode<synchronous>, transform_indices = @transform_4, window_bounds = array<i64: 128, 128>}, {pipeline_mode = #tpu.pipeline_mode<synchronous>, transform_indices = @transform_5, window_bounds = array<i64: 64, 128>}, {pipeline_mode = #tpu.pipeline_mode<synchronous>, transform_indices = @transform_6, window_bounds = array<i64: 1, 128>}, {pipeline_mode = #tpu.pipeline_mode<synchronous>, transform_indices = @transform_7, window_bounds = array<i64: 1, 128>}, {pipeline_mode = #tpu.pipeline_mode<synchronous>, transform_indices = @transform_8, window_bounds = array<i64: 128, 128>}, {pipeline_mode = #tpu.pipeline_mode<synchronous>, transform_indices = @transform_9, window_bounds = array<i64: 64, 128>}, {pipeline_mode = #tpu.pipeline_mode<synchronous>, transform_indices = @transform_10, window_bounds = array<i64: 1, 128>}, {pipeline_mode = #tpu.pipeline_mode<synchronous>, transform_indices = @transform_11, window_bounds = array<i64: 1, 128>}, {pipeline_mode = #tpu.pipeline_mode<synchronous>, transform_indices = @transform_12, window_bounds = array<i64: 128, 128>}, {pipeline_mode = #tpu.pipeline_mode<synchronous>, transform_indices = @transform_13, window_bounds = array<i64: 1, 128>}, {pipeline_mode = #tpu.pipeline_mode<synchronous>, transform_indices = @transform_14, window_bounds = array<i64: 1, 128>}, {transform_indices = @transform_15, window_bounds = array<i64: 16, 128>}]} {
    %c0 = arith.constant 0 : index
    %c0_0 = arith.constant 0 : index
    %0 = vector.load %arg1[%c0, %c0_0] : memref<16x64xbf16, #tpu.memory_space<vmem>>, vector<16x64xbf16>
    %c0_1 = arith.constant 0 : index
    %c0_2 = arith.constant 0 : index
    %1 = vector.load %arg2[%c0_1, %c0_2] : memref<64x128xbf16, #tpu.memory_space<vmem>>, vector<64x128xbf16>
    %cst = arith.constant dense<0.000000e+00> : vector<16x128xf32>
    %2 = tpu.matmul %0, %1, %cst {dimension_numbers = #tpu.dot_dimension_numbers<[1], [0], [0], [1], [0, 0, 1, 1], [], []>} : vector<16x64xbf16>, vector<64x128xbf16>, vector<16x128xf32> -> vector<16x128xf32>
    %c0_3 = arith.constant 0 : index
    %c0_4 = arith.constant 0 : index
    %3 = vector.load %arg3[%c0_3, %c0_4] : memref<1x128xf32, #tpu.memory_space<vmem>>, vector<1x128xf32>
    %4 = vector.broadcast %3 : vector<1x128xf32> to vector<16x128xf32>
    %5 = arith.mulf %2, %4 : vector<16x128xf32>
    %c0_5 = arith.constant 0 : index
    %c0_6 = arith.constant 0 : index
    %6 = vector.load %arg4[%c0_5, %c0_6] : memref<1x128xf32, #tpu.memory_space<vmem>>, vector<1x128xf32>
    %7 = vector.broadcast %6 : vector<1x128xf32> to vector<16x128xf32>
    %8 = arith.addf %5, %7 : vector<16x128xf32>
    %cst_7 = arith.constant 0.000000e+00 : f32
    %9 = vector.broadcast %cst_7 : f32 to vector<16x128xf32>
    %10 = arith.maximumf %8, %9 : vector<16x128xf32>
    %c0_8 = arith.constant 0 : index
    %c0_9 = arith.constant 0 : index
    %11 = vector.load %arg5[%c0_8, %c0_9] : memref<128x128xf32, #tpu.memory_space<vmem>>, vector<128x128xf32>
    %cst_10 = arith.constant dense<0.000000e+00> : vector<16x128xf32>
    %12 = tpu.matmul %10, %11, %cst_10 {dimension_numbers = #tpu.dot_dimension_numbers<[1], [0], [0], [1], [0, 0, 1, 1], [], []>, precision = #tpu.contract_precision<fp32>} : vector<16x128xf32>, vector<128x128xf32>, vector<16x128xf32> -> vector<16x128xf32>
    %c0_11 = arith.constant 0 : index
    %c0_12 = arith.constant 0 : index
    %13 = vector.load %arg6[%c0_11, %c0_12] : memref<64x128xbf16, #tpu.memory_space<vmem>>, vector<64x128xbf16>
    %cst_13 = arith.constant dense<0.000000e+00> : vector<16x128xf32>
    %14 = tpu.matmul %0, %13, %cst_13 {dimension_numbers = #tpu.dot_dimension_numbers<[1], [0], [0], [1], [0, 0, 1, 1], [], []>} : vector<16x64xbf16>, vector<64x128xbf16>, vector<16x128xf32> -> vector<16x128xf32>
    %c0_14 = arith.constant 0 : index
    %c0_15 = arith.constant 0 : index
    %15 = vector.load %arg7[%c0_14, %c0_15] : memref<1x128xf32, #tpu.memory_space<vmem>>, vector<1x128xf32>
    %16 = vector.broadcast %15 : vector<1x128xf32> to vector<16x128xf32>
    %17 = arith.mulf %14, %16 : vector<16x128xf32>
    %c0_16 = arith.constant 0 : index
    %c0_17 = arith.constant 0 : index
    %18 = vector.load %arg8[%c0_16, %c0_17] : memref<1x128xf32, #tpu.memory_space<vmem>>, vector<1x128xf32>
    %19 = vector.broadcast %18 : vector<1x128xf32> to vector<16x128xf32>
    %20 = arith.addf %17, %19 : vector<16x128xf32>
    %cst_18 = arith.constant 0.000000e+00 : f32
    %21 = vector.broadcast %cst_18 : f32 to vector<16x128xf32>
    %22 = arith.maximumf %20, %21 : vector<16x128xf32>
    %c0_19 = arith.constant 0 : index
    %c0_20 = arith.constant 0 : index
    %23 = vector.load %arg9[%c0_19, %c0_20] : memref<128x128xf32, #tpu.memory_space<vmem>>, vector<128x128xf32>
    %cst_21 = arith.constant dense<0.000000e+00> : vector<16x128xf32>
    %24 = tpu.matmul %22, %23, %cst_21 {dimension_numbers = #tpu.dot_dimension_numbers<[1], [0], [0], [1], [0, 0, 1, 1], [], []>, precision = #tpu.contract_precision<fp32>} : vector<16x128xf32>, vector<128x128xf32>, vector<16x128xf32> -> vector<16x128xf32>
    %25 = arith.addf %12, %24 : vector<16x128xf32>
    %c0_22 = arith.constant 0 : index
    %c0_23 = arith.constant 0 : index
    %26 = vector.load %arg10[%c0_22, %c0_23] : memref<64x128xbf16, #tpu.memory_space<vmem>>, vector<64x128xbf16>
    %cst_24 = arith.constant dense<0.000000e+00> : vector<16x128xf32>
    %27 = tpu.matmul %0, %26, %cst_24 {dimension_numbers = #tpu.dot_dimension_numbers<[1], [0], [0], [1], [0, 0, 1, 1], [], []>} : vector<16x64xbf16>, vector<64x128xbf16>, vector<16x128xf32> -> vector<16x128xf32>
    %c0_25 = arith.constant 0 : index
    %c0_26 = arith.constant 0 : index
    %28 = vector.load %arg11[%c0_25, %c0_26] : memref<1x128xf32, #tpu.memory_space<vmem>>, vector<1x128xf32>
    %29 = vector.broadcast %28 : vector<1x128xf32> to vector<16x128xf32>
    %30 = arith.mulf %27, %29 : vector<16x128xf32>
    %c0_27 = arith.constant 0 : index
    %c0_28 = arith.constant 0 : index
    %31 = vector.load %arg12[%c0_27, %c0_28] : memref<1x128xf32, #tpu.memory_space<vmem>>, vector<1x128xf32>
    %32 = vector.broadcast %31 : vector<1x128xf32> to vector<16x128xf32>
    %33 = arith.addf %30, %32 : vector<16x128xf32>
    %cst_29 = arith.constant 0.000000e+00 : f32
    %34 = vector.broadcast %cst_29 : f32 to vector<16x128xf32>
    %35 = arith.maximumf %33, %34 : vector<16x128xf32>
    %c0_30 = arith.constant 0 : index
    %c0_31 = arith.constant 0 : index
    %36 = vector.load %arg13[%c0_30, %c0_31] : memref<128x128xf32, #tpu.memory_space<vmem>>, vector<128x128xf32>
    %cst_32 = arith.constant dense<0.000000e+00> : vector<16x128xf32>
    %37 = tpu.matmul %35, %36, %cst_32 {dimension_numbers = #tpu.dot_dimension_numbers<[1], [0], [0], [1], [0, 0, 1, 1], [], []>, precision = #tpu.contract_precision<fp32>} : vector<16x128xf32>, vector<128x128xf32>, vector<16x128xf32> -> vector<16x128xf32>
    %38 = arith.addf %25, %37 : vector<16x128xf32>
    %c0_33 = arith.constant 0 : index
    %c0_34 = arith.constant 0 : index
    %39 = vector.load %arg14[%c0_33, %c0_34] : memref<1x128xf32, #tpu.memory_space<vmem>>, vector<1x128xf32>
    %40 = vector.broadcast %39 : vector<1x128xf32> to vector<16x128xf32>
    %41 = arith.mulf %38, %40 : vector<16x128xf32>
    %c0_35 = arith.constant 0 : index
    %c0_36 = arith.constant 0 : index
    %42 = vector.load %arg15[%c0_35, %c0_36] : memref<1x128xf32, #tpu.memory_space<vmem>>, vector<1x128xf32>
    %43 = vector.broadcast %42 : vector<1x128xf32> to vector<16x128xf32>
    %44 = arith.addf %41, %43 : vector<16x128xf32>
    %cst_37 = arith.constant 0.000000e+00 : f32
    %45 = vector.broadcast %cst_37 : f32 to vector<16x128xf32>
    %46 = arith.maximumf %44, %45 : vector<16x128xf32>
    %c0_38 = arith.constant 0 : index
    %c0_39 = arith.constant 0 : index
    %47 = vector.load %arg16[%c0_38, %c0_39] : memref<16x128xf32, #tpu.memory_space<vmem>>, vector<16x128xf32>
    tpu.vector_store %arg16[%c0_38, %c0_39], %46 {strides = array<i32>} : memref<16x128xf32, #tpu.memory_space<vmem>>, vector<16x128xf32>,
    return
  }
  func.func @transform_0(%arg0: i32) -> (i32, i32) {
    %c0_i32 = arith.constant 0 : i32
    %c0_i32_0 = arith.constant 0 : i32
    return %arg0, %c0_i32 : i32, i32
  }
  func.func @transform_1(%arg0: i32) -> (i32, i32) {
    %c0_i32 = arith.constant 0 : i32
    %c0_i32_0 = arith.constant 0 : i32
    %c0_i32_1 = arith.constant 0 : i32
    return %c0_i32, %c0_i32_0 : i32, i32
  }
  func.func @transform_2(%arg0: i32) -> (i32, i32) {
    %c0_i32 = arith.constant 0 : i32
    %c0_i32_0 = arith.constant 0 : i32
    %c0_i32_1 = arith.constant 0 : i32
    return %c0_i32, %c0_i32_0 : i32, i32
  }
  func.func @transform_3(%arg0: i32) -> (i32, i32) {
    %c0_i32 = arith.constant 0 : i32
    %c0_i32_0 = arith.constant 0 : i32
    %c0_i32_1 = arith.constant 0 : i32
    return %c0_i32, %c0_i32_0 : i32, i32
  }
  func.func @transform_4(%arg0: i32) -> (i32, i32) {
    %c0_i32 = arith.constant 0 : i32
    %c0_i32_0 = arith.constant 0 : i32
    %c0_i32_1 = arith.constant 0 : i32
    return %c0_i32, %c0_i32_0 : i32, i32
  }
  func.func @transform_5(%arg0: i32) -> (i32, i32) {
    %c0_i32 = arith.constant 0 : i32
    %c0_i32_0 = arith.constant 0 : i32
    %c0_i32_1 = arith.constant 0 : i32
    return %c0_i32, %c0_i32_0 : i32, i32
  }
  func.func @transform_6(%arg0: i32) -> (i32, i32) {
    %c0_i32 = arith.constant 0 : i32
    %c0_i32_0 = arith.constant 0 : i32
    %c0_i32_1 = arith.constant 0 : i32
    return %c0_i32, %c0_i32_0 : i32, i32
  }
  func.func @transform_7(%arg0: i32) -> (i32, i32) {
    %c0_i32 = arith.constant 0 : i32
    %c0_i32_0 = arith.constant 0 : i32
    %c0_i32_1 = arith.constant 0 : i32
    return %c0_i32, %c0_i32_0 : i32, i32
  }
  func.func @transform_8(%arg0: i32) -> (i32, i32) {
    %c0_i32 = arith.constant 0 : i32
    %c0_i32_0 = arith.constant 0 : i32
    %c0_i32_1 = arith.constant 0 : i32
    return %c0_i32, %c0_i32_0 : i32, i32
  }
  func.func @transform_9(%arg0: i32) -> (i32, i32) {
    %c0_i32 = arith.constant 0 : i32
    %c0_i32_0 = arith.constant 0 : i32
    %c0_i32_1 = arith.constant 0 : i32
    return %c0_i32, %c0_i32_0 : i32, i32
  }
  func.func @transform_10(%arg0: i32) -> (i32, i32) {
    %c0_i32 = arith.constant 0 : i32
    %c0_i32_0 = arith.constant 0 : i32
    %c0_i32_1 = arith.constant 0 : i32
    return %c0_i32, %c0_i32_0 : i32, i32
  }
  func.func @transform_11(%arg0: i32) -> (i32, i32) {
    %c0_i32 = arith.constant 0 : i32
    %c0_i32_0 = arith.constant 0 : i32
    %c0_i32_1 = arith.constant 0 : i32
    return %c0_i32, %c0_i32_0 : i32, i32
  }
  func.func @transform_12(%arg0: i32) -> (i32, i32) {
    %c0_i32 = arith.constant 0 : i32
    %c0_i32_0 = arith.constant 0 : i32
    %c0_i32_1 = arith.constant 0 : i32
    return %c0_i32, %c0_i32_0 : i32, i32
  }
  func.func @transform_13(%arg0: i32) -> (i32, i32) {
    %c0_i32 = arith.constant 0 : i32
    %c0_i32_0 = arith.constant 0 : i32
    %c0_i32_1 = arith.constant 0 : i32
    return %c0_i32, %c0_i32_0 : i32, i32
  }
  func.func @transform_14(%arg0: i32) -> (i32, i32) {
    %c0_i32 = arith.constant 0 : i32
    %c0_i32_0 = arith.constant 0 : i32
    %c0_i32_1 = arith.constant 0 : i32
    return %c0_i32, %c0_i32_0 : i32, i32
  }
  func.func @transform_15(%arg0: i32) -> (i32, i32) {
    %c0_i32 = arith.constant 0 : i32
    %c0_i32_0 = arith.constant 0 : i32
    return %arg0, %c0_i32 : i32, i32
  }
}

</mosaic_0001>

<llo_original>
// kernel: tpu_custom_call.1
$region0: #{tpu_custom_call.1}
  #allocation0 [shape = 'u32[]', space=smem, size = 0x4, offset = 0x4, fixed_abs, tag = 'smem constant byte address 0x4 - core index']
  #allocation1 [shape = 'u32[144,128]{1,0:T(1,128)}', space=vmem, size = 0x12000, scoped, tag = 'internal scratch']
  %s0 = inlined_call_operand.hbm [shape: bf16[32,64], index: 0, kind: input, shape index: {}]
  %s1 = inlined_call_operand.hbm [shape: bf16[64,128], index: 1, kind: input, shape index: {}]
  %s2 = inlined_call_operand.vmem [shape: f32[1,128], index: 2, kind: input, shape index: {}]
  %s3 = inlined_call_operand.vmem [shape: f32[1,128], index: 3, kind: input, shape index: {}]
  %s4 = inlined_call_operand.hbm [shape: f32[128,128], index: 4, kind: input, shape index: {}]
  %s5 = inlined_call_operand.hbm [shape: bf16[64,128], index: 5, kind: input, shape index: {}]
  %s6 = inlined_call_operand.vmem [shape: f32[1,128], index: 6, kind: input, shape index: {}]
  %s7 = inlined_call_operand.vmem [shape: f32[1,128], index: 7, kind: input, shape index: {}]
  %s8 = inlined_call_operand.hbm [shape: f32[128,128], index: 8, kind: input, shape index: {}]
  %s9 = inlined_call_operand.hbm [shape: bf16[64,128], index: 9, kind: input, shape index: {}]
  %s10 = inlined_call_operand.vmem [shape: f32[1,128], index: 10, kind: input, shape index: {}]
  %s11 = inlined_call_operand.vmem [shape: f32[1,128], index: 11, kind: input, shape index: {}]
  %s12 = inlined_call_operand.hbm [shape: f32[128,128], index: 12, kind: input, shape index: {}]
  %s13 = inlined_call_operand.vmem [shape: f32[1,128], index: 13, kind: input, shape index: {}]
  %s14 = inlined_call_operand.vmem [shape: f32[1,128], index: 14, kind: input, shape index: {}]
  %s15 = inlined_call_operand.hbm [shape: f32[32,128], index: 15, kind: output, shape index: {}]
  %s16 = sld [smem:[#allocation0]]
  $region121: #{tpu_custom_call.1} parent=0
    _
  %s18 = ssub.s32 1, %s16
  %s19 = scalar_select 0, %s18, %s16
  $region1: #{tpu_custom_call.1} parent=0
    #allocation2 [shape = 'u8[8192]{0}', space=vmem, size = 0x2000, scoped, tag = 'input window, operand 0']
    #allocation3 [shape = 's32[2]{0}', space=sflag, size = 0x8, scoped, tag = 'scoped memory for tpu_custom_call.1']
    #allocation4 [shape = 's32[2]{0}', space=sflag, size = 0x8, scoped, tag = 'scoped memory for tpu_custom_call.1']
    #allocation5 [shape = 'u8[16384]{0}', space=vmem, size = 0x4000, scoped, tag = 'input window, operand 1, single buffered']
    #allocation6 [shape = 's32[1]{0}', space=sflag, size = 0x4, scoped, tag = 'scoped memory for tpu_custom_call.1']
    #allocation7 [shape = 'u8[65536]{0}', space=vmem, size = 0x10000, scoped, tag = 'input window, operand 4, single buffered']
    #allocation8 [shape = 'u8[16384]{0}', space=vmem, size = 0x4000, scoped, tag = 'input window, operand 5, single buffered']
    #allocation9 [shape = 's32[1]{0}', space=sflag, size = 0x4, scoped, tag = 'scoped memory for tpu_custom_call.1']
    #allocation10 [shape = 'u8[65536]{0}', space=vmem, size = 0x10000, scoped, tag = 'input window, operand 8, single buffered']
    #allocation11 [shape = 'u8[16384]{0}', space=vmem, size = 0x4000, scoped, tag = 'input window, operand 9, single buffered']
    #allocation12 [shape = 's32[1]{0}', space=sflag, size = 0x4, scoped, tag = 'scoped memory for tpu_custom_call.1']
    #allocation13 [shape = 'u8[65536]{0}', space=vmem, size = 0x10000, scoped, tag = 'input window, operand 12, single buffered']
    #allocation14 [shape = 'u8[16384]{0}', space=vmem, size = 0x4000, scoped, tag = 'output window, operand 0']
    %20 = vsyncpa [#allocation3], 0
    %s21 = scalar_lea.sflag [#allocation3], 1
    %22 = vsyncpa %s21, 0
    %23 = vsyncpa [#allocation6], 0
    %24 = vsyncpa [#allocation9], 0
    %25 = vsyncpa [#allocation12], 0
    %26 = vsyncpa [#allocation4], 0
    %s27 = scalar_lea.sflag [#allocation4], 1
    %28 = vsyncpa %s27, 0
    loop: start=0, step=1, limit=4
    $region2: #{tpu_custom_call.1} parent=1 // loop_pre_header
      _
    $region3: #{tpu_custom_call.1} parent=1 // loop_header
      %s30 = sphi 0, %s34
      %p31 = scmp.ge.s32.totalorder %s30, 4
      %s40 = sphi 0, %s42
      %s43 = sphi 0, %s40
      %s44 = sphi 0, %s43
      %s60 = sphi 0, %s44
      %s64 = sphi 0, %s64
      %s66 = sphi 0, %s64
      %s67 = sphi 0, %s66
      %s81 = sphi 0, %s67
      %s85 = sphi 0, %s85
      %s87 = sphi 0, %s85
      %s88 = sphi 0, %s87
      %s102 = sphi 0, %s88
      %s106 = sphi 0, %s106
      %s108 = sphi 0, %s106
      %s109 = sphi 0, %s108
      %s123 = sphi 0, %s109
      %s127 = sphi 0, %s127
      %s129 = sphi 0, %s127
      %s130 = sphi 0, %s129
      %s144 = sphi 0, %s130
      %s148 = sphi 0, %s148
      %s150 = sphi 0, %s148
      %s151 = sphi 0, %s150
      %s165 = sphi 0, %s151
      %s169 = sphi 0, %s169
      %s171 = sphi 0, %s169
      %s172 = sphi 0, %s171
      %s186 = sphi 0, %s172
      %s190 = sphi 0, %s190
      %s192 = sphi 0, %s190
      %s193 = sphi 0, %s192
      %s207 = sphi 0, %s193
      %s211 = sphi 0, %s211
      %s213 = sphi 0, %s211
      %s214 = sphi 0, %s213
      %s228 = sphi 0, %s214
      %s232 = sphi 0, %s232
      %s234 = sphi 0, %s232
      %s235 = sphi 0, %s234
      %s249 = sphi 0, %s235
      %s253 = sphi 0, %s253
      %s255 = sphi 0, %s253
      %s256 = sphi 0, %s255
      %s270 = sphi 0, %s256
      %s274 = sphi 0, %s274
      %s276 = sphi 0, %s274
      %s277 = sphi 0, %s276
      %s291 = sphi 0, %s277
      %s295 = sphi 0, %s295
      %s297 = sphi 0, %s295
      %s298 = sphi 0, %s297
      %s312 = sphi 0, %s298
      %s316 = sphi 0, %s316
      %s318 = sphi 0, %s316
      %s319 = sphi 0, %s318
      %s333 = sphi 0, %s319
      %s337 = sphi 0, %s337
      %s339 = sphi 0, %s337
      %s340 = sphi 0, %s339
      %s354 = sphi 0, %s340
      %s360 = sphi 0, %s362
      %s363 = sphi 0, %s360
      %s364 = sphi 0, %s363
      %s380 = sphi 0, %s364
    $region4: #{tpu_custom_call.1} parent=1 // loop_header_branch
      %33 = sbr.rel (%p31) target = $region8
    $region5: #{tpu_custom_call.1} parent=1 // loop_body
      %s35 = ssub.s32 %s30, 1
      %s36 = ssub.s32 %s30, 2
      %s37 = sadd.s32 %s30, 1
      %s38 = ssub.s32 %s30, %s37
      %p39 = scmp.eq.s32.totalorder %s38, 0
      %s41 = sadd.s32 %s40, 1
      %s42 = scalar_select %p39, %s40, %s41
      %p45 = pneg %p39
      %p46 = scmp.eq.s32.totalorder %s30, 1
      %p47 = por %p45, %p46
      %p48 = scmp.ne.s32.totalorder %s40, %s43
      %p49 = scmp.eq.s32.totalorder %s30, 0
      %p50 = por %p48, %p49
      %p51 = scmp.ne.s32.totalorder %s40, %s43
      %p52 = scmp.eq.s32.totalorder %s35, 1
      %p53 = por %p51, %p52
      %p54 = scmp.ne.s32.totalorder %s43, %s44
      %p55 = scmp.eq.s32.totalorder %s35, 0
      %p56 = por %p54, %p55
      %p57 = scmp.ne.s32.totalorder %s43, %s44
      %p58 = scmp.eq.s32.totalorder %s36, 1
      %p59 = por %p57, %p58
      %p61 = scmp.ne.s32.totalorder %s44, %s60
      %p62 = scmp.eq.s32.totalorder %s36, 0
      %p63 = por %p61, %p62
      %s65 = sadd.s32 %s64, 1
      %p68 = scmp.eq.s32.totalorder %s30, 1
      %p69 = scmp.ne.s32.totalorder %s64, %s66
      %p70 = scmp.eq.s32.totalorder %s30, 0
      %p71 = por %p69, %p70
      %p72 = scmp.ne.s32.totalorder %s64, %s66
      %p73 = scmp.eq.s32.totalorder %s35, 1
      %p74 = por %p72, %p73
      %p75 = scmp.ne.s32.totalorder %s66, %s67
      %p76 = scmp.eq.s32.totalorder %s35, 0
      %p77 = por %p75, %p76
      %p78 = scmp.ne.s32.totalorder %s66, %s67
      %p79 = scmp.eq.s32.totalorder %s36, 1
      %p80 = por %p78, %p79
      %p82 = scmp.ne.s32.totalorder %s67, %s81
      %p83 = scmp.eq.s32.totalorder %s36, 0
      %p84 = por %p82, %p83
      %s86 = sadd.s32 %s85, 1
      %p89 = scmp.eq.s32.totalorder %s30, 1
      %p90 = scmp.ne.s32.totalorder %s85, %s87
      %p91 = scmp.eq.s32.totalorder %s30, 0
      %p92 = por %p90, %p91
      %p93 = scmp.ne.s32.totalorder %s85, %s87
      %p94 = scmp.eq.s32.totalorder %s35, 1
      %p95 = por %p93, %p94
      %p96 = scmp.ne.s32.totalorder %s87, %s88
      %p97 = scmp.eq.s32.totalorder %s35, 0
      %p98 = por %p96, %p97
      %p99 = scmp.ne.s32.totalorder %s87, %s88
      %p100 = scmp.eq.s32.totalorder %s36, 1
      %p101 = por %p99, %p100
      %p103 = scmp.ne.s32.totalorder %s88, %s102
      %p104 = scmp.eq.s32.totalorder %s36, 0
      %p105 = por %p103, %p104
      %s107 = sadd.s32 %s106, 1
      %p110 = scmp.eq.s32.totalorder %s30, 1
      %p111 = scmp.ne.s32.totalorder %s106, %s108
      %p112 = scmp.eq.s32.totalorder %s30, 0
      %p113 = por %p111, %p112
      %p114 = scmp.ne.s32.totalorder %s106, %s108
      %p115 = scmp.eq.s32.totalorder %s35, 1
      %p116 = por %p114, %p115
      %p117 = scmp.ne.s32.totalorder %s108, %s109
      %p118 = scmp.eq.s32.totalorder %s35, 0
      %p119 = por %p117, %p118
      %p120 = scmp.ne.s32.totalorder %s108, %s109
      %p121 = scmp.eq.s32.totalorder %s36, 1
      %p122 = por %p120, %p121
      %p124 = scmp.ne.s32.totalorder %s109, %s123
      %p125 = scmp.eq.s32.totalorder %s36, 0
      %p126 = por %p124, %p125
      %s128 = sadd.s32 %s127, 1
      %p131 = scmp.eq.s32.totalorder %s30, 1
      %p132 = scmp.ne.s32.totalorder %s127, %s129
      %p133 = scmp.eq.s32.totalorder %s30, 0
      %p134 = por %p132, %p133
      %p135 = scmp.ne.s32.totalorder %s127, %s129
      %p136 = scmp.eq.s32.totalorder %s35, 1
      %p137 = por %p135, %p136
      %p138 = scmp.ne.s32.totalorder %s129, %s130
      %p139 = scmp.eq.s32.totalorder %s35, 0
      %p140 = por %p138, %p139
      %p141 = scmp.ne.s32.totalorder %s129, %s130
      %p142 = scmp.eq.s32.totalorder %s36, 1
      %p143 = por %p141, %p142
      %p145 = scmp.ne.s32.totalorder %s130, %s144
      %p146 = scmp.eq.s32.totalorder %s36, 0
      %p147 = por %p145, %p146
      %s149 = sadd.s32 %s148, 1
      %p152 = scmp.eq.s32.totalorder %s30, 1
      %p153 = scmp.ne.s32.totalorder %s148, %s150
      %p154 = scmp.eq.s32.totalorder %s30, 0
      %p155 = por %p153, %p154
      %p156 = scmp.ne.s32.totalorder %s148, %s150
      %p157 = scmp.eq.s32.totalorder %s35, 1
      %p158 = por %p156, %p157
      %p159 = scmp.ne.s32.totalorder %s150, %s151
      %p160 = scmp.eq.s32.totalorder %s35, 0
      %p161 = por %p159, %p160
      %p162 = scmp.ne.s32.totalorder %s150, %s151
      %p163 = scmp.eq.s32.totalorder %s36, 1
      %p164 = por %p162, %p163
      %p166 = scmp.ne.s32.totalorder %s151, %s165
      %p167 = scmp.eq.s32.totalorder %s36, 0
      %p168 = por %p166, %p167
      %s170 = sadd.s32 %s169, 1
      %p173 = scmp.eq.s32.totalorder %s30, 1
      %p174 = scmp.ne.s32.totalorder %s169, %s171
      %p175 = scmp.eq.s32.totalorder %s30, 0
      %p176 = por %p174, %p175
      %p177 = scmp.ne.s32.totalorder %s169, %s171
      %p178 = scmp.eq.s32.totalorder %s35, 1
      %p179 = por %p177, %p178
      %p180 = scmp.ne.s32.totalorder %s171, %s172
      %p181 = scmp.eq.s32.totalorder %s35, 0
      %p182 = por %p180, %p181
      %p183 = scmp.ne.s32.totalorder %s171, %s172
      %p184 = scmp.eq.s32.totalorder %s36, 1
      %p185 = por %p183, %p184
      %p187 = scmp.ne.s32.totalorder %s172, %s186
      %p188 = scmp.eq.s32.totalorder %s36, 0
      %p189 = por %p187, %p188
      %s191 = sadd.s32 %s190, 1
      %p194 = scmp.eq.s32.totalorder %s30, 1
      %p195 = scmp.ne.s32.totalorder %s190, %s192
      %p196 = scmp.eq.s32.totalorder %s30, 0
      %p197 = por %p195, %p196
      %p198 = scmp.ne.s32.totalorder %s190, %s192
      %p199 = scmp.eq.s32.totalorder %s35, 1
      %p200 = por %p198, %p199
      %p201 = scmp.ne.s32.totalorder %s192, %s193
      %p202 = scmp.eq.s32.totalorder %s35, 0
      %p203 = por %p201, %p202
      %p204 = scmp.ne.s32.totalorder %s192, %s193
      %p205 = scmp.eq.s32.totalorder %s36, 1
      %p206 = por %p204, %p205
      %p208 = scmp.ne.s32.totalorder %s193, %s207
      %p209 = scmp.eq.s32.totalorder %s36, 0
      %p210 = por %p208, %p209
      %s212 = sadd.s32 %s211, 1
      %p215 = scmp.eq.s32.totalorder %s30, 1
      %p216 = scmp.ne.s32.totalorder %s211, %s213
      %p217 = scmp.eq.s32.totalorder %s30, 0
      %p218 = por %p216, %p217
      %p219 = scmp.ne.s32.totalorder %s211, %s213
      %p220 = scmp.eq.s32.totalorder %s35, 1
      %p221 = por %p219, %p220
      %p222 = scmp.ne.s32.totalorder %s213, %s214
      %p223 = scmp.eq.s32.totalorder %s35, 0
      %p224 = por %p222, %p223
      %p225 = scmp.ne.s32.totalorder %s213, %s214
      %p226 = scmp.eq.s32.totalorder %s36, 1
      %p227 = por %p225, %p226
      %p229 = scmp.ne.s32.totalorder %s214, %s228
      %p230 = scmp.eq.s32.totalorder %s36, 0
      %p231 = por %p229, %p230
      %s233 = sadd.s32 %s232, 1
      %p236 = scmp.eq.s32.totalorder %s30, 1
      %p237 = scmp.ne.s32.totalorder %s232, %s234
      %p238 = scmp.eq.s32.totalorder %s30, 0
      %p239 = por %p237, %p238
      %p240 = scmp.ne.s32.totalorder %s232, %s234
      %p241 = scmp.eq.s32.totalorder %s35, 1
      %p242 = por %p240, %p241
      %p243 = scmp.ne.s32.totalorder %s234, %s235
      %p244 = scmp.eq.s32.totalorder %s35, 0
      %p245 = por %p243, %p244
      %p246 = scmp.ne.s32.totalorder %s234, %s235
      %p247 = scmp.eq.s32.totalorder %s36, 1
      %p248 = por %p246, %p247
      %p250 = scmp.ne.s32.totalorder %s235, %s249
      %p251 = scmp.eq.s32.totalorder %s36, 0
      %p252 = por %p250, %p251
      %s254 = sadd.s32 %s253, 1
      %p257 = scmp.eq.s32.totalorder %s30, 1
      %p258 = scmp.ne.s32.totalorder %s253, %s255
      %p259 = scmp.eq.s32.totalorder %s30, 0
      %p260 = por %p258, %p259
      %p261 = scmp.ne.s32.totalorder %s253, %s255
      %p262 = scmp.eq.s32.totalorder %s35, 1
      %p263 = por %p261, %p262
      %p264 = scmp.ne.s32.totalorder %s255, %s256
      %p265 = scmp.eq.s32.totalorder %s35, 0
      %p266 = por %p264, %p265
      %p267 = scmp.ne.s32.totalorder %s255, %s256
      %p268 = scmp.eq.s32.totalorder %s36, 1
      %p269 = por %p267, %p268
      %p271 = scmp.ne.s32.totalorder %s256, %s270
      %p272 = scmp.eq.s32.totalorder %s36, 0
      %p273 = por %p271, %p272
      %s275 = sadd.s32 %s274, 1
      %p278 = scmp.eq.s32.totalorder %s30, 1
      %p279 = scmp.ne.s32.totalorder %s274, %s276
      %p280 = scmp.eq.s32.totalorder %s30, 0
      %p281 = por %p279, %p280
      %p282 = scmp.ne.s32.totalorder %s274, %s276
      %p283 = scmp.eq.s32.totalorder %s35, 1
      %p284 = por %p282, %p283
      %p285 = scmp.ne.s32.totalorder %s276, %s277
      %p286 = scmp.eq.s32.totalorder %s35, 0
      %p287 = por %p285, %p286
      %p288 = scmp.ne.s32.totalorder %s276, %s277
      %p289 = scmp.eq.s32.totalorder %s36, 1
      %p290 = por %p288, %p289
      %p292 = scmp.ne.s32.totalorder %s277, %s291
      %p293 = scmp.eq.s32.totalorder %s36, 0
      %p294 = por %p292, %p293
      %s296 = sadd.s32 %s295, 1
      %p299 = scmp.eq.s32.totalorder %s30, 1
      %p300 = scmp.ne.s32.totalorder %s295, %s297
      %p301 = scmp.eq.s32.totalorder %s30, 0
      %p302 = por %p300, %p301
      %p303 = scmp.ne.s32.totalorder %s295, %s297
      %p304 = scmp.eq.s32.totalorder %s35, 1
      %p305 = por %p303, %p304
      %p306 = scmp.ne.s32.totalorder %s297, %s298
      %p307 = scmp.eq.s32.totalorder %s35, 0
      %p308 = por %p306, %p307
      %p309 = scmp.ne.s32.totalorder %s297, %s298
      %p310 = scmp.eq.s32.totalorder %s36, 1
      %p311 = por %p309, %p310
      %p313 = scmp.ne.s32.totalorder %s298, %s312
      %p314 = scmp.eq.s32.totalorder %s36, 0
      %p315 = por %p313, %p314
      %s317 = sadd.s32 %s316, 1
      %p320 = scmp.eq.s32.totalorder %s30, 1
      %p321 = scmp.ne.s32.totalorder %s316, %s318
      %p322 = scmp.eq.s32.totalorder %s30, 0
      %p323 = por %p321, %p322
      %p324 = scmp.ne.s32.totalorder %s316, %s318
      %p325 = scmp.eq.s32.totalorder %s35, 1
      %p326 = por %p324, %p325
      %p327 = scmp.ne.s32.totalorder %s318, %s319
      %p328 = scmp.eq.s32.totalorder %s35, 0
      %p329 = por %p327, %p328
      %p330 = scmp.ne.s32.totalorder %s318, %s319
      %p331 = scmp.eq.s32.totalorder %s36, 1
      %p332 = por %p330, %p331
      %p334 = scmp.ne.s32.totalorder %s319, %s333
      %p335 = scmp.eq.s32.totalorder %s36, 0
      %p336 = por %p334, %p335
      %s338 = sadd.s32 %s337, 1
      %p341 = scmp.eq.s32.totalorder %s30, 1
      %p342 = scmp.ne.s32.totalorder %s337, %s339
      %p343 = scmp.eq.s32.totalorder %s30, 0
      %p344 = por %p342, %p343
      %p345 = scmp.ne.s32.totalorder %s337, %s339
      %p346 = scmp.eq.s32.totalorder %s35, 1
      %p347 = por %p345, %p346
      %p348 = scmp.ne.s32.totalorder %s339, %s340
      %p349 = scmp.eq.s32.totalorder %s35, 0
      %p350 = por %p348, %p349
      %p351 = scmp.ne.s32.totalorder %s339, %s340
      %p352 = scmp.eq.s32.totalorder %s36, 1
      %p353 = por %p351, %p352
      %p355 = scmp.ne.s32.totalorder %s340, %s354
      %p356 = scmp.eq.s32.totalorder %s36, 0
      %p357 = por %p355, %p356
      %s358 = ssub.s32 %s30, %s37
      %p359 = scmp.eq.s32.totalorder %s358, 0
      %s361 = sadd.s32 %s360, 1
      %s362 = scalar_select %p359, %s360, %s361
      %p365 = pneg %p359
      %p366 = scmp.eq.s32.totalorder %s30, 1
      %p367 = por %p365, %p366
      %p368 = scmp.ne.s32.totalorder %s360, %s363
      %p369 = scmp.eq.s32.totalorder %s30, 0
      %p370 = por %p368, %p369
      %p371 = scmp.ne.s32.totalorder %s360, %s363
      %p372 = scmp.eq.s32.totalorder %s35, 1
      %p373 = por %p371, %p372
      %p374 = scmp.ne.s32.totalorder %s363, %s364
      %p375 = scmp.eq.s32.totalorder %s35, 0
      %p376 = por %p374, %p375
      %p377 = scmp.ne.s32.totalorder %s363, %s364
      %p378 = scmp.eq.s32.totalorder %s36, 1
      %p379 = por %p377, %p378
      %p381 = scmp.ne.s32.totalorder %s364, %s380
      %p382 = scmp.eq.s32.totalorder %s36, 0
      %p383 = por %p381, %p382
      %p384 = scmp.le.s32.totalorder 1, %s30
      %p385 = scmp.lt.s32.totalorder %s30, 3
      %p386 = pnand %p384, %p385
      %p387 = pneg %p386
      // Predicated region
      $region9: #{tpu_custom_call.1} parent=5 // pred_check
        _
      $region10: #{tpu_custom_call.1} parent=5 // pred_check_branch
        %389 = sbr.rel (%p386) target = $region12
      $region11: #{tpu_custom_call.1} parent=5 // pred_region
        %s390 = ssub.s32 %s30, 1
        // Predicated region
        $region13: #{tpu_custom_call.1} parent=11 // pred_check
          %p391 = pneg %p77
        $region14: #{tpu_custom_call.1} parent=11 // pred_check_branch
          %393 = sbr.rel (%p391) target = $region16
        $region15: #{tpu_custom_call.1} parent=11 // pred_region
          %s395 = ssub.s32 512, 512
          %396 = vsyncadd [#allocation6], %s395
          %s397 = sshll.u32 [#allocation5], 4
          %s398 = int_to_ptr.vmem [resolvable:$true] %s397
          %403 = dma.hbm_to_vmem [thread:$0]  %s1, 512, %s398, [#allocation6], 64, 64, 4
        $region16: #{tpu_custom_call.1} parent=11 // pred_fallthru
          _
        // Predicated region
        $region17: #{tpu_custom_call.1} parent=11 // pred_check
          %p404 = pneg %p98
        $region18: #{tpu_custom_call.1} parent=11 // pred_check_branch
          %406 = sbr.rel (%p404) target = $region20
        $region19: #{tpu_custom_call.1} parent=11 // pred_region
          _
        $region20: #{tpu_custom_call.1} parent=11 // pred_fallthru
          _
        // Predicated region
        $region21: #{tpu_custom_call.1} parent=11 // pred_check
          %p407 = pneg %p119
        $region22: #{tpu_custom_call.1} parent=11 // pred_check_branch
          %409 = sbr.rel (%p407) target = $region24
        $region23: #{tpu_custom_call.1} parent=11 // pred_region
          _
        $region24: #{tpu_custom_call.1} parent=11 // pred_fallthru
          _
        // Predicated region
        $region25: #{tpu_custom_call.1} parent=11 // pred_check
          %p410 = pneg %p140
        $region26: #{tpu_custom_call.1} parent=11 // pred_check_branch
          %412 = sbr.rel (%p410) target = $region28
        $region27: #{tpu_custom_call.1} parent=11 // pred_region
          %s414 = ssub.s32 2048, 2048
          %415 = vsyncadd [#allocation6], %s414
          %s416 = sshll.u32 [#allocation7], 4
          %s417 = int_to_ptr.vmem [resolvable:$true] %s416
          %422 = dma.hbm_to_vmem [thread:$0]  %s4, 2048, %s417, [#allocation6], 128, 128, 8
        $region28: #{tpu_custom_call.1} parent=11 // pred_fallthru
          _
        // Predicated region
        $region29: #{tpu_custom_call.1} parent=11 // pred_check
          %p423 = pneg %p161
        $region30: #{tpu_custom_call.1} parent=11 // pred_check_branch
          %425 = sbr.rel (%p423) target = $region32
        $region31: #{tpu_custom_call.1} parent=11 // pred_region
          %s427 = ssub.s32 512, 512
          %428 = vsyncadd [#allocation9], %s427
          %s429 = sshll.u32 [#allocation8], 4
          %s430 = int_to_ptr.vmem [resolvable:$true] %s429
          %435 = dma.hbm_to_vmem [thread:$0]  %s5, 512, %s430, [#allocation9], 64, 64, 4
        $region32: #{tpu_custom_call.1} parent=11 // pred_fallthru
          _
        // Predicated region
        $region33: #{tpu_custom_call.1} parent=11 // pred_check
          %p436 = pneg %p182
        $region34: #{tpu_custom_call.1} parent=11 // pred_check_branch
          %438 = sbr.rel (%p436) target = $region36
        $region35: #{tpu_custom_call.1} parent=11 // pred_region
          _
        $region36: #{tpu_custom_call.1} parent=11 // pred_fallthru
          _
        // Predicated region
        $region37: #{tpu_custom_call.1} parent=11 // pred_check
          %p439 = pneg %p203
        $region38: #{tpu_custom_call.1} parent=11 // pred_check_branch
          %441 = sbr.rel (%p439) target = $region40
        $region39: #{tpu_custom_call.1} parent=11 // pred_region
          _
        $region40: #{tpu_custom_call.1} parent=11 // pred_fallthru
          _
        // Predicated region
        $region41: #{tpu_custom_call.1} parent=11 // pred_check
          %p442 = pneg %p224
        $region42: #{tpu_custom_call.1} parent=11 // pred_check_branch
          %444 = sbr.rel (%p442) target = $region44
        $region43: #{tpu_custom_call.1} parent=11 // pred_region
          %s446 = ssub.s32 2048, 2048
          %447 = vsyncadd [#allocation9], %s446
          %s448 = sshll.u32 [#allocation10], 4
          %s449 = int_to_ptr.vmem [resolvable:$true] %s448
          %454 = dma.hbm_to_vmem [thread:$0]  %s8, 2048, %s449, [#allocation9], 128, 128, 8
        $region44: #{tpu_custom_call.1} parent=11 // pred_fallthru
          _
        // Predicated region
        $region45: #{tpu_custom_call.1} parent=11 // pred_check
          %p455 = pneg %p245
        $region46: #{tpu_custom_call.1} parent=11 // pred_check_branch
          %457 = sbr.rel (%p455) target = $region48
        $region47: #{tpu_custom_call.1} parent=11 // pred_region
          %s459 = ssub.s32 512, 512
          %460 = vsyncadd [#allocation12], %s459
          %s461 = sshll.u32 [#allocation11], 4
          %s462 = int_to_ptr.vmem [resolvable:$true] %s461
          %467 = dma.hbm_to_vmem [thread:$0]  %s9, 512, %s462, [#allocation12], 64, 64, 4
        $region48: #{tpu_custom_call.1} parent=11 // pred_fallthru
          _
        // Predicated region
        $region49: #{tpu_custom_call.1} parent=11 // pred_check
          %p468 = pneg %p266
        $region50: #{tpu_custom_call.1} parent=11 // pred_check_branch
          %470 = sbr.rel (%p468) target = $region52
        $region51: #{tpu_custom_call.1} parent=11 // pred_region
          _
        $region52: #{tpu_custom_call.1} parent=11 // pred_fallthru
          _
        // Predicated region
        $region53: #{tpu_custom_call.1} parent=11 // pred_check
          %p471 = pneg %p287
        $region54: #{tpu_custom_call.1} parent=11 // pred_check_branch
          %473 = sbr.rel (%p471) target = $region56
        $region55: #{tpu_custom_call.1} parent=11 // pred_region
          _
        $region56: #{tpu_custom_call.1} parent=11 // pred_fallthru
          _
        // Predicated region
        $region57: #{tpu_custom_call.1} parent=11 // pred_check
          %p474 = pneg %p308
        $region58: #{tpu_custom_call.1} parent=11 // pred_check_branch
          %476 = sbr.rel (%p474) target = $region60
        $region59: #{tpu_custom_call.1} parent=11 // pred_region
          %s478 = ssub.s32 2048, 2048
          %479 = vsyncadd [#allocation12], %s478
          %s480 = sshll.u32 [#allocation13], 4
          %s481 = int_to_ptr.vmem [resolvable:$true] %s480
          %486 = dma.hbm_to_vmem [thread:$0]  %s12, 2048, %s481, [#allocation12], 128, 128, 8
        $region60: #{tpu_custom_call.1} parent=11 // pred_fallthru
          _
        // Predicated region
        $region61: #{tpu_custom_call.1} parent=11 // pred_check
          %p487 = pneg %p329
        $region62: #{tpu_custom_call.1} parent=11 // pred_check_branch
          %489 = sbr.rel (%p487) target = $region64
        $region63: #{tpu_custom_call.1} parent=11 // pred_region
          _
        $region64: #{tpu_custom_call.1} parent=11 // pred_fallthru
          _
        // Predicated region
        $region65: #{tpu_custom_call.1} parent=11 // pred_check
          %p490 = pneg %p350
        $region66: #{tpu_custom_call.1} parent=11 // pred_check_branch
          %492 = sbr.rel (%p490) target = $region68
        $region67: #{tpu_custom_call.1} parent=11 // pred_region
          _
        $region68: #{tpu_custom_call.1} parent=11 // pred_fallthru
          _
      $region12: #{tpu_custom_call.1} parent=5 // pred_fallthru
        _
      %p493 = scmp.lt.s32.totalorder %s30, 2
      // Predicated region
      $region69: #{tpu_custom_call.1} parent=5 // pred_check
        %p494 = pneg %p493
      $region70: #{tpu_custom_call.1} parent=5 // pred_check_branch
        %496 = sbr.rel (%p494) target = $region72
      $region71: #{tpu_custom_call.1} parent=5 // pred_region
        // Predicated region
        $region73: #{tpu_custom_call.1} parent=71 // pred_check
          %p497 = pneg %p50
        $region74: #{tpu_custom_call.1} parent=71 // pred_check_branch
          %499 = sbr.rel (%p497) target = $region76
        $region75: #{tpu_custom_call.1} parent=71 // pred_region
          %s500 = sand.u32 %s40, 1
          %s501 = scalar_lea.sflag [#allocation3], %s500
          %s502 = sand.u32 %s40, 1
          %s503 = smul.addr %s502, 8
          %s504 = scalar_lea.vmem [#allocation2], %s503
          %s505 = smul.u32 2, %s30
          %s507 = ssub.s32 128, 128
          %508 = vsyncadd %s501, %s507
          %s509 = smul.addr %s505, 64
          %s510 = scalar_lea.hbm %s0, %s509
          %s511 = sshll.u32 %s504, 4
          %s512 = int_to_ptr.vmem [resolvable:$true] %s511
          %517 = dma.hbm_to_vmem [thread:$0]  %s510, 128, %s512, %s501, 64, 64, 4
        $region76: #{tpu_custom_call.1} parent=71 // pred_fallthru
          _
      $region72: #{tpu_custom_call.1} parent=5 // pred_fallthru
        _
      %p518 = scmp.le.s32.totalorder 1, %s30
      %p519 = scmp.lt.s32.totalorder %s30, 3
      %p520 = pnand %p518, %p519
      %p521 = pneg %p520
      // Predicated region
      $region77: #{tpu_custom_call.1} parent=5 // pred_check
        _
      $region78: #{tpu_custom_call.1} parent=5 // pred_check_branch
        %523 = sbr.rel (%p520) target = $region80
      $region79: #{tpu_custom_call.1} parent=5 // pred_region
        %s524 = ssub.s32 %s30, 1
        %s525 = sand.u32 %s43, 1
        %s526 = scalar_lea.sflag [#allocation3], %s525
        %s527 = sand.u32 %s43, 1
        %s528 = smul.addr %s527, 8
        %s529 = scalar_lea.vmem [#allocation2], %s528
        // Predicated region
        $region81: #{tpu_custom_call.1} parent=79 // pred_check
          %p530 = pneg %p56
        $region82: #{tpu_custom_call.1} parent=79 // pred_check_branch
          %532 = sbr.rel (%p530) target = $region84
        $region83: #{tpu_custom_call.1} parent=79 // pred_region
          %533 = dma.done %s526, 128
        $region84: #{tpu_custom_call.1} parent=79 // pred_fallthru
          _
        // Predicated region
        $region85: #{tpu_custom_call.1} parent=79 // pred_check
          %p534 = pneg %p77
        $region86: #{tpu_custom_call.1} parent=79 // pred_check_branch
          %536 = sbr.rel (%p534) target = $region88
        $region87: #{tpu_custom_call.1} parent=79 // pred_region
          %537 = dma.done [#allocation6], 512
        $region88: #{tpu_custom_call.1} parent=79 // pred_fallthru
          _
        // Predicated region
        $region89: #{tpu_custom_call.1} parent=79 // pred_check
          %p538 = pneg %p140
        $region90: #{tpu_custom_call.1} parent=79 // pred_check_branch
          %540 = sbr.rel (%p538) target = $region92
        $region91: #{tpu_custom_call.1} parent=79 // pred_region
          %541 = dma.done [#allocation6], 2048
        $region92: #{tpu_custom_call.1} parent=79 // pred_fallthru
          _
        // Predicated region
        $region93: #{tpu_custom_call.1} parent=79 // pred_check
          %p542 = pneg %p161
        $region94: #{tpu_custom_call.1} parent=79 // pred_check_branch
          %544 = sbr.rel (%p542) target = $region96
        $region95: #{tpu_custom_call.1} parent=79 // pred_region
          %545 = dma.done [#allocation9], 512
        $region96: #{tpu_custom_call.1} parent=79 // pred_fallthru
          _
        // Predicated region
        $region97: #{tpu_custom_call.1} parent=79 // pred_check
          %p546 = pneg %p224
        $region98: #{tpu_custom_call.1} parent=79 // pred_check_branch
          %548 = sbr.rel (%p546) target = $region100
        $region99: #{tpu_custom_call.1} parent=79 // pred_region
          %549 = dma.done [#allocation9], 2048
        $region100: #{tpu_custom_call.1} parent=79 // pred_fallthru
          _
        // Predicated region
        $region101: #{tpu_custom_call.1} parent=79 // pred_check
          %p550 = pneg %p245
        $region102: #{tpu_custom_call.1} parent=79 // pred_check_branch
          %552 = sbr.rel (%p550) target = $region104
        $region103: #{tpu_custom_call.1} parent=79 // pred_region
          %553 = dma.done [#allocation12], 512
        $region104: #{tpu_custom_call.1} parent=79 // pred_fallthru
          _
        // Predicated region
        $region105: #{tpu_custom_call.1} parent=79 // pred_check
          %p554 = pneg %p308
        $region106: #{tpu_custom_call.1} parent=79 // pred_check_branch
          %556 = sbr.rel (%p554) target = $region108
        $region107: #{tpu_custom_call.1} parent=79 // pred_region
          %557 = dma.done [#allocation12], 2048
        $region108: #{tpu_custom_call.1} parent=79 // pred_fallthru
          _
        %s558 = sand.u32 %s43, 1
        %s559 = scalar_lea.sflag [#allocation3], %s558
        %s560 = sand.u32 %s43, 1
        %s561 = smul.addr %s560, 8
        %s562 = scalar_lea.vmem [#allocation2], %s561
        %p563 = pneg %p56
        %p564 = pneg %p53
        %p565 = pneg %p77
        %p566 = pneg %p74
        %p567 = pneg %p98
        %p568 = pneg %p95
        %p569 = pneg %p119
        %p570 = pneg %p116
        %p571 = pneg %p140
        %p572 = pneg %p137
        %p573 = pneg %p161
        %p574 = pneg %p158
        %p575 = pneg %p182
        %p576 = pneg %p179
        %p577 = pneg %p203
        %p578 = pneg %p200
        %p579 = pneg %p224
        %p580 = pneg %p221
        %p581 = pneg %p245
        %p582 = pneg %p242
        %p583 = pneg %p266
        %p584 = pneg %p263
        %p585 = pneg %p287
        %p586 = pneg %p284
        %p587 = pneg %p308
        %p588 = pneg %p305
        %p589 = pneg %p329
        %p590 = pneg %p326
        %p591 = pneg %p350
        %p592 = pneg %p347
        %p593 = pneg %p376
        %p594 = pneg %p373
        %s595 = sand.u32 %s363, 1
        %s596 = scalar_lea.sflag [#allocation4], %s595
        %s597 = sand.u32 %s363, 1
        %s598 = smul.addr %s597, 16
        %s599 = scalar_lea.vmem [#allocation14], %s598
        %s600 = smul.u32 2, %s35
        %s601 = smul.u32 2, %s35
        %v603 = vld [vmem:[%s529] sm:$0xf]
        %v604 = vld [vmem:[%s529 + $0x4] sm:$0xf]
        %v605 = vld [vmem:[#allocation5] sm:$0xf]
        %v606 = vld [vmem:[#allocation5 + $0x4] sm:$0xf]
        %v607 = vld [vmem:[#allocation5 + $0x8] sm:$0xf]
        %v608 = vld [vmem:[#allocation5 + $0xc] sm:$0xf]
        %v609 = vld [vmem:[#allocation5 + $0x10] sm:$0xf]
        %v610 = vld [vmem:[#allocation5 + $0x14] sm:$0xf]
        %v611 = vld [vmem:[#allocation5 + $0x18] sm:$0xf]
        %v612 = vld [vmem:[#allocation5 + $0x1c] sm:$0xf]
        %v615 = vunpack.c.l.b16 %v603
        %v616 = vunpack.c.l.b16 %v604
        %v617 = vpack.c.b16 %v616, %v615
        %v626 = vunpack.c.l.b16 %v605
        %v627 = vunpack.c.l.b16 %v606
        %v628 = vunpack.c.l.b16 %v607
        %v629 = vunpack.c.l.b16 %v608
        %v630 = vunpack.c.l.b16 %v609
        %v631 = vunpack.c.l.b16 %v610
        %v632 = vunpack.c.l.b16 %v611
        %v633 = vunpack.c.l.b16 %v612
        %v634 = vpack.c.b16 %v627, %v626
        %v635 = vpack.c.b16 %v629, %v628
        %v636 = vpack.c.b16 %v631, %v630
        %v637 = vpack.c.b16 %v633, %v632
        %vm642 = vcmask 523264
        %v644 = vsel %vm642, %v617, 0
        %646 = vmatprep.subr.bf16.mxu0 0
        %647 = vmatpush1.bf16.msra.mxu0 0
        %648 = vmatprep.subr.bf16.mxu0 0
        %649 = vmatpush1.bf16.msra.mxu0 0
        %650 = vmatprep.subr.bf16.mxu0 0
        %651 = vmatpush1.bf16.msra.mxu0 0
        %652 = vmatprep.subr.bf16.mxu0 0
        %653 = vmatpush1.bf16.msra.mxu0 0
        %654 = vmatprep.subr.bf16.mxu0 0
        %655 = vmatpush1.bf16.msra.mxu0 %v637
        %656 = vmatprep.subr.bf16.mxu0 0
        %657 = vmatpush1.bf16.msra.mxu0 %v636
        %658 = vmatprep.subr.bf16.mxu0 0
        %659 = vmatpush1.bf16.msra.mxu0 %v635
        %660 = vmatprep.subr.bf16.mxu0 0
        %661 = vmatpush1.bf16.msra.mxu0 %v634
        %662 = vmatprep.subr.bf16.mxu0 0
        %663 = vmatpush2.bf16.msra.mxu0 0
        %664 = vmatprep.subr.bf16.mxu0 0
        %665 = vmatpush2.bf16.msra.mxu0 0
        %666 = vmatprep.subr.bf16.mxu0 0
        %667 = vmatpush2.bf16.msra.mxu0 0
        %668 = vmatprep.subr.bf16.mxu0 0
        %669 = vmatpush2.bf16.msra.mxu0 0
        %670 = vmatprep.subr.bf16.mxu0 0
        %671 = vmatpush2.bf16.msra.mxu0 0
        %672 = vmatprep.subr.bf16.mxu0 0
        %673 = vmatpush2.bf16.msra.mxu0 0
        %674 = vmatprep.subr.bf16.mxu0 0
        %675 = vmatpush2.bf16.msra.mxu0 0
        %676 = vmatprep.subr.bf16.mxu0 0
        %677 = vmatpush2.bf16.msra.mxu0 0
        %678 = vmatprep.mubr.bf16.mxu0 0
        %679 = vmatmul.mubr.bf16.gmra.mxu0 %v644
        %v680 = vpop.f32.mrf.mxu0
        %v681 = vadd.f32 0.0, %v680
        %v682 = vpop.f32.mrf.mxu0
        %v683 = vpop.f32.mrf.mxu0
        %v684 = vadd.f32 0.0, %v683
        %v685 = vpop.f32.mrf.mxu0
        %686 = vdwg.mxu0
        %v687 = vld [vmem:[%s2] sm:$0x1]
        %v689 = vlaneseq
        %v690 = vshrl.u32 %v689, 7
        %v691 = vsub.s32 0, %v690
        %v692 = vrot.slane %v687, %v691
        %v694 = vmul.f32 %v681, %v692
        %v695 = vmul.f32 %v684, %v692
        %v696 = vld [vmem:[%s3] sm:$0x1]
        %v698 = vlaneseq
        %v699 = vshrl.u32 %v698, 7
        %v700 = vsub.s32 0, %v699
        %v701 = vrot.slane %v696, %v700
        %v703 = vadd.f32 %v694, %v701
        %v704 = vadd.f32 %v695, %v701
        %v705 = vmax.f32 %v703, 0.0
        %v706 = vmax.f32 %v704, 0.0
        %v707 = vld [vmem:[#allocation7] sm:$0xff]
        %v708 = vld [vmem:[#allocation7 + $0x8] sm:$0xff]
        %v709 = vld [vmem:[#allocation7 + $0x10] sm:$0xff]
        %v710 = vld [vmem:[#allocation7 + $0x18] sm:$0xff]
        %v711 = vld [vmem:[#allocation7 + $0x20] sm:$0xff]
        %v712 = vld [vmem:[#allocation7 + $0x28] sm:$0xff]
        %v713 = vld [vmem:[#allocation7 + $0x30] sm:$0xff]
        %v714 = vld [vmem:[#allocation7 + $0x38] sm:$0xff]
        %v715 = vld [vmem:[#allocation7 + $0x40] sm:$0xff]
        %v716 = vld [vmem:[#allocation7 + $0x48] sm:$0xff]
        %v717 = vld [vmem:[#allocation7 + $0x50] sm:$0xff]
        %v718 = vld [vmem:[#allocation7 + $0x58] sm:$0xff]
        %v719 = vld [vmem:[#allocation7 + $0x60] sm:$0xff]
        %v720 = vld [vmem:[#allocation7 + $0x68] sm:$0xff]
        %v721 = vld [vmem:[#allocation7 + $0x70] sm:$0xff]
        %v722 = vld [vmem:[#allocation7 + $0x78] sm:$0xff]
        %v723 = vld [vmem:[#allocation8] sm:$0xf]
        %v724 = vld [vmem:[#allocation8 + $0x4] sm:$0xf]
        %v725 = vld [vmem:[#allocation8 + $0x8] sm:$0xf]
        %v726 = vld [vmem:[#allocation8 + $0xc] sm:$0xf]
        %v727 = vld [vmem:[#allocation8 + $0x10] sm:$0xf]
        %v728 = vld [vmem:[#allocation8 + $0x14] sm:$0xf]
        %v729 = vld [vmem:[#allocation8 + $0x18] sm:$0xf]
        %v730 = vld [vmem:[#allocation8 + $0x1c] sm:$0xf]
        %v739 = vunpack.c.l.b16 %v723
        %v740 = vunpack.c.l.b16 %v724
        %v741 = vunpack.c.l.b16 %v725
        %v742 = vunpack.c.l.b16 %v726
        %v743 = vunpack.c.l.b16 %v727
        %v744 = vunpack.c.l.b16 %v728
        %v745 = vunpack.c.l.b16 %v729
        %v746 = vunpack.c.l.b16 %v730
        %v747 = vpack.c.b16 %v740, %v739
        %v748 = vpack.c.b16 %v742, %v741
        %v749 = vpack.c.b16 %v744, %v743
        %v750 = vpack.c.b16 %v746, %v745
        %755 = vmatprep.subr.bf16.mxu0 0
        %756 = vmatpush1.bf16.msra.mxu0 0
        %757 = vmatprep.subr.bf16.mxu0 0
        %758 = vmatpush1.bf16.msra.mxu0 0
        %759 = vmatprep.subr.bf16.mxu0 0
        %760 = vmatpush1.bf16.msra.mxu0 0
        %761 = vmatprep.subr.bf16.mxu0 0
        %762 = vmatpush1.bf16.msra.mxu0 0
        %763 = vmatprep.subr.bf16.mxu0 0
        %764 = vmatpush1.bf16.msra.mxu0 %v750
        %765 = vmatprep.subr.bf16.mxu0 0
        %766 = vmatpush1.bf16.msra.mxu0 %v749
        %767 = vmatprep.subr.bf16.mxu0 0
        %768 = vmatpush1.bf16.msra.mxu0 %v748
        %769 = vmatprep.subr.bf16.mxu0 0
        %770 = vmatpush1.bf16.msra.mxu0 %v747
        %771 = vmatprep.subr.bf16.mxu0 0
        %772 = vmatpush2.bf16.msra.mxu0 0
        %773 = vmatprep.subr.bf16.mxu0 0
        %774 = vmatpush2.bf16.msra.mxu0 0
        %775 = vmatprep.subr.bf16.mxu0 0
        %776 = vmatpush2.bf16.msra.mxu0 0
        %777 = vmatprep.subr.bf16.mxu0 0
        %778 = vmatpush2.bf16.msra.mxu0 0
        %779 = vmatprep.subr.bf16.mxu0 0
        %780 = vmatpush2.bf16.msra.mxu0 0
        %781 = vmatprep.subr.bf16.mxu0 0
        %782 = vmatpush2.bf16.msra.mxu0 0
        %783 = vmatprep.subr.bf16.mxu0 0
        %784 = vmatpush2.bf16.msra.mxu0 0
        %785 = vmatprep.subr.bf16.mxu0 0
        %786 = vmatpush2.bf16.msra.mxu0 0
        %787 = vmatprep.mubr.bf16.mxu0 0
        %788 = vmatmul.mubr.bf16.gmra.mxu0 %v644
        %v789 = vpop.f32.mrf.mxu0
        %v790 = vadd.f32 0.0, %v789
        %v791 = vpop.f32.mrf.mxu0
        %v792 = vpop.f32.mrf.mxu0
        %v793 = vadd.f32 0.0, %v792
        %v794 = vpop.f32.mrf.mxu0
        %795 = vdwg.mxu0
        %v796 = vld [vmem:[%s6] sm:$0x1]
        %v798 = vlaneseq
        %v799 = vshrl.u32 %v798, 7
        %v800 = vsub.s32 0, %v799
        %v801 = vrot.slane %v796, %v800
        %v803 = vmul.f32 %v790, %v801
        %v804 = vmul.f32 %v793, %v801
        %v805 = vld [vmem:[%s7] sm:$0x1]
        %v807 = vlaneseq
        %v808 = vshrl.u32 %v807, 7
        %v809 = vsub.s32 0, %v808
        %v810 = vrot.slane %v805, %v809
        %v812 = vadd.f32 %v803, %v810
        %v813 = vadd.f32 %v804, %v810
        %v814 = vmax.f32 %v812, 0.0
        %v815 = vmax.f32 %v813, 0.0
        %v816 = vld [vmem:[#allocation10] sm:$0xff]
        %v817 = vld [vmem:[#allocation10 + $0x8] sm:$0xff]
        %v818 = vld [vmem:[#allocation10 + $0x10] sm:$0xff]
        %v819 = vld [vmem:[#allocation10 + $0x18] sm:$0xff]
        %v820 = vld [vmem:[#allocation10 + $0x20] sm:$0xff]
        %v821 = vld [vmem:[#allocation10 + $0x28] sm:$0xff]
        %v822 = vld [vmem:[#allocation10 + $0x30] sm:$0xff]
        %v823 = vld [vmem:[#allocation10 + $0x38] sm:$0xff]
        %v824 = vld [vmem:[#allocation10 + $0x40] sm:$0xff]
        %v825 = vld [vmem:[#allocation10 + $0x48] sm:$0xff]
        %v826 = vld [vmem:[#allocation10 + $0x50] sm:$0xff]
        %v827 = vld [vmem:[#allocation10 + $0x58] sm:$0xff]
        %v828 = vld [vmem:[#allocation10 + $0x60] sm:$0xff]
        %v829 = vld [vmem:[#allocation10 + $0x68] sm:$0xff]
        %v830 = vld [vmem:[#allocation10 + $0x70] sm:$0xff]
        %v831 = vld [vmem:[#allocation10 + $0x78] sm:$0xff]
        %832 = vmatprep.subr.mxu0 0.0
        %v833 = vand.u32 %v831, 4294901760
        %834 = vmatpush1.msra.mxu0 %v833
        %835 = vmatprep.subr.mxu0 0.0
        %v836 = vand.u32 %v830, 4294901760
        %837 = vmatpush1.msra.mxu0 %v836
        %838 = vmatprep.subr.mxu0 0.0
        %v839 = vand.u32 %v829, 4294901760
        %840 = vmatpush1.msra.mxu0 %v839
        %841 = vmatprep.subr.mxu0 0.0
        %v842 = vand.u32 %v828, 4294901760
        %843 = vmatpush1.msra.mxu0 %v842
        %844 = vmatprep.subr.mxu0 0.0
        %v845 = vand.u32 %v827, 4294901760
        %846 = vmatpush1.msra.mxu0 %v845
        %847 = vmatprep.subr.mxu0 0.0
        %v848 = vand.u32 %v826, 4294901760
        %849 = vmatpush1.msra.mxu0 %v848
        %850 = vmatprep.subr.mxu0 0.0
        %v851 = vand.u32 %v825, 4294901760
        %852 = vmatpush1.msra.mxu0 %v851
        %853 = vmatprep.subr.mxu0 0.0
        %v854 = vand.u32 %v824, 4294901760
        %855 = vmatpush1.msra.mxu0 %v854
        %856 = vmatprep.subr.mxu0 0.0
        %v857 = vand.u32 %v823, 4294901760
        %858 = vmatpush1.msra.mxu0 %v857
        %859 = vmatprep.subr.mxu0 0.0
        %v860 = vand.u32 %v822, 4294901760
        %861 = vmatpush1.msra.mxu0 %v860
        %862 = vmatprep.subr.mxu0 0.0
        %v863 = vand.u32 %v821, 4294901760
        %864 = vmatpush1.msra.mxu0 %v863
        %865 = vmatprep.subr.mxu0 0.0
        %v866 = vand.u32 %v820, 4294901760
        %867 = vmatpush1.msra.mxu0 %v866
        %868 = vmatprep.subr.mxu0 0.0
        %v869 = vand.u32 %v819, 4294901760
        %870 = vmatpush1.msra.mxu0 %v869
        %871 = vmatprep.subr.mxu0 0.0
        %v872 = vand.u32 %v818, 4294901760
        %873 = vmatpush1.msra.mxu0 %v872
        %874 = vmatprep.subr.mxu0 0.0
        %v875 = vand.u32 %v817, 4294901760
        %876 = vmatpush1.msra.mxu0 %v875
        %877 = vmatprep.subr.mxu0 0.0
        %v878 = vand.u32 %v816, 4294901760
        %879 = vmatpush1.msra.mxu0 %v878
        %880 = vmatprep.subr.mxu0 0.0
        %881 = vmatpush2.msra.mxu0 0.0
        %882 = vmatprep.subr.mxu0 0.0
        %883 = vmatpush2.msra.mxu0 0.0
        %884 = vmatprep.subr.mxu0 0.0
        %885 = vmatpush2.msra.mxu0 0.0
        %886 = vmatprep.subr.mxu0 0.0
        %887 = vmatpush2.msra.mxu0 0.0
        %888 = vmatprep.subr.mxu0 0.0
        %889 = vmatpush2.msra.mxu0 0.0
        %890 = vmatprep.subr.mxu0 0.0
        %891 = vmatpush2.msra.mxu0 0.0
        %892 = vmatprep.subr.mxu0 0.0
        %893 = vmatpush2.msra.mxu0 0.0
        %894 = vmatprep.subr.mxu0 0.0
        %895 = vmatpush2.msra.mxu0 0.0
        %896 = vmatprep.subr.mxu0 0.0
        %897 = vmatpush2.msra.mxu0 0.0
        %898 = vmatprep.subr.mxu0 0.0
        %899 = vmatpush2.msra.mxu0 0.0
        %900 = vmatprep.subr.mxu0 0.0
        %901 = vmatpush2.msra.mxu0 0.0
        %902 = vmatprep.subr.mxu0 0.0
        %903 = vmatpush2.msra.mxu0 0.0
        %904 = vmatprep.subr.mxu0 0.0
        %905 = vmatpush2.msra.mxu0 0.0
        %906 = vmatprep.subr.mxu0 0.0
        %907 = vmatpush2.msra.mxu0 0.0
        %908 = vmatprep.subr.mxu0 0.0
        %909 = vmatpush2.msra.mxu0 0.0
        %910 = vmatprep.subr.mxu0 0.0
        %911 = vmatpush2.msra.mxu0 0.0
        %912 = vmatprep.mubr.f32.mxu0 0.0
        %v913 = vand.u32 %v814, 4294901760
        %v914 = vsub.f32 %v814, %v913
        %v915 = vand.u32 %v914, 4294901760
        %v916 = vsub.f32 %v914, %v915
        %v917 = vand.u32 %v916, 4294901760
        %918 = vmatmul.mubr.f32.gmra.mxu0 %v917
        %v919 = vpop.f32.mrf.mxu0
        %v920 = vadd.f32 0.0, %v919
        %v921 = vpop.f32.mrf.mxu0
        %922 = vmatprep.mubr.f32.mxu0 0.0
        %v923 = vand.u32 %v815, 4294901760
        %v924 = vsub.f32 %v815, %v923
        %v925 = vand.u32 %v924, 4294901760
        %v926 = vsub.f32 %v924, %v925
        %v927 = vand.u32 %v926, 4294901760
        %928 = vmatmul.mubr.f32.gmra.mxu0 %v927
        %v929 = vpop.f32.mrf.mxu0
        %v930 = vadd.f32 0.0, %v929
        %v931 = vpop.f32.mrf.mxu0
        %932 = vdwg.mxu0
        %933 = vmatprep.subr.mxu0 0.0
        %v934 = vand.u32 %v831, 4294901760
        %v935 = vsub.f32 %v831, %v934
        %v936 = vand.u32 %v935, 4294901760
        %v937 = vsub.f32 %v935, %v936
        %v938 = vand.u32 %v937, 4294901760
        %939 = vmatpush1.msra.mxu0 %v938
        %940 = vmatprep.subr.mxu0 0.0
        %v941 = vand.u32 %v830, 4294901760
        %v942 = vsub.f32 %v830, %v941
        %v943 = vand.u32 %v942, 4294901760
        %v944 = vsub.f32 %v942, %v943
        %v945 = vand.u32 %v944, 4294901760
        %946 = vmatpush1.msra.mxu0 %v945
        %947 = vmatprep.subr.mxu0 0.0
        %v948 = vand.u32 %v829, 4294901760
        %v949 = vsub.f32 %v829, %v948
        %v950 = vand.u32 %v949, 4294901760
        %v951 = vsub.f32 %v949, %v950
        %v952 = vand.u32 %v951, 4294901760
        %953 = vmatpush1.msra.mxu0 %v952
        %954 = vmatprep.subr.mxu0 0.0
        %v955 = vand.u32 %v828, 4294901760
        %v956 = vsub.f32 %v828, %v955
        %v957 = vand.u32 %v956, 4294901760
        %v958 = vsub.f32 %v956, %v957
        %v959 = vand.u32 %v958, 4294901760
        %960 = vmatpush1.msra.mxu0 %v959
        %961 = vmatprep.subr.mxu0 0.0
        %v962 = vand.u32 %v827, 4294901760
        %v963 = vsub.f32 %v827, %v962
        %v964 = vand.u32 %v963, 4294901760
        %v965 = vsub.f32 %v963, %v964
        %v966 = vand.u32 %v965, 4294901760
        %967 = vmatpush1.msra.mxu0 %v966
        %968 = vmatprep.subr.mxu0 0.0
        %v969 = vand.u32 %v826, 4294901760
        %v970 = vsub.f32 %v826, %v969
        %v971 = vand.u32 %v970, 4294901760
        %v972 = vsub.f32 %v970, %v971
        %v973 = vand.u32 %v972, 4294901760
        %974 = vmatpush1.msra.mxu0 %v973
        %975 = vmatprep.subr.mxu0 0.0
        %v976 = vand.u32 %v825, 4294901760
        %v977 = vsub.f32 %v825, %v976
        %v978 = vand.u32 %v977, 4294901760
        %v979 = vsub.f32 %v977, %v978
        %v980 = vand.u32 %v979, 4294901760
        %981 = vmatpush1.msra.mxu0 %v980
        %982 = vmatprep.subr.mxu0 0.0
        %v983 = vand.u32 %v824, 4294901760
        %v984 = vsub.f32 %v824, %v983
        %v985 = vand.u32 %v984, 4294901760
        %v986 = vsub.f32 %v984, %v985
        %v987 = vand.u32 %v986, 4294901760
        %988 = vmatpush1.msra.mxu0 %v987
        %989 = vmatprep.subr.mxu0 0.0
        %v990 = vand.u32 %v823, 4294901760
        %v991 = vsub.f32 %v823, %v990
        %v992 = vand.u32 %v991, 4294901760
        %v993 = vsub.f32 %v991, %v992
        %v994 = vand.u32 %v993, 4294901760
        %995 = vmatpush1.msra.mxu0 %v994
        %996 = vmatprep.subr.mxu0 0.0
        %v997 = vand.u32 %v822, 4294901760
        %v998 = vsub.f32 %v822, %v997
        %v999 = vand.u32 %v998, 4294901760
        %v1000 = vsub.f32 %v998, %v999
        %v1001 = vand.u32 %v1000, 4294901760
        %1002 = vmatpush1.msra.mxu0 %v1001
        %1003 = vmatprep.subr.mxu0 0.0
        %v1004 = vand.u32 %v821, 4294901760
        %v1005 = vsub.f32 %v821, %v1004
        %v1006 = vand.u32 %v1005, 4294901760
        %v1007 = vsub.f32 %v1005, %v1006
        %v1008 = vand.u32 %v1007, 4294901760
        %1009 = vmatpush1.msra.mxu0 %v1008
        %1010 = vmatprep.subr.mxu0 0.0
        %v1011 = vand.u32 %v820, 4294901760
        %v1012 = vsub.f32 %v820, %v1011
        %v1013 = vand.u32 %v1012, 4294901760
        %v1014 = vsub.f32 %v1012, %v1013
        %v1015 = vand.u32 %v1014, 4294901760
        %1016 = vmatpush1.msra.mxu0 %v1015
        %1017 = vmatprep.subr.mxu0 0.0
        %v1018 = vand.u32 %v819, 4294901760
        %v1019 = vsub.f32 %v819, %v1018
        %v1020 = vand.u32 %v1019, 4294901760
        %v1021 = vsub.f32 %v1019, %v1020
        %v1022 = vand.u32 %v1021, 4294901760
        %1023 = vmatpush1.msra.mxu0 %v1022
        %1024 = vmatprep.subr.mxu0 0.0
        %v1025 = vand.u32 %v818, 4294901760
        %v1026 = vsub.f32 %v818, %v1025
        %v1027 = vand.u32 %v1026, 4294901760
        %v1028 = vsub.f32 %v1026, %v1027
        %v1029 = vand.u32 %v1028, 4294901760
        %1030 = vmatpush1.msra.mxu0 %v1029
        %1031 = vmatprep.subr.mxu0 0.0
        %v1032 = vand.u32 %v817, 4294901760
        %v1033 = vsub.f32 %v817, %v1032
        %v1034 = vand.u32 %v1033, 4294901760
        %v1035 = vsub.f32 %v1033, %v1034
        %v1036 = vand.u32 %v1035, 4294901760
        %1037 = vmatpush1.msra.mxu0 %v1036
        %1038 = vmatprep.subr.mxu0 0.0
        %v1039 = vand.u32 %v816, 4294901760
        %v1040 = vsub.f32 %v816, %v1039
        %v1041 = vand.u32 %v1040, 4294901760
        %v1042 = vsub.f32 %v1040, %v1041
        %v1043 = vand.u32 %v1042, 4294901760
        %1044 = vmatpush1.msra.mxu0 %v1043
        %1045 = vmatprep.subr.mxu0 0.0
        %1046 = vmatpush2.msra.mxu0 0.0
        %1047 = vmatprep.subr.mxu0 0.0
        %1048 = vmatpush2.msra.mxu0 0.0
        %1049 = vmatprep.subr.mxu0 0.0
        %1050 = vmatpush2.msra.mxu0 0.0
        %1051 = vmatprep.subr.mxu0 0.0
        %1052 = vmatpush2.msra.mxu0 0.0
        %1053 = vmatprep.subr.mxu0 0.0
        %1054 = vmatpush2.msra.mxu0 0.0
        %1055 = vmatprep.subr.mxu0 0.0
        %1056 = vmatpush2.msra.mxu0 0.0
        %1057 = vmatprep.subr.mxu0 0.0
        %1058 = vmatpush2.msra.mxu0 0.0
        %1059 = vmatprep.subr.mxu0 0.0
        %1060 = vmatpush2.msra.mxu0 0.0
        %1061 = vmatprep.subr.mxu0 0.0
        %1062 = vmatpush2.msra.mxu0 0.0
        %1063 = vmatprep.subr.mxu0 0.0
        %1064 = vmatpush2.msra.mxu0 0.0
        %1065 = vmatprep.subr.mxu0 0.0
        %1066 = vmatpush2.msra.mxu0 0.0
        %1067 = vmatprep.subr.mxu0 0.0
        %1068 = vmatpush2.msra.mxu0 0.0
        %1069 = vmatprep.subr.mxu0 0.0
        %1070 = vmatpush2.msra.mxu0 0.0
        %1071 = vmatprep.subr.mxu0 0.0
        %1072 = vmatpush2.msra.mxu0 0.0
        %1073 = vmatprep.subr.mxu0 0.0
        %1074 = vmatpush2.msra.mxu0 0.0
        %1075 = vmatprep.subr.mxu0 0.0
        %1076 = vmatpush2.msra.mxu0 0.0
        %1077 = vmatprep.mubr.f32.mxu0 0.0
        %v1078 = vand.u32 %v814, 4294901760
        %1079 = vmatmul.mubr.f32.gmra.mxu0 %v1078
        %v1080 = vpop.f32.mrf.mxu0
        %v1081 = vadd.f32 %v920, %v1080
        %v1082 = vpop.f32.mrf.mxu0
        %1083 = vmatprep.mubr.f32.mxu0 0.0
        %v1084 = vand.u32 %v815, 4294901760
        %1085 = vmatmul.mubr.f32.gmra.mxu0 %v1084
        %v1086 = vpop.f32.mrf.mxu0
        %v1087 = vadd.f32 %v930, %v1086
        %v1088 = vpop.f32.mrf.mxu0
        %1089 = vdwg.mxu0
        %1090 = vmatprep.subr.mxu0 0.0
        %v1091 = vand.u32 %v831, 4294901760
        %v1092 = vsub.f32 %v831, %v1091
        %1093 = vmatpush1.msra.mxu0 %v1092
        %1094 = vmatprep.subr.mxu0 0.0
        %v1095 = vand.u32 %v830, 4294901760
        %v1096 = vsub.f32 %v830, %v1095
        %1097 = vmatpush1.msra.mxu0 %v1096
        %1098 = vmatprep.subr.mxu0 0.0
        %v1099 = vand.u32 %v829, 4294901760
        %v1100 = vsub.f32 %v829, %v1099
        %1101 = vmatpush1.msra.mxu0 %v1100
        %1102 = vmatprep.subr.mxu0 0.0
        %v1103 = vand.u32 %v828, 4294901760
        %v1104 = vsub.f32 %v828, %v1103
        %1105 = vmatpush1.msra.mxu0 %v1104
        %1106 = vmatprep.subr.mxu0 0.0
        %v1107 = vand.u32 %v827, 4294901760
        %v1108 = vsub.f32 %v827, %v1107
        %1109 = vmatpush1.msra.mxu0 %v1108
        %1110 = vmatprep.subr.mxu0 0.0
        %v1111 = vand.u32 %v826, 4294901760
        %v1112 = vsub.f32 %v826, %v1111
        %1113 = vmatpush1.msra.mxu0 %v1112
        %1114 = vmatprep.subr.mxu0 0.0
        %v1115 = vand.u32 %v825, 4294901760
        %v1116 = vsub.f32 %v825, %v1115
        %1117 = vmatpush1.msra.mxu0 %v1116
        %1118 = vmatprep.subr.mxu0 0.0
        %v1119 = vand.u32 %v824, 4294901760
        %v1120 = vsub.f32 %v824, %v1119
        %1121 = vmatpush1.msra.mxu0 %v1120
        %1122 = vmatprep.subr.mxu0 0.0
        %v1123 = vand.u32 %v823, 4294901760
        %v1124 = vsub.f32 %v823, %v1123
        %1125 = vmatpush1.msra.mxu0 %v1124
        %1126 = vmatprep.subr.mxu0 0.0
        %v1127 = vand.u32 %v822, 4294901760
        %v1128 = vsub.f32 %v822, %v1127
        %1129 = vmatpush1.msra.mxu0 %v1128
        %1130 = vmatprep.subr.mxu0 0.0
        %v1131 = vand.u32 %v821, 4294901760
        %v1132 = vsub.f32 %v821, %v1131
        %1133 = vmatpush1.msra.mxu0 %v1132
        %1134 = vmatprep.subr.mxu0 0.0
        %v1135 = vand.u32 %v820, 4294901760
        %v1136 = vsub.f32 %v820, %v1135
        %1137 = vmatpush1.msra.mxu0 %v1136
        %1138 = vmatprep.subr.mxu0 0.0
        %v1139 = vand.u32 %v819, 4294901760
        %v1140 = vsub.f32 %v819, %v1139
        %1141 = vmatpush1.msra.mxu0 %v1140
        %1142 = vmatprep.subr.mxu0 0.0
        %v1143 = vand.u32 %v818, 4294901760
        %v1144 = vsub.f32 %v818, %v1143
        %1145 = vmatpush1.msra.mxu0 %v1144
        %1146 = vmatprep.subr.mxu0 0.0
        %v1147 = vand.u32 %v817, 4294901760
        %v1148 = vsub.f32 %v817, %v1147
        %1149 = vmatpush1.msra.mxu0 %v1148
        %1150 = vmatprep.subr.mxu0 0.0
        %v1151 = vand.u32 %v816, 4294901760
        %v1152 = vsub.f32 %v816, %v1151
        %1153 = vmatpush1.msra.mxu0 %v1152
        %1154 = vmatprep.subr.mxu0 0.0
        %1155 = vmatpush2.msra.mxu0 0.0
        %1156 = vmatprep.subr.mxu0 0.0
        %1157 = vmatpush2.msra.mxu0 0.0
        %1158 = vmatprep.subr.mxu0 0.0
        %1159 = vmatpush2.msra.mxu0 0.0
        %1160 = vmatprep.subr.mxu0 0.0
        %1161 = vmatpush2.msra.mxu0 0.0
        %1162 = vmatprep.subr.mxu0 0.0
        %1163 = vmatpush2.msra.mxu0 0.0
        %1164 = vmatprep.subr.mxu0 0.0
        %1165 = vmatpush2.msra.mxu0 0.0
        %1166 = vmatprep.subr.mxu0 0.0
        %1167 = vmatpush2.msra.mxu0 0.0
        %1168 = vmatprep.subr.mxu0 0.0
        %1169 = vmatpush2.msra.mxu0 0.0
        %1170 = vmatprep.subr.mxu0 0.0
        %1171 = vmatpush2.msra.mxu0 0.0
        %1172 = vmatprep.subr.mxu0 0.0
        %1173 = vmatpush2.msra.mxu0 0.0
        %1174 = vmatprep.subr.mxu0 0.0
        %1175 = vmatpush2.msra.mxu0 0.0
        %1176 = vmatprep.subr.mxu0 0.0
        %1177 = vmatpush2.msra.mxu0 0.0
        %1178 = vmatprep.subr.mxu0 0.0
        %1179 = vmatpush2.msra.mxu0 0.0
        %1180 = vmatprep.subr.mxu0 0.0
        %1181 = vmatpush2.msra.mxu0 0.0
        %1182 = vmatprep.subr.mxu0 0.0
        %1183 = vmatpush2.msra.mxu0 0.0
        %1184 = vmatprep.subr.mxu0 0.0
        %1185 = vmatpush2.msra.mxu0 0.0
        %1186 = vmatprep.mubr.f32.mxu0 0.0
        %v1187 = vand.u32 %v814, 4294901760
        %v1188 = vsub.f32 %v814, %v1187
        %1189 = vmatmul.mubr.f32.gmra.mxu0 %v1188
        %v1190 = vpop.f32.mrf.mxu0
        %v1191 = vadd.f32 %v1081, %v1190
        %v1192 = vpop.f32.mrf.mxu0
        %1193 = vmatprep.mubr.f32.mxu0 0.0
        %v1194 = vand.u32 %v815, 4294901760
        %v1195 = vsub.f32 %v815, %v1194
        %1196 = vmatmul.mubr.f32.gmra.mxu0 %v1195
        %v1197 = vpop.f32.mrf.mxu0
        %v1198 = vadd.f32 %v1087, %v1197
        %v1199 = vpop.f32.mrf.mxu0
        %1200 = vdwg.mxu0
        %1201 = vmatprep.subr.mxu0 0.0
        %v1202 = vand.u32 %v831, 4294901760
        %1203 = vmatpush1.msra.mxu0 %v1202
        %1204 = vmatprep.subr.mxu0 0.0
        %v1205 = vand.u32 %v830, 4294901760
        %1206 = vmatpush1.msra.mxu0 %v1205
        %1207 = vmatprep.subr.mxu0 0.0
        %v1208 = vand.u32 %v829, 4294901760
        %1209 = vmatpush1.msra.mxu0 %v1208
        %1210 = vmatprep.subr.mxu0 0.0
        %v1211 = vand.u32 %v828, 4294901760
        %1212 = vmatpush1.msra.mxu0 %v1211
        %1213 = vmatprep.subr.mxu0 0.0
        %v1214 = vand.u32 %v827, 4294901760
        %1215 = vmatpush1.msra.mxu0 %v1214
        %1216 = vmatprep.subr.mxu0 0.0
        %v1217 = vand.u32 %v826, 4294901760
        %1218 = vmatpush1.msra.mxu0 %v1217
        %1219 = vmatprep.subr.mxu0 0.0
        %v1220 = vand.u32 %v825, 4294901760
        %1221 = vmatpush1.msra.mxu0 %v1220
        %1222 = vmatprep.subr.mxu0 0.0
        %v1223 = vand.u32 %v824, 4294901760
        %1224 = vmatpush1.msra.mxu0 %v1223
        %1225 = vmatprep.subr.mxu0 0.0
        %v1226 = vand.u32 %v823, 4294901760
        %1227 = vmatpush1.msra.mxu0 %v1226
        %1228 = vmatprep.subr.mxu0 0.0
        %v1229 = vand.u32 %v822, 4294901760
        %1230 = vmatpush1.msra.mxu0 %v1229
        %1231 = vmatprep.subr.mxu0 0.0
        %v1232 = vand.u32 %v821, 4294901760
        %1233 = vmatpush1.msra.mxu0 %v1232
        %1234 = vmatprep.subr.mxu0 0.0
        %v1235 = vand.u32 %v820, 4294901760
        %1236 = vmatpush1.msra.mxu0 %v1235
        %1237 = vmatprep.subr.mxu0 0.0
        %v1238 = vand.u32 %v819, 4294901760
        %1239 = vmatpush1.msra.mxu0 %v1238
        %1240 = vmatprep.subr.mxu0 0.0
        %v1241 = vand.u32 %v818, 4294901760
        %1242 = vmatpush1.msra.mxu0 %v1241
        %1243 = vmatprep.subr.mxu0 0.0
        %v1244 = vand.u32 %v817, 4294901760
        %1245 = vmatpush1.msra.mxu0 %v1244
        %1246 = vmatprep.subr.mxu0 0.0
        %v1247 = vand.u32 %v816, 4294901760
        %1248 = vmatpush1.msra.mxu0 %v1247
        %1249 = vmatprep.subr.mxu0 0.0
        %1250 = vmatpush2.msra.mxu0 0.0
        %1251 = vmatprep.subr.mxu0 0.0
        %1252 = vmatpush2.msra.mxu0 0.0
        %1253 = vmatprep.subr.mxu0 0.0
        %1254 = vmatpush2.msra.mxu0 0.0
        %1255 = vmatprep.subr.mxu0 0.0
        %1256 = vmatpush2.msra.mxu0 0.0
        %1257 = vmatprep.subr.mxu0 0.0
        %1258 = vmatpush2.msra.mxu0 0.0
        %1259 = vmatprep.subr.mxu0 0.0
        %1260 = vmatpush2.msra.mxu0 0.0
        %1261 = vmatprep.subr.mxu0 0.0
        %1262 = vmatpush2.msra.mxu0 0.0
        %1263 = vmatprep.subr.mxu0 0.0
        %1264 = vmatpush2.msra.mxu0 0.0
        %1265 = vmatprep.subr.mxu0 0.0
        %1266 = vmatpush2.msra.mxu0 0.0
        %1267 = vmatprep.subr.mxu0 0.0
        %1268 = vmatpush2.msra.mxu0 0.0
        %1269 = vmatprep.subr.mxu0 0.0
        %1270 = vmatpush2.msra.mxu0 0.0
        %1271 = vmatprep.subr.mxu0 0.0
        %1272 = vmatpush2.msra.mxu0 0.0
        %1273 = vmatprep.subr.mxu0 0.0
        %1274 = vmatpush2.msra.mxu0 0.0
        %1275 = vmatprep.subr.mxu0 0.0
        %1276 = vmatpush2.msra.mxu0 0.0
        %1277 = vmatprep.subr.mxu0 0.0
        %1278 = vmatpush2.msra.mxu0 0.0
        %1279 = vmatprep.subr.mxu0 0.0
        %1280 = vmatpush2.msra.mxu0 0.0
        %1281 = vmatprep.mubr.f32.mxu0 0.0
        %v1282 = vand.u32 %v814, 4294901760
        %v1283 = vsub.f32 %v814, %v1282
        %v1284 = vand.u32 %v1283, 4294901760
        %1285 = vmatmul.mubr.f32.gmra.mxu0 %v1284
        %v1286 = vpop.f32.mrf.mxu0
        %v1287 = vadd.f32 %v1191, %v1286
        %v1288 = vpop.f32.mrf.mxu0
        %1289 = vmatprep.mubr.f32.mxu0 0.0
        %v1290 = vand.u32 %v815, 4294901760
        %v1291 = vsub.f32 %v815, %v1290
        %v1292 = vand.u32 %v1291, 4294901760
        %1293 = vmatmul.mubr.f32.gmra.mxu0 %v1292
        %v1294 = vpop.f32.mrf.mxu0
        %v1295 = vadd.f32 %v1198, %v1294
        %v1296 = vpop.f32.mrf.mxu0
        %1297 = vdwg.mxu0
        %1298 = vmatprep.subr.mxu0 0.0
        %v1299 = vand.u32 %v831, 4294901760
        %v1300 = vsub.f32 %v831, %v1299
        %v1301 = vand.u32 %v1300, 4294901760
        %1302 = vmatpush1.msra.mxu0 %v1301
        %1303 = vmatprep.subr.mxu0 0.0
        %v1304 = vand.u32 %v830, 4294901760
        %v1305 = vsub.f32 %v830, %v1304
        %v1306 = vand.u32 %v1305, 4294901760
        %1307 = vmatpush1.msra.mxu0 %v1306
        %1308 = vmatprep.subr.mxu0 0.0
        %v1309 = vand.u32 %v829, 4294901760
        %v1310 = vsub.f32 %v829, %v1309
        %v1311 = vand.u32 %v1310, 4294901760
        %1312 = vmatpush1.msra.mxu0 %v1311
        %1313 = vmatprep.subr.mxu0 0.0
        %v1314 = vand.u32 %v828, 4294901760
        %v1315 = vsub.f32 %v828, %v1314
        %v1316 = vand.u32 %v1315, 4294901760
        %1317 = vmatpush1.msra.mxu0 %v1316
        %1318 = vmatprep.subr.mxu0 0.0
        %v1319 = vand.u32 %v827, 4294901760
        %v1320 = vsub.f32 %v827, %v1319
        %v1321 = vand.u32 %v1320, 4294901760
        %1322 = vmatpush1.msra.mxu0 %v1321
        %1323 = vmatprep.subr.mxu0 0.0
        %v1324 = vand.u32 %v826, 4294901760
        %v1325 = vsub.f32 %v826, %v1324
        %v1326 = vand.u32 %v1325, 4294901760
        %1327 = vmatpush1.msra.mxu0 %v1326
        %1328 = vmatprep.subr.mxu0 0.0
        %v1329 = vand.u32 %v825, 4294901760
        %v1330 = vsub.f32 %v825, %v1329
        %v1331 = vand.u32 %v1330, 4294901760
        %1332 = vmatpush1.msra.mxu0 %v1331
        %1333 = vmatprep.subr.mxu0 0.0
        %v1334 = vand.u32 %v824, 4294901760
        %v1335 = vsub.f32 %v824, %v1334
        %v1336 = vand.u32 %v1335, 4294901760
        %1337 = vmatpush1.msra.mxu0 %v1336
        %1338 = vmatprep.subr.mxu0 0.0
        %v1339 = vand.u32 %v823, 4294901760
        %v1340 = vsub.f32 %v823, %v1339
        %v1341 = vand.u32 %v1340, 4294901760
        %1342 = vmatpush1.msra.mxu0 %v1341
        %1343 = vmatprep.subr.mxu0 0.0
        %v1344 = vand.u32 %v822, 4294901760
        %v1345 = vsub.f32 %v822, %v1344
        %v1346 = vand.u32 %v1345, 4294901760
        %1347 = vmatpush1.msra.mxu0 %v1346
        %1348 = vmatprep.subr.mxu0 0.0
        %v1349 = vand.u32 %v821, 4294901760
        %v1350 = vsub.f32 %v821, %v1349
        %v1351 = vand.u32 %v1350, 4294901760
        %1352 = vmatpush1.msra.mxu0 %v1351
        %1353 = vmatprep.subr.mxu0 0.0
        %v1354 = vand.u32 %v820, 4294901760
        %v1355 = vsub.f32 %v820, %v1354
        %v1356 = vand.u32 %v1355, 4294901760
        %1357 = vmatpush1.msra.mxu0 %v1356
        %1358 = vmatprep.subr.mxu0 0.0
        %v1359 = vand.u32 %v819, 4294901760
        %v1360 = vsub.f32 %v819, %v1359
        %v1361 = vand.u32 %v1360, 4294901760
        %1362 = vmatpush1.msra.mxu0 %v1361
        %1363 = vmatprep.subr.mxu0 0.0
        %v1364 = vand.u32 %v818, 4294901760
        %v1365 = vsub.f32 %v818, %v1364
        %v1366 = vand.u32 %v1365, 4294901760
        %1367 = vmatpush1.msra.mxu0 %v1366
        %1368 = vmatprep.subr.mxu0 0.0
        %v1369 = vand.u32 %v817, 4294901760
        %v1370 = vsub.f32 %v817, %v1369
        %v1371 = vand.u32 %v1370, 4294901760
        %1372 = vmatpush1.msra.mxu0 %v1371
        %1373 = vmatprep.subr.mxu0 0.0
        %v1374 = vand.u32 %v816, 4294901760
        %v1375 = vsub.f32 %v816, %v1374
        %v1376 = vand.u32 %v1375, 4294901760
        %1377 = vmatpush1.msra.mxu0 %v1376
        %1378 = vmatprep.subr.mxu0 0.0
        %1379 = vmatpush2.msra.mxu0 0.0
        %1380 = vmatprep.subr.mxu0 0.0
        %1381 = vmatpush2.msra.mxu0 0.0
        %1382 = vmatprep.subr.mxu0 0.0
        %1383 = vmatpush2.msra.mxu0 0.0
        %1384 = vmatprep.subr.mxu0 0.0
        %1385 = vmatpush2.msra.mxu0 0.0
        %1386 = vmatprep.subr.mxu0 0.0
        %1387 = vmatpush2.msra.mxu0 0.0
        %1388 = vmatprep.subr.mxu0 0.0
        %1389 = vmatpush2.msra.mxu0 0.0
        %1390 = vmatprep.subr.mxu0 0.0
        %1391 = vmatpush2.msra.mxu0 0.0
        %1392 = vmatprep.subr.mxu0 0.0
        %1393 = vmatpush2.msra.mxu0 0.0
        %1394 = vmatprep.subr.mxu0 0.0
        %1395 = vmatpush2.msra.mxu0 0.0
        %1396 = vmatprep.subr.mxu0 0.0
        %1397 = vmatpush2.msra.mxu0 0.0
        %1398 = vmatprep.subr.mxu0 0.0
        %1399 = vmatpush2.msra.mxu0 0.0
        %1400 = vmatprep.subr.mxu0 0.0
        %1401 = vmatpush2.msra.mxu0 0.0
        %1402 = vmatprep.subr.mxu0 0.0
        %1403 = vmatpush2.msra.mxu0 0.0
        %1404 = vmatprep.subr.mxu0 0.0
        %1405 = vmatpush2.msra.mxu0 0.0
        %1406 = vmatprep.subr.mxu0 0.0
        %1407 = vmatpush2.msra.mxu0 0.0
        %1408 = vmatprep.subr.mxu0 0.0
        %1409 = vmatpush2.msra.mxu0 0.0
        %1410 = vmatprep.mubr.f32.mxu0 0.0
        %v1411 = vand.u32 %v814, 4294901760
        %1412 = vmatmul.mubr.f32.gmra.mxu0 %v1411
        %v1413 = vpop.f32.mrf.mxu0
        %v1414 = vadd.f32 %v1287, %v1413
        %v1415 = vpop.f32.mrf.mxu0
        %1416 = vmatprep.mubr.f32.mxu0 0.0
        %v1417 = vand.u32 %v815, 4294901760
        %1418 = vmatmul.mubr.f32.gmra.mxu0 %v1417
        %v1419 = vpop.f32.mrf.mxu0
        %v1420 = vadd.f32 %v1295, %v1419
        %v1421 = vpop.f32.mrf.mxu0
        %1422 = vdwg.mxu0
        %1423 = vmatprep.subr.mxu0 0.0
        %v1424 = vand.u32 %v831, 4294901760
        %1425 = vmatpush1.msra.mxu0 %v1424
        %1426 = vmatprep.subr.mxu0 0.0
        %v1427 = vand.u32 %v830, 4294901760
        %1428 = vmatpush1.msra.mxu0 %v1427
        %1429 = vmatprep.subr.mxu0 0.0
        %v1430 = vand.u32 %v829, 4294901760
        %1431 = vmatpush1.msra.mxu0 %v1430
        %1432 = vmatprep.subr.mxu0 0.0
        %v1433 = vand.u32 %v828, 4294901760
        %1434 = vmatpush1.msra.mxu0 %v1433
        %1435 = vmatprep.subr.mxu0 0.0
        %v1436 = vand.u32 %v827, 4294901760
        %1437 = vmatpush1.msra.mxu0 %v1436
        %1438 = vmatprep.subr.mxu0 0.0
        %v1439 = vand.u32 %v826, 4294901760
        %1440 = vmatpush1.msra.mxu0 %v1439
        %1441 = vmatprep.subr.mxu0 0.0
        %v1442 = vand.u32 %v825, 4294901760
        %1443 = vmatpush1.msra.mxu0 %v1442
        %1444 = vmatprep.subr.mxu0 0.0
        %v1445 = vand.u32 %v824, 4294901760
        %1446 = vmatpush1.msra.mxu0 %v1445
        %1447 = vmatprep.subr.mxu0 0.0
        %v1448 = vand.u32 %v823, 4294901760
        %1449 = vmatpush1.msra.mxu0 %v1448
        %1450 = vmatprep.subr.mxu0 0.0
        %v1451 = vand.u32 %v822, 4294901760
        %1452 = vmatpush1.msra.mxu0 %v1451
        %1453 = vmatprep.subr.mxu0 0.0
        %v1454 = vand.u32 %v821, 4294901760
        %1455 = vmatpush1.msra.mxu0 %v1454
        %1456 = vmatprep.subr.mxu0 0.0
        %v1457 = vand.u32 %v820, 4294901760
        %1458 = vmatpush1.msra.mxu0 %v1457
        %1459 = vmatprep.subr.mxu0 0.0
        %v1460 = vand.u32 %v819, 4294901760
        %1461 = vmatpush1.msra.mxu0 %v1460
        %1462 = vmatprep.subr.mxu0 0.0
        %v1463 = vand.u32 %v818, 4294901760
        %1464 = vmatpush1.msra.mxu0 %v1463
        %1465 = vmatprep.subr.mxu0 0.0
        %v1466 = vand.u32 %v817, 4294901760
        %1467 = vmatpush1.msra.mxu0 %v1466
        %1468 = vmatprep.subr.mxu0 0.0
        %v1469 = vand.u32 %v816, 4294901760
        %1470 = vmatpush1.msra.mxu0 %v1469
        %1471 = vmatprep.subr.mxu0 0.0
        %1472 = vmatpush2.msra.mxu0 0.0
        %1473 = vmatprep.subr.mxu0 0.0
        %1474 = vmatpush2.msra.mxu0 0.0
        %1475 = vmatprep.subr.mxu0 0.0
        %1476 = vmatpush2.msra.mxu0 0.0
        %1477 = vmatprep.subr.mxu0 0.0
        %1478 = vmatpush2.msra.mxu0 0.0
        %1479 = vmatprep.subr.mxu0 0.0
        %1480 = vmatpush2.msra.mxu0 0.0
        %1481 = vmatprep.subr.mxu0 0.0
        %1482 = vmatpush2.msra.mxu0 0.0
        %1483 = vmatprep.subr.mxu0 0.0
        %1484 = vmatpush2.msra.mxu0 0.0
        %1485 = vmatprep.subr.mxu0 0.0
        %1486 = vmatpush2.msra.mxu0 0.0
        %1487 = vmatprep.subr.mxu0 0.0
        %1488 = vmatpush2.msra.mxu0 0.0
        %1489 = vmatprep.subr.mxu0 0.0
        %1490 = vmatpush2.msra.mxu0 0.0
        %1491 = vmatprep.subr.mxu0 0.0
        %1492 = vmatpush2.msra.mxu0 0.0
        %1493 = vmatprep.subr.mxu0 0.0
        %1494 = vmatpush2.msra.mxu0 0.0
        %1495 = vmatprep.subr.mxu0 0.0
        %1496 = vmatpush2.msra.mxu0 0.0
        %1497 = vmatprep.subr.mxu0 0.0
        %1498 = vmatpush2.msra.mxu0 0.0
        %1499 = vmatprep.subr.mxu0 0.0
        %1500 = vmatpush2.msra.mxu0 0.0
        %1501 = vmatprep.subr.mxu0 0.0
        %1502 = vmatpush2.msra.mxu0 0.0
        %1503 = vmatprep.mubr.f32.mxu0 0.0
        %v1504 = vand.u32 %v814, 4294901760
        %1505 = vmatmul.mubr.f32.gmra.mxu0 %v1504
        %v1506 = vpop.f32.mrf.mxu0
        %v1507 = vadd.f32 %v1414, %v1506
        %v1508 = vpop.f32.mrf.mxu0
        %1509 = vmatprep.mubr.f32.mxu0 0.0
        %v1510 = vand.u32 %v815, 4294901760
        %1511 = vmatmul.mubr.f32.gmra.mxu0 %v1510
        %v1512 = vpop.f32.mrf.mxu0
        %v1513 = vadd.f32 %v1420, %v1512
        %v1514 = vpop.f32.mrf.mxu0
        %1515 = vdwg.mxu0
        %1516 = vmatprep.subr.mxu0 0.0
        %v1517 = vand.u32 %v722, 4294901760
        %1518 = vmatpush1.msra.mxu0 %v1517
        %1519 = vmatprep.subr.mxu0 0.0
        %v1520 = vand.u32 %v721, 4294901760
        %1521 = vmatpush1.msra.mxu0 %v1520
        %1522 = vmatprep.subr.mxu0 0.0
        %v1523 = vand.u32 %v720, 4294901760
        %1524 = vmatpush1.msra.mxu0 %v1523
        %1525 = vmatprep.subr.mxu0 0.0
        %v1526 = vand.u32 %v719, 4294901760
        %1527 = vmatpush1.msra.mxu0 %v1526
        %1528 = vmatprep.subr.mxu0 0.0
        %v1529 = vand.u32 %v718, 4294901760
        %1530 = vmatpush1.msra.mxu0 %v1529
        %1531 = vmatprep.subr.mxu0 0.0
        %v1532 = vand.u32 %v717, 4294901760
        %1533 = vmatpush1.msra.mxu0 %v1532
        %1534 = vmatprep.subr.mxu0 0.0
        %v1535 = vand.u32 %v716, 4294901760
        %1536 = vmatpush1.msra.mxu0 %v1535
        %1537 = vmatprep.subr.mxu0 0.0
        %v1538 = vand.u32 %v715, 4294901760
        %1539 = vmatpush1.msra.mxu0 %v1538
        %1540 = vmatprep.subr.mxu0 0.0
        %v1541 = vand.u32 %v714, 4294901760
        %1542 = vmatpush1.msra.mxu0 %v1541
        %1543 = vmatprep.subr.mxu0 0.0
        %v1544 = vand.u32 %v713, 4294901760
        %1545 = vmatpush1.msra.mxu0 %v1544
        %1546 = vmatprep.subr.mxu0 0.0
        %v1547 = vand.u32 %v712, 4294901760
        %1548 = vmatpush1.msra.mxu0 %v1547
        %1549 = vmatprep.subr.mxu0 0.0
        %v1550 = vand.u32 %v711, 4294901760
        %1551 = vmatpush1.msra.mxu0 %v1550
        %1552 = vmatprep.subr.mxu0 0.0
        %v1553 = vand.u32 %v710, 4294901760
        %1554 = vmatpush1.msra.mxu0 %v1553
        %1555 = vmatprep.subr.mxu0 0.0
        %v1556 = vand.u32 %v709, 4294901760
        %1557 = vmatpush1.msra.mxu0 %v1556
        %1558 = vmatprep.subr.mxu0 0.0
        %v1559 = vand.u32 %v708, 4294901760
        %1560 = vmatpush1.msra.mxu0 %v1559
        %1561 = vmatprep.subr.mxu0 0.0
        %v1562 = vand.u32 %v707, 4294901760
        %1563 = vmatpush1.msra.mxu0 %v1562
        %1564 = vmatprep.subr.mxu0 0.0
        %1565 = vmatpush2.msra.mxu0 0.0
        %1566 = vmatprep.subr.mxu0 0.0
        %1567 = vmatpush2.msra.mxu0 0.0
        %1568 = vmatprep.subr.mxu0 0.0
        %1569 = vmatpush2.msra.mxu0 0.0
        %1570 = vmatprep.subr.mxu0 0.0
        %1571 = vmatpush2.msra.mxu0 0.0
        %1572 = vmatprep.subr.mxu0 0.0
        %1573 = vmatpush2.msra.mxu0 0.0
        %1574 = vmatprep.subr.mxu0 0.0
        %1575 = vmatpush2.msra.mxu0 0.0
        %1576 = vmatprep.subr.mxu0 0.0
        %1577 = vmatpush2.msra.mxu0 0.0
        %1578 = vmatprep.subr.mxu0 0.0
        %1579 = vmatpush2.msra.mxu0 0.0
        %1580 = vmatprep.subr.mxu0 0.0
        %1581 = vmatpush2.msra.mxu0 0.0
        %1582 = vmatprep.subr.mxu0 0.0
        %1583 = vmatpush2.msra.mxu0 0.0
        %1584 = vmatprep.subr.mxu0 0.0
        %1585 = vmatpush2.msra.mxu0 0.0
        %1586 = vmatprep.subr.mxu0 0.0
        %1587 = vmatpush2.msra.mxu0 0.0
        %1588 = vmatprep.subr.mxu0 0.0
        %1589 = vmatpush2.msra.mxu0 0.0
        %1590 = vmatprep.subr.mxu0 0.0
        %1591 = vmatpush2.msra.mxu0 0.0
        %1592 = vmatprep.subr.mxu0 0.0
        %1593 = vmatpush2.msra.mxu0 0.0
        %1594 = vmatprep.subr.mxu0 0.0
        %1595 = vmatpush2.msra.mxu0 0.0
        %1596 = vmatprep.mubr.f32.mxu0 0.0
        %v1597 = vand.u32 %v705, 4294901760
        %v1598 = vsub.f32 %v705, %v1597
        %v1599 = vand.u32 %v1598, 4294901760
        %v1600 = vsub.f32 %v1598, %v1599
        %v1601 = vand.u32 %v1600, 4294901760
        %1602 = vmatmul.mubr.f32.gmra.mxu0 %v1601
        %v1603 = vpop.f32.mrf.mxu0
        %v1604 = vadd.f32 %v1507, %v1603
        %v1605 = vpop.f32.mrf.mxu0
        %1606 = vmatprep.mubr.f32.mxu0 0.0
        %v1607 = vand.u32 %v706, 4294901760
        %v1608 = vsub.f32 %v706, %v1607
        %v1609 = vand.u32 %v1608, 4294901760
        %v1610 = vsub.f32 %v1608, %v1609
        %v1611 = vand.u32 %v1610, 4294901760
        %1612 = vmatmul.mubr.f32.gmra.mxu0 %v1611
        %v1613 = vpop.f32.mrf.mxu0
        %v1614 = vadd.f32 %v1513, %v1613
        %v1615 = vpop.f32.mrf.mxu0
        %1616 = vdwg.mxu0
        %1617 = vmatprep.subr.mxu0 0.0
        %v1618 = vand.u32 %v722, 4294901760
        %v1619 = vsub.f32 %v722, %v1618
        %v1620 = vand.u32 %v1619, 4294901760
        %v1621 = vsub.f32 %v1619, %v1620
        %v1622 = vand.u32 %v1621, 4294901760
        %1623 = vmatpush1.msra.mxu0 %v1622
        %1624 = vmatprep.subr.mxu0 0.0
        %v1625 = vand.u32 %v721, 4294901760
        %v1626 = vsub.f32 %v721, %v1625
        %v1627 = vand.u32 %v1626, 4294901760
        %v1628 = vsub.f32 %v1626, %v1627
        %v1629 = vand.u32 %v1628, 4294901760
        %1630 = vmatpush1.msra.mxu0 %v1629
        %1631 = vmatprep.subr.mxu0 0.0
        %v1632 = vand.u32 %v720, 4294901760
        %v1633 = vsub.f32 %v720, %v1632
        %v1634 = vand.u32 %v1633, 4294901760
        %v1635 = vsub.f32 %v1633, %v1634
        %v1636 = vand.u32 %v1635, 4294901760
        %1637 = vmatpush1.msra.mxu0 %v1636
        %1638 = vmatprep.subr.mxu0 0.0
        %v1639 = vand.u32 %v719, 4294901760
        %v1640 = vsub.f32 %v719, %v1639
        %v1641 = vand.u32 %v1640, 4294901760
        %v1642 = vsub.f32 %v1640, %v1641
        %v1643 = vand.u32 %v1642, 4294901760
        %1644 = vmatpush1.msra.mxu0 %v1643
        %1645 = vmatprep.subr.mxu0 0.0
        %v1646 = vand.u32 %v718, 4294901760
        %v1647 = vsub.f32 %v718, %v1646
        %v1648 = vand.u32 %v1647, 4294901760
        %v1649 = vsub.f32 %v1647, %v1648
        %v1650 = vand.u32 %v1649, 4294901760
        %1651 = vmatpush1.msra.mxu0 %v1650
        %1652 = vmatprep.subr.mxu0 0.0
        %v1653 = vand.u32 %v717, 4294901760
        %v1654 = vsub.f32 %v717, %v1653
        %v1655 = vand.u32 %v1654, 4294901760
        %v1656 = vsub.f32 %v1654, %v1655
        %v1657 = vand.u32 %v1656, 4294901760
        %1658 = vmatpush1.msra.mxu0 %v1657
        %1659 = vmatprep.subr.mxu0 0.0
        %v1660 = vand.u32 %v716, 4294901760
        %v1661 = vsub.f32 %v716, %v1660
        %v1662 = vand.u32 %v1661, 4294901760
        %v1663 = vsub.f32 %v1661, %v1662
        %v1664 = vand.u32 %v1663, 4294901760
        %1665 = vmatpush1.msra.mxu0 %v1664
        %1666 = vmatprep.subr.mxu0 0.0
        %v1667 = vand.u32 %v715, 4294901760
        %v1668 = vsub.f32 %v715, %v1667
        %v1669 = vand.u32 %v1668, 4294901760
        %v1670 = vsub.f32 %v1668, %v1669
        %v1671 = vand.u32 %v1670, 4294901760
        %1672 = vmatpush1.msra.mxu0 %v1671
        %1673 = vmatprep.subr.mxu0 0.0
        %v1674 = vand.u32 %v714, 4294901760
        %v1675 = vsub.f32 %v714, %v1674
        %v1676 = vand.u32 %v1675, 4294901760
        %v1677 = vsub.f32 %v1675, %v1676
        %v1678 = vand.u32 %v1677, 4294901760
        %1679 = vmatpush1.msra.mxu0 %v1678
        %1680 = vmatprep.subr.mxu0 0.0
        %v1681 = vand.u32 %v713, 4294901760
        %v1682 = vsub.f32 %v713, %v1681
        %v1683 = vand.u32 %v1682, 4294901760
        %v1684 = vsub.f32 %v1682, %v1683
        %v1685 = vand.u32 %v1684, 4294901760
        %1686 = vmatpush1.msra.mxu0 %v1685
        %1687 = vmatprep.subr.mxu0 0.0
        %v1688 = vand.u32 %v712, 4294901760
        %v1689 = vsub.f32 %v712, %v1688
        %v1690 = vand.u32 %v1689, 4294901760
        %v1691 = vsub.f32 %v1689, %v1690
        %v1692 = vand.u32 %v1691, 4294901760
        %1693 = vmatpush1.msra.mxu0 %v1692
        %1694 = vmatprep.subr.mxu0 0.0
        %v1695 = vand.u32 %v711, 4294901760
        %v1696 = vsub.f32 %v711, %v1695
        %v1697 = vand.u32 %v1696, 4294901760
        %v1698 = vsub.f32 %v1696, %v1697
        %v1699 = vand.u32 %v1698, 4294901760
        %1700 = vmatpush1.msra.mxu0 %v1699
        %1701 = vmatprep.subr.mxu0 0.0
        %v1702 = vand.u32 %v710, 4294901760
        %v1703 = vsub.f32 %v710, %v1702
        %v1704 = vand.u32 %v1703, 4294901760
        %v1705 = vsub.f32 %v1703, %v1704
        %v1706 = vand.u32 %v1705, 4294901760
        %1707 = vmatpush1.msra.mxu0 %v1706
        %1708 = vmatprep.subr.mxu0 0.0
        %v1709 = vand.u32 %v709, 4294901760
        %v1710 = vsub.f32 %v709, %v1709
        %v1711 = vand.u32 %v1710, 4294901760
        %v1712 = vsub.f32 %v1710, %v1711
        %v1713 = vand.u32 %v1712, 4294901760
        %1714 = vmatpush1.msra.mxu0 %v1713
        %1715 = vmatprep.subr.mxu0 0.0
        %v1716 = vand.u32 %v708, 4294901760
        %v1717 = vsub.f32 %v708, %v1716
        %v1718 = vand.u32 %v1717, 4294901760
        %v1719 = vsub.f32 %v1717, %v1718
        %v1720 = vand.u32 %v1719, 4294901760
        %1721 = vmatpush1.msra.mxu0 %v1720
        %1722 = vmatprep.subr.mxu0 0.0
        %v1723 = vand.u32 %v707, 4294901760
        %v1724 = vsub.f32 %v707, %v1723
        %v1725 = vand.u32 %v1724, 4294901760
        %v1726 = vsub.f32 %v1724, %v1725
        %v1727 = vand.u32 %v1726, 4294901760
        %1728 = vmatpush1.msra.mxu0 %v1727
        %1729 = vmatprep.subr.mxu0 0.0
        %1730 = vmatpush2.msra.mxu0 0.0
        %1731 = vmatprep.subr.mxu0 0.0
        %1732 = vmatpush2.msra.mxu0 0.0
        %1733 = vmatprep.subr.mxu0 0.0
        %1734 = vmatpush2.msra.mxu0 0.0
        %1735 = vmatprep.subr.mxu0 0.0
        %1736 = vmatpush2.msra.mxu0 0.0
        %1737 = vmatprep.subr.mxu0 0.0
        %1738 = vmatpush2.msra.mxu0 0.0
        %1739 = vmatprep.subr.mxu0 0.0
        %1740 = vmatpush2.msra.mxu0 0.0
        %1741 = vmatprep.subr.mxu0 0.0
        %1742 = vmatpush2.msra.mxu0 0.0
        %1743 = vmatprep.subr.mxu0 0.0
        %1744 = vmatpush2.msra.mxu0 0.0
        %1745 = vmatprep.subr.mxu0 0.0
        %1746 = vmatpush2.msra.mxu0 0.0
        %1747 = vmatprep.subr.mxu0 0.0
        %1748 = vmatpush2.msra.mxu0 0.0
        %1749 = vmatprep.subr.mxu0 0.0
        %1750 = vmatpush2.msra.mxu0 0.0
        %1751 = vmatprep.subr.mxu0 0.0
        %1752 = vmatpush2.msra.mxu0 0.0
        %1753 = vmatprep.subr.mxu0 0.0
        %1754 = vmatpush2.msra.mxu0 0.0
        %1755 = vmatprep.subr.mxu0 0.0
        %1756 = vmatpush2.msra.mxu0 0.0
        %1757 = vmatprep.subr.mxu0 0.0
        %1758 = vmatpush2.msra.mxu0 0.0
        %1759 = vmatprep.subr.mxu0 0.0
        %1760 = vmatpush2.msra.mxu0 0.0
        %1761 = vmatprep.mubr.f32.mxu0 0.0
        %v1762 = vand.u32 %v705, 4294901760
        %1763 = vmatmul.mubr.f32.gmra.mxu0 %v1762
        %v1764 = vpop.f32.mrf.mxu0
        %v1765 = vadd.f32 %v1604, %v1764
        %v1766 = vpop.f32.mrf.mxu0
        %1767 = vmatprep.mubr.f32.mxu0 0.0
        %v1768 = vand.u32 %v706, 4294901760
        %1769 = vmatmul.mubr.f32.gmra.mxu0 %v1768
        %v1770 = vpop.f32.mrf.mxu0
        %v1771 = vadd.f32 %v1614, %v1770
        %v1772 = vpop.f32.mrf.mxu0
        %1773 = vdwg.mxu0
        %1774 = vmatprep.subr.mxu0 0.0
        %v1775 = vand.u32 %v722, 4294901760
        %v1776 = vsub.f32 %v722, %v1775
        %1777 = vmatpush1.msra.mxu0 %v1776
        %1778 = vmatprep.subr.mxu0 0.0
        %v1779 = vand.u32 %v721, 4294901760
        %v1780 = vsub.f32 %v721, %v1779
        %1781 = vmatpush1.msra.mxu0 %v1780
        %1782 = vmatprep.subr.mxu0 0.0
        %v1783 = vand.u32 %v720, 4294901760
        %v1784 = vsub.f32 %v720, %v1783
        %1785 = vmatpush1.msra.mxu0 %v1784
        %1786 = vmatprep.subr.mxu0 0.0
        %v1787 = vand.u32 %v719, 4294901760
        %v1788 = vsub.f32 %v719, %v1787
        %1789 = vmatpush1.msra.mxu0 %v1788
        %1790 = vmatprep.subr.mxu0 0.0
        %v1791 = vand.u32 %v718, 4294901760
        %v1792 = vsub.f32 %v718, %v1791
        %1793 = vmatpush1.msra.mxu0 %v1792
        %1794 = vmatprep.subr.mxu0 0.0
        %v1795 = vand.u32 %v717, 4294901760
        %v1796 = vsub.f32 %v717, %v1795
        %1797 = vmatpush1.msra.mxu0 %v1796
        %1798 = vmatprep.subr.mxu0 0.0
        %v1799 = vand.u32 %v716, 4294901760
        %v1800 = vsub.f32 %v716, %v1799
        %1801 = vmatpush1.msra.mxu0 %v1800
        %1802 = vmatprep.subr.mxu0 0.0
        %v1803 = vand.u32 %v715, 4294901760
        %v1804 = vsub.f32 %v715, %v1803
        %1805 = vmatpush1.msra.mxu0 %v1804
        %1806 = vmatprep.subr.mxu0 0.0
        %v1807 = vand.u32 %v714, 4294901760
        %v1808 = vsub.f32 %v714, %v1807
        %1809 = vmatpush1.msra.mxu0 %v1808
        %1810 = vmatprep.subr.mxu0 0.0
        %v1811 = vand.u32 %v713, 4294901760
        %v1812 = vsub.f32 %v713, %v1811
        %1813 = vmatpush1.msra.mxu0 %v1812
        %1814 = vmatprep.subr.mxu0 0.0
        %v1815 = vand.u32 %v712, 4294901760
        %v1816 = vsub.f32 %v712, %v1815
        %1817 = vmatpush1.msra.mxu0 %v1816
        %1818 = vmatprep.subr.mxu0 0.0
        %v1819 = vand.u32 %v711, 4294901760
        %v1820 = vsub.f32 %v711, %v1819
        %1821 = vmatpush1.msra.mxu0 %v1820
        %1822 = vmatprep.subr.mxu0 0.0
        %v1823 = vand.u32 %v710, 4294901760
        %v1824 = vsub.f32 %v710, %v1823
        %1825 = vmatpush1.msra.mxu0 %v1824
        %1826 = vmatprep.subr.mxu0 0.0
        %v1827 = vand.u32 %v709, 4294901760
        %v1828 = vsub.f32 %v709, %v1827
        %1829 = vmatpush1.msra.mxu0 %v1828
        %1830 = vmatprep.subr.mxu0 0.0
        %v1831 = vand.u32 %v708, 4294901760
        %v1832 = vsub.f32 %v708, %v1831
        %1833 = vmatpush1.msra.mxu0 %v1832
        %1834 = vmatprep.subr.mxu0 0.0
        %v1835 = vand.u32 %v707, 4294901760
        %v1836 = vsub.f32 %v707, %v1835
        %1837 = vmatpush1.msra.mxu0 %v1836
        %1838 = vmatprep.subr.mxu0 0.0
        %1839 = vmatpush2.msra.mxu0 0.0
        %1840 = vmatprep.subr.mxu0 0.0
        %1841 = vmatpush2.msra.mxu0 0.0
        %1842 = vmatprep.subr.mxu0 0.0
        %1843 = vmatpush2.msra.mxu0 0.0
        %1844 = vmatprep.subr.mxu0 0.0
        %1845 = vmatpush2.msra.mxu0 0.0
        %1846 = vmatprep.subr.mxu0 0.0
        %1847 = vmatpush2.msra.mxu0 0.0
        %1848 = vmatprep.subr.mxu0 0.0
        %1849 = vmatpush2.msra.mxu0 0.0
        %1850 = vmatprep.subr.mxu0 0.0
        %1851 = vmatpush2.msra.mxu0 0.0
        %1852 = vmatprep.subr.mxu0 0.0
        %1853 = vmatpush2.msra.mxu0 0.0
        %1854 = vmatprep.subr.mxu0 0.0
        %1855 = vmatpush2.msra.mxu0 0.0
        %1856 = vmatprep.subr.mxu0 0.0
        %1857 = vmatpush2.msra.mxu0 0.0
        %1858 = vmatprep.subr.mxu0 0.0
        %1859 = vmatpush2.msra.mxu0 0.0
        %1860 = vmatprep.subr.mxu0 0.0
        %1861 = vmatpush2.msra.mxu0 0.0
        %1862 = vmatprep.subr.mxu0 0.0
        %1863 = vmatpush2.msra.mxu0 0.0
        %1864 = vmatprep.subr.mxu0 0.0
        %1865 = vmatpush2.msra.mxu0 0.0
        %1866 = vmatprep.subr.mxu0 0.0
        %1867 = vmatpush2.msra.mxu0 0.0
        %1868 = vmatprep.subr.mxu0 0.0
        %1869 = vmatpush2.msra.mxu0 0.0
        %1870 = vmatprep.mubr.f32.mxu0 0.0
        %v1871 = vand.u32 %v705, 4294901760
        %v1872 = vsub.f32 %v705, %v1871
        %1873 = vmatmul.mubr.f32.gmra.mxu0 %v1872
        %v1874 = vpop.f32.mrf.mxu0
        %v1875 = vadd.f32 %v1765, %v1874
        %v1876 = vpop.f32.mrf.mxu0
        %1877 = vmatprep.mubr.f32.mxu0 0.0
        %v1878 = vand.u32 %v706, 4294901760
        %v1879 = vsub.f32 %v706, %v1878
        %1880 = vmatmul.mubr.f32.gmra.mxu0 %v1879
        %v1881 = vpop.f32.mrf.mxu0
        %v1882 = vadd.f32 %v1771, %v1881
        %v1883 = vpop.f32.mrf.mxu0
        %1884 = vdwg.mxu0
        %1885 = vmatprep.subr.mxu0 0.0
        %v1886 = vand.u32 %v722, 4294901760
        %1887 = vmatpush1.msra.mxu0 %v1886
        %1888 = vmatprep.subr.mxu0 0.0
        %v1889 = vand.u32 %v721, 4294901760
        %1890 = vmatpush1.msra.mxu0 %v1889
        %1891 = vmatprep.subr.mxu0 0.0
        %v1892 = vand.u32 %v720, 4294901760
        %1893 = vmatpush1.msra.mxu0 %v1892
        %1894 = vmatprep.subr.mxu0 0.0
        %v1895 = vand.u32 %v719, 4294901760
        %1896 = vmatpush1.msra.mxu0 %v1895
        %1897 = vmatprep.subr.mxu0 0.0
        %v1898 = vand.u32 %v718, 4294901760
        %1899 = vmatpush1.msra.mxu0 %v1898
        %1900 = vmatprep.subr.mxu0 0.0
        %v1901 = vand.u32 %v717, 4294901760
        %1902 = vmatpush1.msra.mxu0 %v1901
        %1903 = vmatprep.subr.mxu0 0.0
        %v1904 = vand.u32 %v716, 4294901760
        %1905 = vmatpush1.msra.mxu0 %v1904
        %1906 = vmatprep.subr.mxu0 0.0
        %v1907 = vand.u32 %v715, 4294901760
        %1908 = vmatpush1.msra.mxu0 %v1907
        %1909 = vmatprep.subr.mxu0 0.0
        %v1910 = vand.u32 %v714, 4294901760
        %1911 = vmatpush1.msra.mxu0 %v1910
        %1912 = vmatprep.subr.mxu0 0.0
        %v1913 = vand.u32 %v713, 4294901760
        %1914 = vmatpush1.msra.mxu0 %v1913
        %1915 = vmatprep.subr.mxu0 0.0
        %v1916 = vand.u32 %v712, 4294901760
        %1917 = vmatpush1.msra.mxu0 %v1916
        %1918 = vmatprep.subr.mxu0 0.0
        %v1919 = vand.u32 %v711, 4294901760
        %1920 = vmatpush1.msra.mxu0 %v1919
        %1921 = vmatprep.subr.mxu0 0.0
        %v1922 = vand.u32 %v710, 4294901760
        %1923 = vmatpush1.msra.mxu0 %v1922
        %1924 = vmatprep.subr.mxu0 0.0
        %v1925 = vand.u32 %v709, 4294901760
        %1926 = vmatpush1.msra.mxu0 %v1925
        %1927 = vmatprep.subr.mxu0 0.0
        %v1928 = vand.u32 %v708, 4294901760
        %1929 = vmatpush1.msra.mxu0 %v1928
        %1930 = vmatprep.subr.mxu0 0.0
        %v1931 = vand.u32 %v707, 4294901760
        %1932 = vmatpush1.msra.mxu0 %v1931
        %1933 = vmatprep.subr.mxu0 0.0
        %1934 = vmatpush2.msra.mxu0 0.0
        %1935 = vmatprep.subr.mxu0 0.0
        %1936 = vmatpush2.msra.mxu0 0.0
        %1937 = vmatprep.subr.mxu0 0.0
        %1938 = vmatpush2.msra.mxu0 0.0
        %1939 = vmatprep.subr.mxu0 0.0
        %1940 = vmatpush2.msra.mxu0 0.0
        %1941 = vmatprep.subr.mxu0 0.0
        %1942 = vmatpush2.msra.mxu0 0.0
        %1943 = vmatprep.subr.mxu0 0.0
        %1944 = vmatpush2.msra.mxu0 0.0
        %1945 = vmatprep.subr.mxu0 0.0
        %1946 = vmatpush2.msra.mxu0 0.0
        %1947 = vmatprep.subr.mxu0 0.0
        %1948 = vmatpush2.msra.mxu0 0.0
        %1949 = vmatprep.subr.mxu0 0.0
        %1950 = vmatpush2.msra.mxu0 0.0
        %1951 = vmatprep.subr.mxu0 0.0
        %1952 = vmatpush2.msra.mxu0 0.0
        %1953 = vmatprep.subr.mxu0 0.0
        %1954 = vmatpush2.msra.mxu0 0.0
        %1955 = vmatprep.subr.mxu0 0.0
        %1956 = vmatpush2.msra.mxu0 0.0
        %1957 = vmatprep.subr.mxu0 0.0
        %1958 = vmatpush2.msra.mxu0 0.0
        %1959 = vmatprep.subr.mxu0 0.0
        %1960 = vmatpush2.msra.mxu0 0.0
        %1961 = vmatprep.subr.mxu0 0.0
        %1962 = vmatpush2.msra.mxu0 0.0
        %1963 = vmatprep.subr.mxu0 0.0
        %1964 = vmatpush2.msra.mxu0 0.0
        %1965 = vmatprep.mubr.f32.mxu0 0.0
        %v1966 = vand.u32 %v705, 4294901760
        %v1967 = vsub.f32 %v705, %v1966
        %v1968 = vand.u32 %v1967, 4294901760
        %1969 = vmatmul.mubr.f32.gmra.mxu0 %v1968
        %v1970 = vpop.f32.mrf.mxu0
        %v1971 = vadd.f32 %v1875, %v1970
        %v1972 = vpop.f32.mrf.mxu0
        %1973 = vmatprep.mubr.f32.mxu0 0.0
        %v1974 = vand.u32 %v706, 4294901760
        %v1975 = vsub.f32 %v706, %v1974
        %v1976 = vand.u32 %v1975, 4294901760
        %1977 = vmatmul.mubr.f32.gmra.mxu0 %v1976
        %v1978 = vpop.f32.mrf.mxu0
        %v1979 = vadd.f32 %v1882, %v1978
        %v1980 = vpop.f32.mrf.mxu0
        %1981 = vdwg.mxu0
        %1982 = vmatprep.subr.mxu0 0.0
        %v1983 = vand.u32 %v722, 4294901760
        %v1984 = vsub.f32 %v722, %v1983
        %v1985 = vand.u32 %v1984, 4294901760
        %1986 = vmatpush1.msra.mxu0 %v1985
        %1987 = vmatprep.subr.mxu0 0.0
        %v1988 = vand.u32 %v721, 4294901760
        %v1989 = vsub.f32 %v721, %v1988
        %v1990 = vand.u32 %v1989, 4294901760
        %1991 = vmatpush1.msra.mxu0 %v1990
        %1992 = vmatprep.subr.mxu0 0.0
        %v1993 = vand.u32 %v720, 4294901760
        %v1994 = vsub.f32 %v720, %v1993
        %v1995 = vand.u32 %v1994, 4294901760
        %1996 = vmatpush1.msra.mxu0 %v1995
        %1997 = vmatprep.subr.mxu0 0.0
        %v1998 = vand.u32 %v719, 4294901760
        %v1999 = vsub.f32 %v719, %v1998
        %v2000 = vand.u32 %v1999, 4294901760
        %2001 = vmatpush1.msra.mxu0 %v2000
        %2002 = vmatprep.subr.mxu0 0.0
        %v2003 = vand.u32 %v718, 4294901760
        %v2004 = vsub.f32 %v718, %v2003
        %v2005 = vand.u32 %v2004, 4294901760
        %2006 = vmatpush1.msra.mxu0 %v2005
        %2007 = vmatprep.subr.mxu0 0.0
        %v2008 = vand.u32 %v717, 4294901760
        %v2009 = vsub.f32 %v717, %v2008
        %v2010 = vand.u32 %v2009, 4294901760
        %2011 = vmatpush1.msra.mxu0 %v2010
        %2012 = vmatprep.subr.mxu0 0.0
        %v2013 = vand.u32 %v716, 4294901760
        %v2014 = vsub.f32 %v716, %v2013
        %v2015 = vand.u32 %v2014, 4294901760
        %2016 = vmatpush1.msra.mxu0 %v2015
        %2017 = vmatprep.subr.mxu0 0.0
        %v2018 = vand.u32 %v715, 4294901760
        %v2019 = vsub.f32 %v715, %v2018
        %v2020 = vand.u32 %v2019, 4294901760
        %2021 = vmatpush1.msra.mxu0 %v2020
        %2022 = vmatprep.subr.mxu0 0.0
        %v2023 = vand.u32 %v714, 4294901760
        %v2024 = vsub.f32 %v714, %v2023
        %v2025 = vand.u32 %v2024, 4294901760
        %2026 = vmatpush1.msra.mxu0 %v2025
        %2027 = vmatprep.subr.mxu0 0.0
        %v2028 = vand.u32 %v713, 4294901760
        %v2029 = vsub.f32 %v713, %v2028
        %v2030 = vand.u32 %v2029, 4294901760
        %2031 = vmatpush1.msra.mxu0 %v2030
        %2032 = vmatprep.subr.mxu0 0.0
        %v2033 = vand.u32 %v712, 4294901760
        %v2034 = vsub.f32 %v712, %v2033
        %v2035 = vand.u32 %v2034, 4294901760
        %2036 = vmatpush1.msra.mxu0 %v2035
        %2037 = vmatprep.subr.mxu0 0.0
        %v2038 = vand.u32 %v711, 4294901760
        %v2039 = vsub.f32 %v711, %v2038
        %v2040 = vand.u32 %v2039, 4294901760
        %2041 = vmatpush1.msra.mxu0 %v2040
        %2042 = vmatprep.subr.mxu0 0.0
        %v2043 = vand.u32 %v710, 4294901760
        %v2044 = vsub.f32 %v710, %v2043
        %v2045 = vand.u32 %v2044, 4294901760
        %2046 = vmatpush1.msra.mxu0 %v2045
        %2047 = vmatprep.subr.mxu0 0.0
        %v2048 = vand.u32 %v709, 4294901760
        %v2049 = vsub.f32 %v709, %v2048
        %v2050 = vand.u32 %v2049, 4294901760
        %2051 = vmatpush1.msra.mxu0 %v2050
        %2052 = vmatprep.subr.mxu0 0.0
        %v2053 = vand.u32 %v708, 4294901760
        %v2054 = vsub.f32 %v708, %v2053
        %v2055 = vand.u32 %v2054, 4294901760
        %2056 = vmatpush1.msra.mxu0 %v2055
        %2057 = vmatprep.subr.mxu0 0.0
        %v2058 = vand.u32 %v707, 4294901760
        %v2059 = vsub.f32 %v707, %v2058
        %v2060 = vand.u32 %v2059, 4294901760
        %2061 = vmatpush1.msra.mxu0 %v2060
        %2062 = vmatprep.subr.mxu0 0.0
        %2063 = vmatpush2.msra.mxu0 0.0
        %2064 = vmatprep.subr.mxu0 0.0
        %2065 = vmatpush2.msra.mxu0 0.0
        %2066 = vmatprep.subr.mxu0 0.0
        %2067 = vmatpush2.msra.mxu0 0.0
        %2068 = vmatprep.subr.mxu0 0.0
        %2069 = vmatpush2.msra.mxu0 0.0
        %2070 = vmatprep.subr.mxu0 0.0
        %2071 = vmatpush2.msra.mxu0 0.0
        %2072 = vmatprep.subr.mxu0 0.0
        %2073 = vmatpush2.msra.mxu0 0.0
        %2074 = vmatprep.subr.mxu0 0.0
        %2075 = vmatpush2.msra.mxu0 0.0
        %2076 = vmatprep.subr.mxu0 0.0
        %2077 = vmatpush2.msra.mxu0 0.0
        %2078 = vmatprep.subr.mxu0 0.0
        %2079 = vmatpush2.msra.mxu0 0.0
        %2080 = vmatprep.subr.mxu0 0.0
        %2081 = vmatpush2.msra.mxu0 0.0
        %2082 = vmatprep.subr.mxu0 0.0
        %2083 = vmatpush2.msra.mxu0 0.0
        %2084 = vmatprep.subr.mxu0 0.0
        %2085 = vmatpush2.msra.mxu0 0.0
        %2086 = vmatprep.subr.mxu0 0.0
        %2087 = vmatpush2.msra.mxu0 0.0
        %2088 = vmatprep.subr.mxu0 0.0
        %2089 = vmatpush2.msra.mxu0 0.0
        %2090 = vmatprep.subr.mxu0 0.0
        %2091 = vmatpush2.msra.mxu0 0.0
        %2092 = vmatprep.subr.mxu0 0.0
        %2093 = vmatpush2.msra.mxu0 0.0
        %2094 = vmatprep.mubr.f32.mxu0 0.0
        %v2095 = vand.u32 %v705, 4294901760
        %2096 = vmatmul.mubr.f32.gmra.mxu0 %v2095
        %v2097 = vpop.f32.mrf.mxu0
        %v2098 = vadd.f32 %v1971, %v2097
        %v2099 = vpop.f32.mrf.mxu0
        %2100 = vmatprep.mubr.f32.mxu0 0.0
        %v2101 = vand.u32 %v706, 4294901760
        %2102 = vmatmul.mubr.f32.gmra.mxu0 %v2101
        %v2103 = vpop.f32.mrf.mxu0
        %v2104 = vadd.f32 %v1979, %v2103
        %v2105 = vpop.f32.mrf.mxu0
        %2106 = vdwg.mxu0
        %2107 = vmatprep.subr.mxu0 0.0
        %v2108 = vand.u32 %v722, 4294901760
        %2109 = vmatpush1.msra.mxu0 %v2108
        %2110 = vmatprep.subr.mxu0 0.0
        %v2111 = vand.u32 %v721, 4294901760
        %2112 = vmatpush1.msra.mxu0 %v2111
        %2113 = vmatprep.subr.mxu0 0.0
        %v2114 = vand.u32 %v720, 4294901760
        %2115 = vmatpush1.msra.mxu0 %v2114
        %2116 = vmatprep.subr.mxu0 0.0
        %v2117 = vand.u32 %v719, 4294901760
        %2118 = vmatpush1.msra.mxu0 %v2117
        %2119 = vmatprep.subr.mxu0 0.0
        %v2120 = vand.u32 %v718, 4294901760
        %2121 = vmatpush1.msra.mxu0 %v2120
        %2122 = vmatprep.subr.mxu0 0.0
        %v2123 = vand.u32 %v717, 4294901760
        %2124 = vmatpush1.msra.mxu0 %v2123
        %2125 = vmatprep.subr.mxu0 0.0
        %v2126 = vand.u32 %v716, 4294901760
        %2127 = vmatpush1.msra.mxu0 %v2126
        %2128 = vmatprep.subr.mxu0 0.0
        %v2129 = vand.u32 %v715, 4294901760
        %2130 = vmatpush1.msra.mxu0 %v2129
        %2131 = vmatprep.subr.mxu0 0.0
        %v2132 = vand.u32 %v714, 4294901760
        %2133 = vmatpush1.msra.mxu0 %v2132
        %2134 = vmatprep.subr.mxu0 0.0
        %v2135 = vand.u32 %v713, 4294901760
        %2136 = vmatpush1.msra.mxu0 %v2135
        %2137 = vmatprep.subr.mxu0 0.0
        %v2138 = vand.u32 %v712, 4294901760
        %2139 = vmatpush1.msra.mxu0 %v2138
        %2140 = vmatprep.subr.mxu0 0.0
        %v2141 = vand.u32 %v711, 4294901760
        %2142 = vmatpush1.msra.mxu0 %v2141
        %2143 = vmatprep.subr.mxu0 0.0
        %v2144 = vand.u32 %v710, 4294901760
        %2145 = vmatpush1.msra.mxu0 %v2144
        %2146 = vmatprep.subr.mxu0 0.0
        %v2147 = vand.u32 %v709, 4294901760
        %2148 = vmatpush1.msra.mxu0 %v2147
        %2149 = vmatprep.subr.mxu0 0.0
        %v2150 = vand.u32 %v708, 4294901760
        %2151 = vmatpush1.msra.mxu0 %v2150
        %2152 = vmatprep.subr.mxu0 0.0
        %v2153 = vand.u32 %v707, 4294901760
        %2154 = vmatpush1.msra.mxu0 %v2153
        %2155 = vmatprep.subr.mxu0 0.0
        %2156 = vmatpush2.msra.mxu0 0.0
        %2157 = vmatprep.subr.mxu0 0.0
        %2158 = vmatpush2.msra.mxu0 0.0
        %2159 = vmatprep.subr.mxu0 0.0
        %2160 = vmatpush2.msra.mxu0 0.0
        %2161 = vmatprep.subr.mxu0 0.0
        %2162 = vmatpush2.msra.mxu0 0.0
        %2163 = vmatprep.subr.mxu0 0.0
        %2164 = vmatpush2.msra.mxu0 0.0
        %2165 = vmatprep.subr.mxu0 0.0
        %2166 = vmatpush2.msra.mxu0 0.0
        %2167 = vmatprep.subr.mxu0 0.0
        %2168 = vmatpush2.msra.mxu0 0.0
        %2169 = vmatprep.subr.mxu0 0.0
        %2170 = vmatpush2.msra.mxu0 0.0
        %2171 = vmatprep.subr.mxu0 0.0
        %2172 = vmatpush2.msra.mxu0 0.0
        %2173 = vmatprep.subr.mxu0 0.0
        %2174 = vmatpush2.msra.mxu0 0.0
        %2175 = vmatprep.subr.mxu0 0.0
        %2176 = vmatpush2.msra.mxu0 0.0
        %2177 = vmatprep.subr.mxu0 0.0
        %2178 = vmatpush2.msra.mxu0 0.0
        %2179 = vmatprep.subr.mxu0 0.0
        %2180 = vmatpush2.msra.mxu0 0.0
        %2181 = vmatprep.subr.mxu0 0.0
        %2182 = vmatpush2.msra.mxu0 0.0
        %2183 = vmatprep.subr.mxu0 0.0
        %2184 = vmatpush2.msra.mxu0 0.0
        %2185 = vmatprep.subr.mxu0 0.0
        %2186 = vmatpush2.msra.mxu0 0.0
        %2187 = vmatprep.mubr.f32.mxu0 0.0
        %v2188 = vand.u32 %v705, 4294901760
        %2189 = vmatmul.mubr.f32.gmra.mxu0 %v2188
        %v2190 = vpop.f32.mrf.mxu0
        %v2191 = vadd.f32 %v2098, %v2190
        %v2192 = vpop.f32.mrf.mxu0
        %2193 = vmatprep.mubr.f32.mxu0 0.0
        %v2194 = vand.u32 %v706, 4294901760
        %2195 = vmatmul.mubr.f32.gmra.mxu0 %v2194
        %v2196 = vpop.f32.mrf.mxu0
        %v2197 = vadd.f32 %v2104, %v2196
        %v2198 = vpop.f32.mrf.mxu0
        %2199 = vdwg.mxu0
        %v2200 = vld [vmem:[#allocation11] sm:$0xf]
        %v2201 = vld [vmem:[#allocation11 + $0x4] sm:$0xf]
        %v2202 = vld [vmem:[#allocation11 + $0x8] sm:$0xf]
        %v2203 = vld [vmem:[#allocation11 + $0xc] sm:$0xf]
        %v2204 = vld [vmem:[#allocation11 + $0x10] sm:$0xf]
        %v2205 = vld [vmem:[#allocation11 + $0x14] sm:$0xf]
        %v2206 = vld [vmem:[#allocation11 + $0x18] sm:$0xf]
        %v2207 = vld [vmem:[#allocation11 + $0x1c] sm:$0xf]
        %v2216 = vunpack.c.l.b16 %v2200
        %v2217 = vunpack.c.l.b16 %v2201
        %v2218 = vunpack.c.l.b16 %v2202
        %v2219 = vunpack.c.l.b16 %v2203
        %v2220 = vunpack.c.l.b16 %v2204
        %v2221 = vunpack.c.l.b16 %v2205
        %v2222 = vunpack.c.l.b16 %v2206
        %v2223 = vunpack.c.l.b16 %v2207
        %v2224 = vpack.c.b16 %v2217, %v2216
        %v2225 = vpack.c.b16 %v2219, %v2218
        %v2226 = vpack.c.b16 %v2221, %v2220
        %v2227 = vpack.c.b16 %v2223, %v2222
        %2232 = vmatprep.subr.bf16.mxu0 0
        %2233 = vmatpush1.bf16.msra.mxu0 0
        %2234 = vmatprep.subr.bf16.mxu0 0
        %2235 = vmatpush1.bf16.msra.mxu0 0
        %2236 = vmatprep.subr.bf16.mxu0 0
        %2237 = vmatpush1.bf16.msra.mxu0 0
        %2238 = vmatprep.subr.bf16.mxu0 0
        %2239 = vmatpush1.bf16.msra.mxu0 0
        %2240 = vmatprep.subr.bf16.mxu0 0
        %2241 = vmatpush1.bf16.msra.mxu0 %v2227
        %2242 = vmatprep.subr.bf16.mxu0 0
        %2243 = vmatpush1.bf16.msra.mxu0 %v2226
        %2244 = vmatprep.subr.bf16.mxu0 0
        %2245 = vmatpush1.bf16.msra.mxu0 %v2225
        %2246 = vmatprep.subr.bf16.mxu0 0
        %2247 = vmatpush1.bf16.msra.mxu0 %v2224
        %2248 = vmatprep.subr.bf16.mxu0 0
        %2249 = vmatpush2.bf16.msra.mxu0 0
        %2250 = vmatprep.subr.bf16.mxu0 0
        %2251 = vmatpush2.bf16.msra.mxu0 0
        %2252 = vmatprep.subr.bf16.mxu0 0
        %2253 = vmatpush2.bf16.msra.mxu0 0
        %2254 = vmatprep.subr.bf16.mxu0 0
        %2255 = vmatpush2.bf16.msra.mxu0 0
        %2256 = vmatprep.subr.bf16.mxu0 0
        %2257 = vmatpush2.bf16.msra.mxu0 0
        %2258 = vmatprep.subr.bf16.mxu0 0
        %2259 = vmatpush2.bf16.msra.mxu0 0
        %2260 = vmatprep.subr.bf16.mxu0 0
        %2261 = vmatpush2.bf16.msra.mxu0 0
        %2262 = vmatprep.subr.bf16.mxu0 0
        %2263 = vmatpush2.bf16.msra.mxu0 0
        %2264 = vmatprep.mubr.bf16.mxu0 0
        %2265 = vmatmul.mubr.bf16.gmra.mxu0 %v644
        %v2266 = vpop.f32.mrf.mxu0
        %v2267 = vadd.f32 0.0, %v2266
        %v2268 = vpop.f32.mrf.mxu0
        %v2269 = vpop.f32.mrf.mxu0
        %v2270 = vadd.f32 0.0, %v2269
        %v2271 = vpop.f32.mrf.mxu0
        %2272 = vdwg.mxu0
        %v2273 = vld [vmem:[%s10] sm:$0x1]
        %v2275 = vlaneseq
        %v2276 = vshrl.u32 %v2275, 7
        %v2277 = vsub.s32 0, %v2276
        %v2278 = vrot.slane %v2273, %v2277
        %v2280 = vmul.f32 %v2267, %v2278
        %v2281 = vmul.f32 %v2270, %v2278
        %v2282 = vld [vmem:[%s11] sm:$0x1]
        %v2284 = vlaneseq
        %v2285 = vshrl.u32 %v2284, 7
        %v2286 = vsub.s32 0, %v2285
        %v2287 = vrot.slane %v2282, %v2286
        %v2289 = vadd.f32 %v2280, %v2287
        %v2290 = vadd.f32 %v2281, %v2287
        %v2291 = vmax.f32 %v2289, 0.0
        %v2292 = vmax.f32 %v2290, 0.0
        %v2293 = vld [vmem:[#allocation13] sm:$0xff]
        %v2294 = vld [vmem:[#allocation13 + $0x8] sm:$0xff]
        %v2295 = vld [vmem:[#allocation13 + $0x10] sm:$0xff]
        %v2296 = vld [vmem:[#allocation13 + $0x18] sm:$0xff]
        %v2297 = vld [vmem:[#allocation13 + $0x20] sm:$0xff]
        %v2298 = vld [vmem:[#allocation13 + $0x28] sm:$0xff]
        %v2299 = vld [vmem:[#allocation13 + $0x30] sm:$0xff]
        %v2300 = vld [vmem:[#allocation13 + $0x38] sm:$0xff]
        %v2301 = vld [vmem:[#allocation13 + $0x40] sm:$0xff]
        %v2302 = vld [vmem:[#allocation13 + $0x48] sm:$0xff]
        %v2303 = vld [vmem:[#allocation13 + $0x50] sm:$0xff]
        %v2304 = vld [vmem:[#allocation13 + $0x58] sm:$0xff]
        %v2305 = vld [vmem:[#allocation13 + $0x60] sm:$0xff]
        %v2306 = vld [vmem:[#allocation13 + $0x68] sm:$0xff]
        %v2307 = vld [vmem:[#allocation13 + $0x70] sm:$0xff]
        %v2308 = vld [vmem:[#allocation13 + $0x78] sm:$0xff]
        %2309 = vmatprep.subr.mxu0 0.0
        %v2310 = vand.u32 %v2308, 4294901760
        %2311 = vmatpush1.msra.mxu0 %v2310
        %2312 = vmatprep.subr.mxu0 0.0
        %v2313 = vand.u32 %v2307, 4294901760
        %2314 = vmatpush1.msra.mxu0 %v2313
        %2315 = vmatprep.subr.mxu0 0.0
        %v2316 = vand.u32 %v2306, 4294901760
        %2317 = vmatpush1.msra.mxu0 %v2316
        %2318 = vmatprep.subr.mxu0 0.0
        %v2319 = vand.u32 %v2305, 4294901760
        %2320 = vmatpush1.msra.mxu0 %v2319
        %2321 = vmatprep.subr.mxu0 0.0
        %v2322 = vand.u32 %v2304, 4294901760
        %2323 = vmatpush1.msra.mxu0 %v2322
        %2324 = vmatprep.subr.mxu0 0.0
        %v2325 = vand.u32 %v2303, 4294901760
        %2326 = vmatpush1.msra.mxu0 %v2325
        %2327 = vmatprep.subr.mxu0 0.0
        %v2328 = vand.u32 %v2302, 4294901760
        %2329 = vmatpush1.msra.mxu0 %v2328
        %2330 = vmatprep.subr.mxu0 0.0
        %v2331 = vand.u32 %v2301, 4294901760
        %2332 = vmatpush1.msra.mxu0 %v2331
        %2333 = vmatprep.subr.mxu0 0.0
        %v2334 = vand.u32 %v2300, 4294901760
        %2335 = vmatpush1.msra.mxu0 %v2334
        %2336 = vmatprep.subr.mxu0 0.0
        %v2337 = vand.u32 %v2299, 4294901760
        %2338 = vmatpush1.msra.mxu0 %v2337
        %2339 = vmatprep.subr.mxu0 0.0
        %v2340 = vand.u32 %v2298, 4294901760
        %2341 = vmatpush1.msra.mxu0 %v2340
        %2342 = vmatprep.subr.mxu0 0.0
        %v2343 = vand.u32 %v2297, 4294901760
        %2344 = vmatpush1.msra.mxu0 %v2343
        %2345 = vmatprep.subr.mxu0 0.0
        %v2346 = vand.u32 %v2296, 4294901760
        %2347 = vmatpush1.msra.mxu0 %v2346
        %2348 = vmatprep.subr.mxu0 0.0
        %v2349 = vand.u32 %v2295, 4294901760
        %2350 = vmatpush1.msra.mxu0 %v2349
        %2351 = vmatprep.subr.mxu0 0.0
        %v2352 = vand.u32 %v2294, 4294901760
        %2353 = vmatpush1.msra.mxu0 %v2352
        %2354 = vmatprep.subr.mxu0 0.0
        %v2355 = vand.u32 %v2293, 4294901760
        %2356 = vmatpush1.msra.mxu0 %v2355
        %2357 = vmatprep.subr.mxu0 0.0
        %2358 = vmatpush2.msra.mxu0 0.0
        %2359 = vmatprep.subr.mxu0 0.0
        %2360 = vmatpush2.msra.mxu0 0.0
        %2361 = vmatprep.subr.mxu0 0.0
        %2362 = vmatpush2.msra.mxu0 0.0
        %2363 = vmatprep.subr.mxu0 0.0
        %2364 = vmatpush2.msra.mxu0 0.0
        %2365 = vmatprep.subr.mxu0 0.0
        %2366 = vmatpush2.msra.mxu0 0.0
        %2367 = vmatprep.subr.mxu0 0.0
        %2368 = vmatpush2.msra.mxu0 0.0
        %2369 = vmatprep.subr.mxu0 0.0
        %2370 = vmatpush2.msra.mxu0 0.0
        %2371 = vmatprep.subr.mxu0 0.0
        %2372 = vmatpush2.msra.mxu0 0.0
        %2373 = vmatprep.subr.mxu0 0.0
        %2374 = vmatpush2.msra.mxu0 0.0
        %2375 = vmatprep.subr.mxu0 0.0
        %2376 = vmatpush2.msra.mxu0 0.0
        %2377 = vmatprep.subr.mxu0 0.0
        %2378 = vmatpush2.msra.mxu0 0.0
        %2379 = vmatprep.subr.mxu0 0.0
        %2380 = vmatpush2.msra.mxu0 0.0
        %2381 = vmatprep.subr.mxu0 0.0
        %2382 = vmatpush2.msra.mxu0 0.0
        %2383 = vmatprep.subr.mxu0 0.0
        %2384 = vmatpush2.msra.mxu0 0.0
        %2385 = vmatprep.subr.mxu0 0.0
        %2386 = vmatpush2.msra.mxu0 0.0
        %2387 = vmatprep.subr.mxu0 0.0
        %2388 = vmatpush2.msra.mxu0 0.0
        %2389 = vmatprep.mubr.f32.mxu0 0.0
        %v2390 = vand.u32 %v2291, 4294901760
        %v2391 = vsub.f32 %v2291, %v2390
        %v2392 = vand.u32 %v2391, 4294901760
        %v2393 = vsub.f32 %v2391, %v2392
        %v2394 = vand.u32 %v2393, 4294901760
        %2395 = vmatmul.mubr.f32.gmra.mxu0 %v2394
        %v2396 = vpop.f32.mrf.mxu0
        %v2397 = vadd.f32 0.0, %v2396
        %v2398 = vpop.f32.mrf.mxu0
        %2399 = vmatprep.mubr.f32.mxu0 0.0
        %v2400 = vand.u32 %v2292, 4294901760
        %v2401 = vsub.f32 %v2292, %v2400
        %v2402 = vand.u32 %v2401, 4294901760
        %v2403 = vsub.f32 %v2401, %v2402
        %v2404 = vand.u32 %v2403, 4294901760
        %2405 = vmatmul.mubr.f32.gmra.mxu0 %v2404
        %v2406 = vpop.f32.mrf.mxu0
        %v2407 = vadd.f32 0.0, %v2406
        %v2408 = vpop.f32.mrf.mxu0
        %2409 = vdwg.mxu0
        %2410 = vmatprep.subr.mxu0 0.0
        %v2411 = vand.u32 %v2308, 4294901760
        %v2412 = vsub.f32 %v2308, %v2411
        %v2413 = vand.u32 %v2412, 4294901760
        %v2414 = vsub.f32 %v2412, %v2413
        %v2415 = vand.u32 %v2414, 4294901760
        %2416 = vmatpush1.msra.mxu0 %v2415
        %2417 = vmatprep.subr.mxu0 0.0
        %v2418 = vand.u32 %v2307, 4294901760
        %v2419 = vsub.f32 %v2307, %v2418
        %v2420 = vand.u32 %v2419, 4294901760
        %v2421 = vsub.f32 %v2419, %v2420
        %v2422 = vand.u32 %v2421, 4294901760
        %2423 = vmatpush1.msra.mxu0 %v2422
        %2424 = vmatprep.subr.mxu0 0.0
        %v2425 = vand.u32 %v2306, 4294901760
        %v2426 = vsub.f32 %v2306, %v2425
        %v2427 = vand.u32 %v2426, 4294901760
        %v2428 = vsub.f32 %v2426, %v2427
        %v2429 = vand.u32 %v2428, 4294901760
        %2430 = vmatpush1.msra.mxu0 %v2429
        %2431 = vmatprep.subr.mxu0 0.0
        %v2432 = vand.u32 %v2305, 4294901760
        %v2433 = vsub.f32 %v2305, %v2432
        %v2434 = vand.u32 %v2433, 4294901760
        %v2435 = vsub.f32 %v2433, %v2434
        %v2436 = vand.u32 %v2435, 4294901760
        %2437 = vmatpush1.msra.mxu0 %v2436
        %2438 = vmatprep.subr.mxu0 0.0
        %v2439 = vand.u32 %v2304, 4294901760
        %v2440 = vsub.f32 %v2304, %v2439
        %v2441 = vand.u32 %v2440, 4294901760
        %v2442 = vsub.f32 %v2440, %v2441
        %v2443 = vand.u32 %v2442, 4294901760
        %2444 = vmatpush1.msra.mxu0 %v2443
        %2445 = vmatprep.subr.mxu0 0.0
        %v2446 = vand.u32 %v2303, 4294901760
        %v2447 = vsub.f32 %v2303, %v2446
        %v2448 = vand.u32 %v2447, 4294901760
        %v2449 = vsub.f32 %v2447, %v2448
        %v2450 = vand.u32 %v2449, 4294901760
        %2451 = vmatpush1.msra.mxu0 %v2450
        %2452 = vmatprep.subr.mxu0 0.0
        %v2453 = vand.u32 %v2302, 4294901760
        %v2454 = vsub.f32 %v2302, %v2453
        %v2455 = vand.u32 %v2454, 4294901760
        %v2456 = vsub.f32 %v2454, %v2455
        %v2457 = vand.u32 %v2456, 4294901760
        %2458 = vmatpush1.msra.mxu0 %v2457
        %2459 = vmatprep.subr.mxu0 0.0
        %v2460 = vand.u32 %v2301, 4294901760
        %v2461 = vsub.f32 %v2301, %v2460
        %v2462 = vand.u32 %v2461, 4294901760
        %v2463 = vsub.f32 %v2461, %v2462
        %v2464 = vand.u32 %v2463, 4294901760
        %2465 = vmatpush1.msra.mxu0 %v2464
        %2466 = vmatprep.subr.mxu0 0.0
        %v2467 = vand.u32 %v2300, 4294901760
        %v2468 = vsub.f32 %v2300, %v2467
        %v2469 = vand.u32 %v2468, 4294901760
        %v2470 = vsub.f32 %v2468, %v2469
        %v2471 = vand.u32 %v2470, 4294901760
        %2472 = vmatpush1.msra.mxu0 %v2471
        %2473 = vmatprep.subr.mxu0 0.0
        %v2474 = vand.u32 %v2299, 4294901760
        %v2475 = vsub.f32 %v2299, %v2474
        %v2476 = vand.u32 %v2475, 4294901760
        %v2477 = vsub.f32 %v2475, %v2476
        %v2478 = vand.u32 %v2477, 4294901760
        %2479 = vmatpush1.msra.mxu0 %v2478
        %2480 = vmatprep.subr.mxu0 0.0
        %v2481 = vand.u32 %v2298, 4294901760
        %v2482 = vsub.f32 %v2298, %v2481
        %v2483 = vand.u32 %v2482, 4294901760
        %v2484 = vsub.f32 %v2482, %v2483
        %v2485 = vand.u32 %v2484, 4294901760
        %2486 = vmatpush1.msra.mxu0 %v2485
        %2487 = vmatprep.subr.mxu0 0.0
        %v2488 = vand.u32 %v2297, 4294901760
        %v2489 = vsub.f32 %v2297, %v2488
        %v2490 = vand.u32 %v2489, 4294901760
        %v2491 = vsub.f32 %v2489, %v2490
        %v2492 = vand.u32 %v2491, 4294901760
        %2493 = vmatpush1.msra.mxu0 %v2492
        %2494 = vmatprep.subr.mxu0 0.0
        %v2495 = vand.u32 %v2296, 4294901760
        %v2496 = vsub.f32 %v2296, %v2495
        %v2497 = vand.u32 %v2496, 4294901760
        %v2498 = vsub.f32 %v2496, %v2497
        %v2499 = vand.u32 %v2498, 4294901760
        %2500 = vmatpush1.msra.mxu0 %v2499
        %2501 = vmatprep.subr.mxu0 0.0
        %v2502 = vand.u32 %v2295, 4294901760
        %v2503 = vsub.f32 %v2295, %v2502
        %v2504 = vand.u32 %v2503, 4294901760
        %v2505 = vsub.f32 %v2503, %v2504
        %v2506 = vand.u32 %v2505, 4294901760
        %2507 = vmatpush1.msra.mxu0 %v2506
        %2508 = vmatprep.subr.mxu0 0.0
        %v2509 = vand.u32 %v2294, 4294901760
        %v2510 = vsub.f32 %v2294, %v2509
        %v2511 = vand.u32 %v2510, 4294901760
        %v2512 = vsub.f32 %v2510, %v2511
        %v2513 = vand.u32 %v2512, 4294901760
        %2514 = vmatpush1.msra.mxu0 %v2513
        %2515 = vmatprep.subr.mxu0 0.0
        %v2516 = vand.u32 %v2293, 4294901760
        %v2517 = vsub.f32 %v2293, %v2516
        %v2518 = vand.u32 %v2517, 4294901760
        %v2519 = vsub.f32 %v2517, %v2518
        %v2520 = vand.u32 %v2519, 4294901760
        %2521 = vmatpush1.msra.mxu0 %v2520
        %2522 = vmatprep.subr.mxu0 0.0
        %2523 = vmatpush2.msra.mxu0 0.0
        %2524 = vmatprep.subr.mxu0 0.0
        %2525 = vmatpush2.msra.mxu0 0.0
        %2526 = vmatprep.subr.mxu0 0.0
        %2527 = vmatpush2.msra.mxu0 0.0
        %2528 = vmatprep.subr.mxu0 0.0
        %2529 = vmatpush2.msra.mxu0 0.0
        %2530 = vmatprep.subr.mxu0 0.0
        %2531 = vmatpush2.msra.mxu0 0.0
        %2532 = vmatprep.subr.mxu0 0.0
        %2533 = vmatpush2.msra.mxu0 0.0
        %2534 = vmatprep.subr.mxu0 0.0
        %2535 = vmatpush2.msra.mxu0 0.0
        %2536 = vmatprep.subr.mxu0 0.0
        %2537 = vmatpush2.msra.mxu0 0.0
        %2538 = vmatprep.subr.mxu0 0.0
        %2539 = vmatpush2.msra.mxu0 0.0
        %2540 = vmatprep.subr.mxu0 0.0
        %2541 = vmatpush2.msra.mxu0 0.0
        %2542 = vmatprep.subr.mxu0 0.0
        %2543 = vmatpush2.msra.mxu0 0.0
        %2544 = vmatprep.subr.mxu0 0.0
        %2545 = vmatpush2.msra.mxu0 0.0
        %2546 = vmatprep.subr.mxu0 0.0
        %2547 = vmatpush2.msra.mxu0 0.0
        %2548 = vmatprep.subr.mxu0 0.0
        %2549 = vmatpush2.msra.mxu0 0.0
        %2550 = vmatprep.subr.mxu0 0.0
        %2551 = vmatpush2.msra.mxu0 0.0
        %2552 = vmatprep.subr.mxu0 0.0
        %2553 = vmatpush2.msra.mxu0 0.0
        %2554 = vmatprep.mubr.f32.mxu0 0.0
        %v2555 = vand.u32 %v2291, 4294901760
        %2556 = vmatmul.mubr.f32.gmra.mxu0 %v2555
        %v2557 = vpop.f32.mrf.mxu0
        %v2558 = vadd.f32 %v2397, %v2557
        %v2559 = vpop.f32.mrf.mxu0
        %2560 = vmatprep.mubr.f32.mxu0 0.0
        %v2561 = vand.u32 %v2292, 4294901760
        %2562 = vmatmul.mubr.f32.gmra.mxu0 %v2561
        %v2563 = vpop.f32.mrf.mxu0
        %v2564 = vadd.f32 %v2407, %v2563
        %v2565 = vpop.f32.mrf.mxu0
        %2566 = vdwg.mxu0
        %2567 = vmatprep.subr.mxu0 0.0
        %v2568 = vand.u32 %v2308, 4294901760
        %v2569 = vsub.f32 %v2308, %v2568
        %2570 = vmatpush1.msra.mxu0 %v2569
        %2571 = vmatprep.subr.mxu0 0.0
        %v2572 = vand.u32 %v2307, 4294901760
        %v2573 = vsub.f32 %v2307, %v2572
        %2574 = vmatpush1.msra.mxu0 %v2573
        %2575 = vmatprep.subr.mxu0 0.0
        %v2576 = vand.u32 %v2306, 4294901760
        %v2577 = vsub.f32 %v2306, %v2576
        %2578 = vmatpush1.msra.mxu0 %v2577
        %2579 = vmatprep.subr.mxu0 0.0
        %v2580 = vand.u32 %v2305, 4294901760
        %v2581 = vsub.f32 %v2305, %v2580
        %2582 = vmatpush1.msra.mxu0 %v2581
        %2583 = vmatprep.subr.mxu0 0.0
        %v2584 = vand.u32 %v2304, 4294901760
        %v2585 = vsub.f32 %v2304, %v2584
        %2586 = vmatpush1.msra.mxu0 %v2585
        %2587 = vmatprep.subr.mxu0 0.0
        %v2588 = vand.u32 %v2303, 4294901760
        %v2589 = vsub.f32 %v2303, %v2588
        %2590 = vmatpush1.msra.mxu0 %v2589
        %2591 = vmatprep.subr.mxu0 0.0
        %v2592 = vand.u32 %v2302, 4294901760
        %v2593 = vsub.f32 %v2302, %v2592
        %2594 = vmatpush1.msra.mxu0 %v2593
        %2595 = vmatprep.subr.mxu0 0.0
        %v2596 = vand.u32 %v2301, 4294901760
        %v2597 = vsub.f32 %v2301, %v2596
        %2598 = vmatpush1.msra.mxu0 %v2597
        %2599 = vmatprep.subr.mxu0 0.0
        %v2600 = vand.u32 %v2300, 4294901760
        %v2601 = vsub.f32 %v2300, %v2600
        %2602 = vmatpush1.msra.mxu0 %v2601
        %2603 = vmatprep.subr.mxu0 0.0
        %v2604 = vand.u32 %v2299, 4294901760
        %v2605 = vsub.f32 %v2299, %v2604
        %2606 = vmatpush1.msra.mxu0 %v2605
        %2607 = vmatprep.subr.mxu0 0.0
        %v2608 = vand.u32 %v2298, 4294901760
        %v2609 = vsub.f32 %v2298, %v2608
        %2610 = vmatpush1.msra.mxu0 %v2609
        %2611 = vmatprep.subr.mxu0 0.0
        %v2612 = vand.u32 %v2297, 4294901760
        %v2613 = vsub.f32 %v2297, %v2612
        %2614 = vmatpush1.msra.mxu0 %v2613
        %2615 = vmatprep.subr.mxu0 0.0
        %v2616 = vand.u32 %v2296, 4294901760
        %v2617 = vsub.f32 %v2296, %v2616
        %2618 = vmatpush1.msra.mxu0 %v2617
        %2619 = vmatprep.subr.mxu0 0.0
        %v2620 = vand.u32 %v2295, 4294901760
        %v2621 = vsub.f32 %v2295, %v2620
        %2622 = vmatpush1.msra.mxu0 %v2621
        %2623 = vmatprep.subr.mxu0 0.0
        %v2624 = vand.u32 %v2294, 4294901760
        %v2625 = vsub.f32 %v2294, %v2624
        %2626 = vmatpush1.msra.mxu0 %v2625
        %2627 = vmatprep.subr.mxu0 0.0
        %v2628 = vand.u32 %v2293, 4294901760
        %v2629 = vsub.f32 %v2293, %v2628
        %2630 = vmatpush1.msra.mxu0 %v2629
        %2631 = vmatprep.subr.mxu0 0.0
        %2632 = vmatpush2.msra.mxu0 0.0
        %2633 = vmatprep.subr.mxu0 0.0
        %2634 = vmatpush2.msra.mxu0 0.0
        %2635 = vmatprep.subr.mxu0 0.0
        %2636 = vmatpush2.msra.mxu0 0.0
        %2637 = vmatprep.subr.mxu0 0.0
        %2638 = vmatpush2.msra.mxu0 0.0
        %2639 = vmatprep.subr.mxu0 0.0
        %2640 = vmatpush2.msra.mxu0 0.0
        %2641 = vmatprep.subr.mxu0 0.0
        %2642 = vmatpush2.msra.mxu0 0.0
        %2643 = vmatprep.subr.mxu0 0.0
        %2644 = vmatpush2.msra.mxu0 0.0
        %2645 = vmatprep.subr.mxu0 0.0
        %2646 = vmatpush2.msra.mxu0 0.0
        %2647 = vmatprep.subr.mxu0 0.0
        %2648 = vmatpush2.msra.mxu0 0.0
        %2649 = vmatprep.subr.mxu0 0.0
        %2650 = vmatpush2.msra.mxu0 0.0
        %2651 = vmatprep.subr.mxu0 0.0
        %2652 = vmatpush2.msra.mxu0 0.0
        %2653 = vmatprep.subr.mxu0 0.0
        %2654 = vmatpush2.msra.mxu0 0.0
        %2655 = vmatprep.subr.mxu0 0.0
        %2656 = vmatpush2.msra.mxu0 0.0
        %2657 = vmatprep.subr.mxu0 0.0
        %2658 = vmatpush2.msra.mxu0 0.0
        %2659 = vmatprep.subr.mxu0 0.0
        %2660 = vmatpush2.msra.mxu0 0.0
        %2661 = vmatprep.subr.mxu0 0.0
        %2662 = vmatpush2.msra.mxu0 0.0
        %2663 = vmatprep.mubr.f32.mxu0 0.0
        %v2664 = vand.u32 %v2291, 4294901760
        %v2665 = vsub.f32 %v2291, %v2664
        %2666 = vmatmul.mubr.f32.gmra.mxu0 %v2665
        %v2667 = vpop.f32.mrf.mxu0
        %v2668 = vadd.f32 %v2558, %v2667
        %v2669 = vpop.f32.mrf.mxu0
        %2670 = vmatprep.mubr.f32.mxu0 0.0
        %v2671 = vand.u32 %v2292, 4294901760
        %v2672 = vsub.f32 %v2292, %v2671
        %2673 = vmatmul.mubr.f32.gmra.mxu0 %v2672
        %v2674 = vpop.f32.mrf.mxu0
        %v2675 = vadd.f32 %v2564, %v2674
        %v2676 = vpop.f32.mrf.mxu0
        %2677 = vdwg.mxu0
        %2678 = vmatprep.subr.mxu0 0.0
        %v2679 = vand.u32 %v2308, 4294901760
        %2680 = vmatpush1.msra.mxu0 %v2679
        %2681 = vmatprep.subr.mxu0 0.0
        %v2682 = vand.u32 %v2307, 4294901760
        %2683 = vmatpush1.msra.mxu0 %v2682
        %2684 = vmatprep.subr.mxu0 0.0
        %v2685 = vand.u32 %v2306, 4294901760
        %2686 = vmatpush1.msra.mxu0 %v2685
        %2687 = vmatprep.subr.mxu0 0.0
        %v2688 = vand.u32 %v2305, 4294901760
        %2689 = vmatpush1.msra.mxu0 %v2688
        %2690 = vmatprep.subr.mxu0 0.0
        %v2691 = vand.u32 %v2304, 4294901760
        %2692 = vmatpush1.msra.mxu0 %v2691
        %2693 = vmatprep.subr.mxu0 0.0
        %v2694 = vand.u32 %v2303, 4294901760
        %2695 = vmatpush1.msra.mxu0 %v2694
        %2696 = vmatprep.subr.mxu0 0.0
        %v2697 = vand.u32 %v2302, 4294901760
        %2698 = vmatpush1.msra.mxu0 %v2697
        %2699 = vmatprep.subr.mxu0 0.0
        %v2700 = vand.u32 %v2301, 4294901760
        %2701 = vmatpush1.msra.mxu0 %v2700
        %2702 = vmatprep.subr.mxu0 0.0
        %v2703 = vand.u32 %v2300, 4294901760
        %2704 = vmatpush1.msra.mxu0 %v2703
        %2705 = vmatprep.subr.mxu0 0.0
        %v2706 = vand.u32 %v2299, 4294901760
        %2707 = vmatpush1.msra.mxu0 %v2706
        %2708 = vmatprep.subr.mxu0 0.0
        %v2709 = vand.u32 %v2298, 4294901760
        %2710 = vmatpush1.msra.mxu0 %v2709
        %2711 = vmatprep.subr.mxu0 0.0
        %v2712 = vand.u32 %v2297, 4294901760
        %2713 = vmatpush1.msra.mxu0 %v2712
        %2714 = vmatprep.subr.mxu0 0.0
        %v2715 = vand.u32 %v2296, 4294901760
        %2716 = vmatpush1.msra.mxu0 %v2715
        %2717 = vmatprep.subr.mxu0 0.0
        %v2718 = vand.u32 %v2295, 4294901760
        %2719 = vmatpush1.msra.mxu0 %v2718
        %2720 = vmatprep.subr.mxu0 0.0
        %v2721 = vand.u32 %v2294, 4294901760
        %2722 = vmatpush1.msra.mxu0 %v2721
        %2723 = vmatprep.subr.mxu0 0.0
        %v2724 = vand.u32 %v2293, 4294901760
        %2725 = vmatpush1.msra.mxu0 %v2724
        %2726 = vmatprep.subr.mxu0 0.0
        %2727 = vmatpush2.msra.mxu0 0.0
        %2728 = vmatprep.subr.mxu0 0.0
        %2729 = vmatpush2.msra.mxu0 0.0
        %2730 = vmatprep.subr.mxu0 0.0
        %2731 = vmatpush2.msra.mxu0 0.0
        %2732 = vmatprep.subr.mxu0 0.0
        %2733 = vmatpush2.msra.mxu0 0.0
        %2734 = vmatprep.subr.mxu0 0.0
        %2735 = vmatpush2.msra.mxu0 0.0
        %2736 = vmatprep.subr.mxu0 0.0
        %2737 = vmatpush2.msra.mxu0 0.0
        %2738 = vmatprep.subr.mxu0 0.0
        %2739 = vmatpush2.msra.mxu0 0.0
        %2740 = vmatprep.subr.mxu0 0.0
        %2741 = vmatpush2.msra.mxu0 0.0
        %2742 = vmatprep.subr.mxu0 0.0
        %2743 = vmatpush2.msra.mxu0 0.0
        %2744 = vmatprep.subr.mxu0 0.0
        %2745 = vmatpush2.msra.mxu0 0.0
        %2746 = vmatprep.subr.mxu0 0.0
        %2747 = vmatpush2.msra.mxu0 0.0
        %2748 = vmatprep.subr.mxu0 0.0
        %2749 = vmatpush2.msra.mxu0 0.0
        %2750 = vmatprep.subr.mxu0 0.0
        %2751 = vmatpush2.msra.mxu0 0.0
        %2752 = vmatprep.subr.mxu0 0.0
        %2753 = vmatpush2.msra.mxu0 0.0
        %2754 = vmatprep.subr.mxu0 0.0
        %2755 = vmatpush2.msra.mxu0 0.0
        %2756 = vmatprep.subr.mxu0 0.0
        %2757 = vmatpush2.msra.mxu0 0.0
        %2758 = vmatprep.mubr.f32.mxu0 0.0
        %v2759 = vand.u32 %v2291, 4294901760
        %v2760 = vsub.f32 %v2291, %v2759
        %v2761 = vand.u32 %v2760, 4294901760
        %2762 = vmatmul.mubr.f32.gmra.mxu0 %v2761
        %v2763 = vpop.f32.mrf.mxu0
        %v2764 = vadd.f32 %v2668, %v2763
        %v2765 = vpop.f32.mrf.mxu0
        %2766 = vmatprep.mubr.f32.mxu0 0.0
        %v2767 = vand.u32 %v2292, 4294901760
        %v2768 = vsub.f32 %v2292, %v2767
        %v2769 = vand.u32 %v2768, 4294901760
        %2770 = vmatmul.mubr.f32.gmra.mxu0 %v2769
        %v2771 = vpop.f32.mrf.mxu0
        %v2772 = vadd.f32 %v2675, %v2771
        %v2773 = vpop.f32.mrf.mxu0
        %2774 = vdwg.mxu0
        %2775 = vmatprep.subr.mxu0 0.0
        %v2776 = vand.u32 %v2308, 4294901760
        %v2777 = vsub.f32 %v2308, %v2776
        %v2778 = vand.u32 %v2777, 4294901760
        %2779 = vmatpush1.msra.mxu0 %v2778
        %2780 = vmatprep.subr.mxu0 0.0
        %v2781 = vand.u32 %v2307, 4294901760
        %v2782 = vsub.f32 %v2307, %v2781
        %v2783 = vand.u32 %v2782, 4294901760
        %2784 = vmatpush1.msra.mxu0 %v2783
        %2785 = vmatprep.subr.mxu0 0.0
        %v2786 = vand.u32 %v2306, 4294901760
        %v2787 = vsub.f32 %v2306, %v2786
        %v2788 = vand.u32 %v2787, 4294901760
        %2789 = vmatpush1.msra.mxu0 %v2788
        %2790 = vmatprep.subr.mxu0 0.0
        %v2791 = vand.u32 %v2305, 4294901760
        %v2792 = vsub.f32 %v2305, %v2791
        %v2793 = vand.u32 %v2792, 4294901760
        %2794 = vmatpush1.msra.mxu0 %v2793
        %2795 = vmatprep.subr.mxu0 0.0
        %v2796 = vand.u32 %v2304, 4294901760
        %v2797 = vsub.f32 %v2304, %v2796
        %v2798 = vand.u32 %v2797, 4294901760
        %2799 = vmatpush1.msra.mxu0 %v2798
        %2800 = vmatprep.subr.mxu0 0.0
        %v2801 = vand.u32 %v2303, 4294901760
        %v2802 = vsub.f32 %v2303, %v2801
        %v2803 = vand.u32 %v2802, 4294901760
        %2804 = vmatpush1.msra.mxu0 %v2803
        %2805 = vmatprep.subr.mxu0 0.0
        %v2806 = vand.u32 %v2302, 4294901760
        %v2807 = vsub.f32 %v2302, %v2806
        %v2808 = vand.u32 %v2807, 4294901760
        %2809 = vmatpush1.msra.mxu0 %v2808
        %2810 = vmatprep.subr.mxu0 0.0
        %v2811 = vand.u32 %v2301, 4294901760
        %v2812 = vsub.f32 %v2301, %v2811
        %v2813 = vand.u32 %v2812, 4294901760
        %2814 = vmatpush1.msra.mxu0 %v2813
        %2815 = vmatprep.subr.mxu0 0.0
        %v2816 = vand.u32 %v2300, 4294901760
        %v2817 = vsub.f32 %v2300, %v2816
        %v2818 = vand.u32 %v2817, 4294901760
        %2819 = vmatpush1.msra.mxu0 %v2818
        %2820 = vmatprep.subr.mxu0 0.0
        %v2821 = vand.u32 %v2299, 4294901760
        %v2822 = vsub.f32 %v2299, %v2821
        %v2823 = vand.u32 %v2822, 4294901760
        %2824 = vmatpush1.msra.mxu0 %v2823
        %2825 = vmatprep.subr.mxu0 0.0
        %v2826 = vand.u32 %v2298, 4294901760
        %v2827 = vsub.f32 %v2298, %v2826
        %v2828 = vand.u32 %v2827, 4294901760
        %2829 = vmatpush1.msra.mxu0 %v2828
        %2830 = vmatprep.subr.mxu0 0.0
        %v2831 = vand.u32 %v2297, 4294901760
        %v2832 = vsub.f32 %v2297, %v2831
        %v2833 = vand.u32 %v2832, 4294901760
        %2834 = vmatpush1.msra.mxu0 %v2833
        %2835 = vmatprep.subr.mxu0 0.0
        %v2836 = vand.u32 %v2296, 4294901760
        %v2837 = vsub.f32 %v2296, %v2836
        %v2838 = vand.u32 %v2837, 4294901760
        %2839 = vmatpush1.msra.mxu0 %v2838
        %2840 = vmatprep.subr.mxu0 0.0
        %v2841 = vand.u32 %v2295, 4294901760
        %v2842 = vsub.f32 %v2295, %v2841
        %v2843 = vand.u32 %v2842, 4294901760
        %2844 = vmatpush1.msra.mxu0 %v2843
        %2845 = vmatprep.subr.mxu0 0.0
        %v2846 = vand.u32 %v2294, 4294901760
        %v2847 = vsub.f32 %v2294, %v2846
        %v2848 = vand.u32 %v2847, 4294901760
        %2849 = vmatpush1.msra.mxu0 %v2848
        %2850 = vmatprep.subr.mxu0 0.0
        %v2851 = vand.u32 %v2293, 4294901760
        %v2852 = vsub.f32 %v2293, %v2851
        %v2853 = vand.u32 %v2852, 4294901760
        %2854 = vmatpush1.msra.mxu0 %v2853
        %2855 = vmatprep.subr.mxu0 0.0
        %2856 = vmatpush2.msra.mxu0 0.0
        %2857 = vmatprep.subr.mxu0 0.0
        %2858 = vmatpush2.msra.mxu0 0.0
        %2859 = vmatprep.subr.mxu0 0.0
        %2860 = vmatpush2.msra.mxu0 0.0
        %2861 = vmatprep.subr.mxu0 0.0
        %2862 = vmatpush2.msra.mxu0 0.0
        %2863 = vmatprep.subr.mxu0 0.0
        %2864 = vmatpush2.msra.mxu0 0.0
        %2865 = vmatprep.subr.mxu0 0.0
        %2866 = vmatpush2.msra.mxu0 0.0
        %2867 = vmatprep.subr.mxu0 0.0
        %2868 = vmatpush2.msra.mxu0 0.0
        %2869 = vmatprep.subr.mxu0 0.0
        %2870 = vmatpush2.msra.mxu0 0.0
        %2871 = vmatprep.subr.mxu0 0.0
        %2872 = vmatpush2.msra.mxu0 0.0
        %2873 = vmatprep.subr.mxu0 0.0
        %2874 = vmatpush2.msra.mxu0 0.0
        %2875 = vmatprep.subr.mxu0 0.0
        %2876 = vmatpush2.msra.mxu0 0.0
        %2877 = vmatprep.subr.mxu0 0.0
        %2878 = vmatpush2.msra.mxu0 0.0
        %2879 = vmatprep.subr.mxu0 0.0
        %2880 = vmatpush2.msra.mxu0 0.0
        %2881 = vmatprep.subr.mxu0 0.0
        %2882 = vmatpush2.msra.mxu0 0.0
        %2883 = vmatprep.subr.mxu0 0.0
        %2884 = vmatpush2.msra.mxu0 0.0
        %2885 = vmatprep.subr.mxu0 0.0
        %2886 = vmatpush2.msra.mxu0 0.0
        %2887 = vmatprep.mubr.f32.mxu0 0.0
        %v2888 = vand.u32 %v2291, 4294901760
        %2889 = vmatmul.mubr.f32.gmra.mxu0 %v2888
        %v2890 = vpop.f32.mrf.mxu0
        %v2891 = vadd.f32 %v2764, %v2890
        %v2892 = vpop.f32.mrf.mxu0
        %2893 = vmatprep.mubr.f32.mxu0 0.0
        %v2894 = vand.u32 %v2292, 4294901760
        %2895 = vmatmul.mubr.f32.gmra.mxu0 %v2894
        %v2896 = vpop.f32.mrf.mxu0
        %v2897 = vadd.f32 %v2772, %v2896
        %v2898 = vpop.f32.mrf.mxu0
        %2899 = vdwg.mxu0
        %2900 = vmatprep.subr.mxu0 0.0
        %v2901 = vand.u32 %v2308, 4294901760
        %2902 = vmatpush1.msra.mxu0 %v2901
        %2903 = vmatprep.subr.mxu0 0.0
        %v2904 = vand.u32 %v2307, 4294901760
        %2905 = vmatpush1.msra.mxu0 %v2904
        %2906 = vmatprep.subr.mxu0 0.0
        %v2907 = vand.u32 %v2306, 4294901760
        %2908 = vmatpush1.msra.mxu0 %v2907
        %2909 = vmatprep.subr.mxu0 0.0
        %v2910 = vand.u32 %v2305, 4294901760
        %2911 = vmatpush1.msra.mxu0 %v2910
        %2912 = vmatprep.subr.mxu0 0.0
        %v2913 = vand.u32 %v2304, 4294901760
        %2914 = vmatpush1.msra.mxu0 %v2913
        %2915 = vmatprep.subr.mxu0 0.0
        %v2916 = vand.u32 %v2303, 4294901760
        %2917 = vmatpush1.msra.mxu0 %v2916
        %2918 = vmatprep.subr.mxu0 0.0
        %v2919 = vand.u32 %v2302, 4294901760
        %2920 = vmatpush1.msra.mxu0 %v2919
        %2921 = vmatprep.subr.mxu0 0.0
        %v2922 = vand.u32 %v2301, 4294901760
        %2923 = vmatpush1.msra.mxu0 %v2922
        %2924 = vmatprep.subr.mxu0 0.0
        %v2925 = vand.u32 %v2300, 4294901760
        %2926 = vmatpush1.msra.mxu0 %v2925
        %2927 = vmatprep.subr.mxu0 0.0
        %v2928 = vand.u32 %v2299, 4294901760
        %2929 = vmatpush1.msra.mxu0 %v2928
        %2930 = vmatprep.subr.mxu0 0.0
        %v2931 = vand.u32 %v2298, 4294901760
        %2932 = vmatpush1.msra.mxu0 %v2931
        %2933 = vmatprep.subr.mxu0 0.0
        %v2934 = vand.u32 %v2297, 4294901760
        %2935 = vmatpush1.msra.mxu0 %v2934
        %2936 = vmatprep.subr.mxu0 0.0
        %v2937 = vand.u32 %v2296, 4294901760
        %2938 = vmatpush1.msra.mxu0 %v2937
        %2939 = vmatprep.subr.mxu0 0.0
        %v2940 = vand.u32 %v2295, 4294901760
        %2941 = vmatpush1.msra.mxu0 %v2940
        %2942 = vmatprep.subr.mxu0 0.0
        %v2943 = vand.u32 %v2294, 4294901760
        %2944 = vmatpush1.msra.mxu0 %v2943
        %2945 = vmatprep.subr.mxu0 0.0
        %v2946 = vand.u32 %v2293, 4294901760
        %2947 = vmatpush1.msra.mxu0 %v2946
        %2948 = vmatprep.subr.mxu0 0.0
        %2949 = vmatpush2.msra.mxu0 0.0
        %2950 = vmatprep.subr.mxu0 0.0
        %2951 = vmatpush2.msra.mxu0 0.0
        %2952 = vmatprep.subr.mxu0 0.0
        %2953 = vmatpush2.msra.mxu0 0.0
        %2954 = vmatprep.subr.mxu0 0.0
        %2955 = vmatpush2.msra.mxu0 0.0
        %2956 = vmatprep.subr.mxu0 0.0
        %2957 = vmatpush2.msra.mxu0 0.0
        %2958 = vmatprep.subr.mxu0 0.0
        %2959 = vmatpush2.msra.mxu0 0.0
        %2960 = vmatprep.subr.mxu0 0.0
        %2961 = vmatpush2.msra.mxu0 0.0
        %2962 = vmatprep.subr.mxu0 0.0
        %2963 = vmatpush2.msra.mxu0 0.0
        %2964 = vmatprep.subr.mxu0 0.0
        %2965 = vmatpush2.msra.mxu0 0.0
        %2966 = vmatprep.subr.mxu0 0.0
        %2967 = vmatpush2.msra.mxu0 0.0
        %2968 = vmatprep.subr.mxu0 0.0
        %2969 = vmatpush2.msra.mxu0 0.0
        %2970 = vmatprep.subr.mxu0 0.0
        %2971 = vmatpush2.msra.mxu0 0.0
        %2972 = vmatprep.subr.mxu0 0.0
        %2973 = vmatpush2.msra.mxu0 0.0
        %2974 = vmatprep.subr.mxu0 0.0
        %2975 = vmatpush2.msra.mxu0 0.0
        %2976 = vmatprep.subr.mxu0 0.0
        %2977 = vmatpush2.msra.mxu0 0.0
        %2978 = vmatprep.subr.mxu0 0.0
        %2979 = vmatpush2.msra.mxu0 0.0
        %2980 = vmatprep.mubr.f32.mxu0 0.0
        %v2981 = vand.u32 %v2291, 4294901760
        %2982 = vmatmul.mubr.f32.gmra.mxu0 %v2981
        %v2983 = vpop.f32.mrf.mxu0
        %v2984 = vadd.f32 %v2891, %v2983
        %v2985 = vpop.f32.mrf.mxu0
        %2986 = vmatprep.mubr.f32.mxu0 0.0
        %v2987 = vand.u32 %v2292, 4294901760
        %2988 = vmatmul.mubr.f32.gmra.mxu0 %v2987
        %v2989 = vpop.f32.mrf.mxu0
        %v2990 = vadd.f32 %v2897, %v2989
        %v2991 = vpop.f32.mrf.mxu0
        %2992 = vdwg.mxu0
        %v2993 = vadd.f32 %v2191, %v2984
        %v2994 = vadd.f32 %v2197, %v2990
        %v2995 = vld [vmem:[%s13] sm:$0x1]
        %v2997 = vlaneseq
        %v2998 = vshrl.u32 %v2997, 7
        %v2999 = vsub.s32 0, %v2998
        %v3000 = vrot.slane %v2995, %v2999
        %v3002 = vmul.f32 %v2993, %v3000
        %v3003 = vmul.f32 %v2994, %v3000
        %v3004 = vld [vmem:[%s14] sm:$0x1]
        %v3006 = vlaneseq
        %v3007 = vshrl.u32 %v3006, 7
        %v3008 = vsub.s32 0, %v3007
        %v3009 = vrot.slane %v3004, %v3008
        %v3011 = vadd.f32 %v3002, %v3009
        %v3012 = vadd.f32 %v3003, %v3009
        %v3013 = vmax.f32 %v3011, 0.0
        %v3014 = vmax.f32 %v3012, 0.0
        %3015 = vst [vmem:[%s599] sm:$0xff] %v3013
        %3016 = vst [vmem:[%s599 + $0x8] sm:$0xff] %v3014
        %s3017 = sand.u32 %s363, 1
        %s3018 = scalar_lea.sflag [#allocation4], %s3017
        %s3019 = sand.u32 %s363, 1
        %s3020 = smul.addr %s3019, 16
        %s3021 = scalar_lea.vmem [#allocation14], %s3020
        // Predicated region
        $region109: #{tpu_custom_call.1} parent=79 // pred_check
          %p3022 = pneg %p373
        $region110: #{tpu_custom_call.1} parent=79 // pred_check_branch
          %3024 = sbr.rel (%p3022) target = $region112
        $region111: #{tpu_custom_call.1} parent=79 // pred_region
          %s3025 = smul.u32 2, %s35
          %s3027 = ssub.s32 256, 256
          %3028 = vsyncadd %s3018, %s3027
          %s3029 = smul.addr %s3025, 128
          %s3030 = scalar_lea.hbm %s15, %s3029
          %s3031 = sshll.u32 %s3021, 4
          %s3032 = int_to_ptr.vmem [resolvable:$true] %s3031
          %3037 = dma.vmem_to_hbm [thread:$0]  %s3032, 256, %s3030, %s3018, 128, 128, 8
        $region112: #{tpu_custom_call.1} parent=79 // pred_fallthru
          _
      $region80: #{tpu_custom_call.1} parent=5 // pred_fallthru
        _
      %p3038 = scmp.le.s32.totalorder 2, %s30
      // Predicated region
      $region113: #{tpu_custom_call.1} parent=5 // pred_check
        %p3039 = pneg %p3038
      $region114: #{tpu_custom_call.1} parent=5 // pred_check_branch
        %3041 = sbr.rel (%p3039) target = $region116
      $region115: #{tpu_custom_call.1} parent=5 // pred_region
        %s3042 = ssub.s32 %s30, 2
        // Predicated region
        $region117: #{tpu_custom_call.1} parent=115 // pred_check
          %p3043 = pneg %p379
        $region118: #{tpu_custom_call.1} parent=115 // pred_check_branch
          %3045 = sbr.rel (%p3043) target = $region120
        $region119: #{tpu_custom_call.1} parent=115 // pred_region
          %s3046 = sand.u32 %s364, 1
          %s3047 = scalar_lea.sflag [#allocation4], %s3046
          %s3048 = sand.u32 %s364, 1
          %s3049 = smul.addr %s3048, 16
          %s3050 = scalar_lea.vmem [#allocation14], %s3049
          %3051 = dma.done %s3047, 256
        $region120: #{tpu_custom_call.1} parent=115 // pred_fallthru
          _
      $region116: #{tpu_custom_call.1} parent=5 // pred_fallthru
        _
    $region6: #{tpu_custom_call.1} parent=1 // loop_footer
      %s34 = sadd.s32 1, %s30
    $region7: #{tpu_custom_call.1} parent=1 // loop_footer_branch
      %29 = sbr.rel target = $region3
    $region8: #{tpu_custom_call.1} parent=1 // loop_exit
      _
    %3052 = vsyncpa [#allocation3], 1
    %s3053 = scalar_lea.sflag [#allocation3], 1
    %3054 = vsyncpa %s3053, 1
    %3055 = vsyncpa [#allocation6], 1
    %3056 = vsyncpa [#allocation9], 1
    %3057 = vsyncpa [#allocation12], 1
    %3058 = vsyncpa [#allocation4], 1
    %s3059 = scalar_lea.sflag [#allocation4], 1
    %3060 = vsyncpa %s3059, 1

</llo_original>
